<compile_context>
chip_gen: v5e
topology: v5e:2x2
jax: 0.10.0
libtpu: 0.0.40
codegen_flags: <defaults>
</compile_context>

<pallas_src>
import functools

import jax
import jax.numpy as jnp
from jax.experimental import pallas as pl
from jax.experimental.pallas import tpu as pltpu


def _make_fused_kernel(n_layers, T, Bp, E, H):
    """Build the fused LSTM(+Linear) kernel for static (n_layers, T, Bp, E, H)."""

    def kernel(*refs):
        # refs layout:
        #   0                 : x_flat     (T*Bp, E)
        #   1 .. 6*n_layers   : per layer: wih_f_t (D_in,4H), whh_f_t (H,4H),
        #                       b_f (1,4H), wih_b_t, whh_b_t, b_b
        #   1 + 6*n_layers    : lin_w_pad  (2H, 128)   (column 0 = real weight)
        #   2 + 6*n_layers    : lin_b_pad  (1, 128)
        #   3 + 6*n_layers    : out        (T*Bp, 128)
        #   4 + 6*n_layers .. : scratch: gx_f (T*Bp,4H), gx_b (T*Bp,4H),
        #                       h0 (T*Bp,2H), h1 (T*Bp,2H)
        x_ref = refs[0]
        layer_refs = refs[1:1 + 6 * n_layers]
        lin_w_ref = refs[1 + 6 * n_layers]
        lin_b_ref = refs[2 + 6 * n_layers]
        out_ref = refs[3 + 6 * n_layers]
        gxf_ref, gxb_ref, h0_ref, h1_ref = refs[4 + 6 * n_layers:]
        h_bufs = [h0_ref, h1_ref]  # ping-pong (T*Bp, 2H) across layers

        for layer in range(n_layers):
            wih_f, whh_f, b_f, wih_b, whh_b, b_b = (
                layer_refs[6 * layer:6 * layer + 6])
            h_out = h_bufs[layer % 2]

            if layer == 0:
                x_in = x_ref[...]                       # (T*Bp, E)
            else:
                x_in = h_bufs[(layer - 1) % 2][...]     # (T*Bp, 2H), one matmul

            # Whole-sequence input projections, written to explicit VMEM scratch
            # so they don't pin vregs across the unrolled recurrence.
            gxf_ref[...] = (jnp.dot(x_in, wih_f[...],
                                    preferred_element_type=jnp.float32)
                            + b_f[...])
            gxb_ref[...] = (jnp.dot(x_in, wih_b[...],
                                    preferred_element_type=jnp.float32)
                            + b_b[...])

            whhf = whh_f[...]   # (H, 4H), hoisted, reused every step
            whhb = whh_b[...]
            hf = jnp.zeros((Bp, H), jnp.float32)
            cf = jnp.zeros((Bp, H), jnp.float32)
            hb = jnp.zeros((Bp, H), jnp.float32)
            cb = jnp.zeros((Bp, H), jnp.float32)

            # Interleaved fwd/bwd recurrence: two independent serial chains per
            # iteration -> 2x ILP on the latency-bound h->MXU->EUP->h path.
            # TODO(synk): for large T use lax.fori_loop(..., unroll=4..8) with
            # pl.ds(pl.multiple_of(t*Bp, 8), Bp) indexing instead of full unroll.
            for t in range(T):
                tr = T - 1 - t  # backward-direction time index

                gf = gxf_ref[t * Bp:(t + 1) * Bp, :] + jnp.dot(
                    hf, whhf, preferred_element_type=jnp.float32)
                gb = gxb_ref[tr * Bp:(tr + 1) * Bp, :] + jnp.dot(
                    hb, whhb, preferred_element_type=jnp.float32)

                # Full-width nonlinearities (one sigmoid + one tanh push per
                # direction), gates taken via static lane slices.
                s_f = jax.nn.sigmoid(gf)     # (Bp, 4H)
                th_f = jnp.tanh(gf)
                s_b = jax.nn.sigmoid(gb)
                th_b = jnp.tanh(gb)

                cf = s_f[:, H:2 * H] * cf + s_f[:, 0:H] * th_f[:, 2 * H:3 * H]
                hf = s_f[:, 3 * H:4 * H] * jnp.tanh(cf)
                cb = s_b[:, H:2 * H] * cb + s_b[:, 0:H] * th_b[:, 2 * H:3 * H]
                hb = s_b[:, 3 * H:4 * H] * jnp.tanh(cb)

                # Merged hidden buffer: fwd -> lanes 0:H, bwd -> lanes H:2H.
                h_out[t * Bp:(t + 1) * Bp, 0:H] = hf
                h_out[tr * Bp:(tr + 1) * Bp, H:2 * H] = hb

        # Final Linear(2H -> 1) for every (t, b) row, lane-dense (128-wide
        # zero-padded weight) so the output store is unmasked; the "last batch
        # element" slice and the column-0 slice happen in the wrapper.
        h_last = h_bufs[(n_layers - 1) % 2][...]        # (T*Bp, 2H)
        out_ref[...] = (jnp.dot(h_last, lin_w_ref[...],
                                preferred_element_type=jnp.float32)
                        + lin_b_ref[...])

    return kernel


def _full_spec(shape):
    zeros = (0,) * len(shape)
    return pl.BlockSpec(shape, lambda *args: zeros)


def init_lstm_params(key, embedding_dim, hidden_dim, n_layers):
    """Deterministic parameter init mirroring nn.LSTM/nn.Linear shapes."""
    params = {"layers": []}
    H = hidden_dim
    k = 1.0 / jnp.sqrt(jnp.float32(H))
    for layer in range(n_layers):
        d_in = embedding_dim if layer == 0 else 2 * hidden_dim
        dirs = []
        for _ in range(2):  # forward, backward
            key, k1, k2, k3, k4 = jax.random.split(key, 5)
            w_ih = jax.random.uniform(k1, (4 * H, d_in), jnp.float32, -k, k)
            w_hh = jax.random.uniform(k2, (4 * H, H), jnp.float32, -k, k)
            b_ih = jax.random.uniform(k3, (4 * H,), jnp.float32, -k, k)
            b_hh = jax.random.uniform(k4, (4 * H,), jnp.float32, -k, k)
            dirs.append(
                dict(
                    w_ih_t=jnp.asarray(w_ih.T),          # (d_in, 4H)
                    w_hh_t=jnp.asarray(w_hh.T),          # (H, 4H)
                    b=(b_ih + b_hh)[None, :],            # (1, 4H)
                )
            )
        params["layers"].append(dirs)
    key, k1, k2 = jax.random.split(key, 3)
    kl = 1.0 / jnp.sqrt(jnp.float32(2 * H))
    params["lin_w_t"] = jax.random.uniform(k1, (2 * H, 1), jnp.float32, -kl, kl)
    params["lin_b"] = jax.random.uniform(k2, (1, 1), jnp.float32, -kl, kl)
    return params


@functools.partial(jax.jit, static_argnames=("n_layers",))
def lstm_forward(params, text, n_layers):
    """Replicates LSTM.forward(text) for text of shape (T, B, E) -> (T, 1)."""
    T, B, E = text.shape
    H = params["layers"][0][0]["w_hh_t"].shape[0]
    Bp = ((B + 7) // 8) * 8      # pad batch up to full sublanes
    LANES = 128                   # lane-dense output width

    # Pad batch (padded rows see zero input; LSTM rows are independent) and
    # flatten time into the sublane dimension for fat whole-sequence matmuls.
    x = jnp.pad(text, ((0, 0), (0, Bp - B), (0, 0)))
    x_flat = x.reshape(T * Bp, E)

    # Lane-dense Linear weight/bias: column 0 holds the real (2H->1) weight.
    lin_w_pad = jnp.zeros((2 * H, LANES), jnp.float32).at[:, 0:1].set(
        params["lin_w_t"])
    lin_b_pad = jnp.zeros((1, LANES), jnp.float32).at[:, 0:1].set(
        params["lin_b"])

    flat_inputs = [x_flat]
    in_specs = [_full_spec(x_flat.shape)]
    for layer in range(n_layers):
        for d in range(2):
            p = params["layers"][layer][d]
            for name in ("w_ih_t", "w_hh_t", "b"):
                arr = p[name]
                flat_inputs.append(arr)
                in_specs.append(_full_spec(arr.shape))
    flat_inputs += [lin_w_pad, lin_b_pad]
    in_specs += [_full_spec(lin_w_pad.shape), _full_spec(lin_b_pad.shape)]

    out_full = pl.pallas_call(
        _make_fused_kernel(n_layers, T, Bp, E, H),
        out_shape=jax.ShapeDtypeStruct((T * Bp, LANES), jnp.float32),
        grid=(),
        in_specs=in_specs,
        out_specs=_full_spec((T * Bp, LANES)),
        scratch_shapes=[
            pltpu.VMEM((T * Bp, 4 * H), jnp.float32),   # gx forward
            pltpu.VMEM((T * Bp, 4 * H), jnp.float32),   # gx backward
            pltpu.VMEM((T * Bp, 2 * H), jnp.float32),   # merged hidden, ping
            pltpu.VMEM((T * Bp, 2 * H), jnp.float32),   # merged hidden, pong
        ],
        compiler_params=pltpu.CompilerParams(
            # Tiny resident footprint at these shapes; explicit budget so the
            # design stays honest on v7x (64 MiB physical / 32 MiB scoped).
            vmem_limit_bytes=32 * 1024 * 1024),
    )(*flat_inputs)

    # result[0][:, -1, :] -> last (original) batch element; column 0 of the
    # lane-dense output slab is the real Linear output.
    # TODO(synk): nn.Dropout is identity in eval mode; training-mode random
    # dropout masking is intentionally not applied here.
    return out_full.reshape(T, Bp, LANES)[:, B - 1, 0:1]   # (T, 1)


def lstm_forward_ref(params, text, n_layers):
    """Pure-jnp reference mirroring nn.LSTM (bidirectional) + Linear."""
    x = text
    T, B, _ = x.shape
    for layer in range(n_layers):
        outs = []
        for d, reverse in ((0, False), (1, True)):
            p = params["layers"][layer][d]
            w_ih_t, w_hh_t, b = p["w_ih_t"], p["w_hh_t"], p["b"]
            H = w_hh_t.shape[0]
            h = jnp.zeros((B, H), jnp.float32)
            c = jnp.zeros((B, H), jnp.float32)
            hs = [None] * T
            order = range(T - 1, -1, -1) if reverse else range(T)
            for t in order:
                g = x[t] @ w_ih_t + h @ w_hh_t + b
                i_g = jax.nn.sigmoid(g[:, 0:H])
                f_g = jax.nn.sigmoid(g[:, H:2 * H])
                g_g = jnp.tanh(g[:, 2 * H:3 * H])
                o_g = jax.nn.sigmoid(g[:, 3 * H:4 * H])
                c = f_g * c + i_g * g_g
                h = o_g * jnp.tanh(c)
                hs[t] = h
            outs.append(jnp.stack(hs, axis=0))
        x = jnp.concatenate(outs, axis=-1)
    last = x[:, -1, :]
    return last @ params["lin_w_t"] + params["lin_b"]


if __name__ == "__main__":
    T, B, E, H, L = 8, 4, 16, 32, 2  # seq, batch, embedding, hidden, layers
    key = jax.random.PRNGKey(0)
    key, pkey, xkey = jax.random.split(key, 3)

    params = init_lstm_params(pkey, E, H, L)
    text = jax.random.normal(xkey, (T, B, E), jnp.float32)

    out = lstm_forward(params, text, n_layers=L)
    out = jax.block_until_ready(out)
    assert out.shape == (T, 1), out.shape
    assert jnp.all(jnp.isfinite(out))

    ref = lstm_forward_ref(params, text, L)
    assert jnp.allclose(out, ref, atol=5e-2, rtol=5e-2), (
        jnp.max(jnp.abs(out - ref)))
    print("KERNEL_OK")
</pallas_src>

<mosaic_0001>
module attributes {stable_mosaic.version = 11 : i64} {
  func.func @kernel(%arg0: memref<64x16xf32, #tpu.memory_space<vmem>>, %arg1: memref<16x128xf32, #tpu.memory_space<vmem>>, %arg2: memref<32x128xf32, #tpu.memory_space<vmem>>, %arg3: memref<1x128xf32, #tpu.memory_space<vmem>>, %arg4: memref<16x128xf32, #tpu.memory_space<vmem>>, %arg5: memref<32x128xf32, #tpu.memory_space<vmem>>, %arg6: memref<1x128xf32, #tpu.memory_space<vmem>>, %arg7: memref<64x128xf32, #tpu.memory_space<vmem>>, %arg8: memref<32x128xf32, #tpu.memory_space<vmem>>, %arg9: memref<1x128xf32, #tpu.memory_space<vmem>>, %arg10: memref<64x128xf32, #tpu.memory_space<vmem>>, %arg11: memref<32x128xf32, #tpu.memory_space<vmem>>, %arg12: memref<1x128xf32, #tpu.memory_space<vmem>>, %arg13: memref<64x128xf32, #tpu.memory_space<vmem>>, %arg14: memref<1x128xf32, #tpu.memory_space<vmem>>, %arg15: memref<64x128xf32, #tpu.memory_space<vmem>>, %arg16: memref<64x128xf32, #tpu.memory_space<vmem>>, %arg17: memref<64x128xf32, #tpu.memory_space<vmem>>, %arg18: memref<64x64xf32, #tpu.memory_space<vmem>>, %arg19: memref<64x64xf32, #tpu.memory_space<vmem>>) attributes {dimension_semantics = [], scalar_prefetch = 0 : i64, scratch_operands = 4 : i64, tpu.core_type = #tpu.core_type<tc>} {
    %c0 = arith.constant 0 : index
    %c0_0 = arith.constant 0 : index
    %0 = vector.load %arg0[%c0, %c0_0] : memref<64x16xf32, #tpu.memory_space<vmem>>, vector<64x16xf32>
    %c0_1 = arith.constant 0 : index
    %c0_2 = arith.constant 0 : index
    %1 = vector.load %arg1[%c0_1, %c0_2] : memref<16x128xf32, #tpu.memory_space<vmem>>, vector<16x128xf32>
    %cst = arith.constant dense<0.000000e+00> : vector<64x128xf32>
    %2 = tpu.matmul %0, %1, %cst {dimension_numbers = #tpu.dot_dimension_numbers<[1], [0], [0], [1], [0, 0, 1, 1], [], []>} : vector<64x16xf32>, vector<16x128xf32>, vector<64x128xf32> -> vector<64x128xf32>
    %c0_3 = arith.constant 0 : index
    %c0_4 = arith.constant 0 : index
    %3 = vector.load %arg3[%c0_3, %c0_4] : memref<1x128xf32, #tpu.memory_space<vmem>>, vector<1x128xf32>
    %4 = vector.broadcast %3 : vector<1x128xf32> to vector<64x128xf32>
    %5 = arith.addf %2, %4 : vector<64x128xf32>
    %c0_5 = arith.constant 0 : index
    %c0_6 = arith.constant 0 : index
    %6 = vector.load %arg16[%c0_5, %c0_6] : memref<64x128xf32, #tpu.memory_space<vmem>>, vector<64x128xf32>
    tpu.vector_store %arg16[%c0_5, %c0_6], %5 {strides = array<i32>} : memref<64x128xf32, #tpu.memory_space<vmem>>, vector<64x128xf32>,
    %c0_7 = arith.constant 0 : index
    %c0_8 = arith.constant 0 : index
    %7 = vector.load %arg4[%c0_7, %c0_8] : memref<16x128xf32, #tpu.memory_space<vmem>>, vector<16x128xf32>
    %cst_9 = arith.constant dense<0.000000e+00> : vector<64x128xf32>
    %8 = tpu.matmul %0, %7, %cst_9 {dimension_numbers = #tpu.dot_dimension_numbers<[1], [0], [0], [1], [0, 0, 1, 1], [], []>} : vector<64x16xf32>, vector<16x128xf32>, vector<64x128xf32> -> vector<64x128xf32>
    %c0_10 = arith.constant 0 : index
    %c0_11 = arith.constant 0 : index
    %9 = vector.load %arg6[%c0_10, %c0_11] : memref<1x128xf32, #tpu.memory_space<vmem>>, vector<1x128xf32>
    %10 = vector.broadcast %9 : vector<1x128xf32> to vector<64x128xf32>
    %11 = arith.addf %8, %10 : vector<64x128xf32>
    %c0_12 = arith.constant 0 : index
    %c0_13 = arith.constant 0 : index
    %12 = vector.load %arg17[%c0_12, %c0_13] : memref<64x128xf32, #tpu.memory_space<vmem>>, vector<64x128xf32>
    tpu.vector_store %arg17[%c0_12, %c0_13], %11 {strides = array<i32>} : memref<64x128xf32, #tpu.memory_space<vmem>>, vector<64x128xf32>,
    %c0_14 = arith.constant 0 : index
    %c0_15 = arith.constant 0 : index
    %13 = vector.load %arg2[%c0_14, %c0_15] : memref<32x128xf32, #tpu.memory_space<vmem>>, vector<32x128xf32>
    %c0_16 = arith.constant 0 : index
    %c0_17 = arith.constant 0 : index
    %14 = vector.load %arg5[%c0_16, %c0_17] : memref<32x128xf32, #tpu.memory_space<vmem>>, vector<32x128xf32>
    %cst_18 = arith.constant 0.000000e+00 : f32
    %15 = vector.broadcast %cst_18 : f32 to vector<8x32xf32>
    %cst_19 = arith.constant 0.000000e+00 : f32
    %16 = vector.broadcast %cst_19 : f32 to vector<8x32xf32>
    %cst_20 = arith.constant 0.000000e+00 : f32
    %17 = vector.broadcast %cst_20 : f32 to vector<8x32xf32>
    %cst_21 = arith.constant 0.000000e+00 : f32
    %18 = vector.broadcast %cst_21 : f32 to vector<8x32xf32>
    %c0_22 = arith.constant 0 : index
    %c0_23 = arith.constant 0 : index
    %19 = vector.load %arg16[%c0_22, %c0_23] : memref<64x128xf32, #tpu.memory_space<vmem>>, vector<8x128xf32>
    %cst_24 = arith.constant dense<0.000000e+00> : vector<8x128xf32>
    %20 = tpu.matmul %15, %13, %cst_24 {dimension_numbers = #tpu.dot_dimension_numbers<[1], [0], [0], [1], [0, 0, 1, 1], [], []>} : vector<8x32xf32>, vector<32x128xf32>, vector<8x128xf32> -> vector<8x128xf32>
    %21 = arith.addf %19, %20 : vector<8x128xf32>
    %c56 = arith.constant 56 : index
    %c0_25 = arith.constant 0 : index
    %22 = vector.load %arg17[%c56, %c0_25] : memref<64x128xf32, #tpu.memory_space<vmem>>, vector<8x128xf32>
    %cst_26 = arith.constant dense<0.000000e+00> : vector<8x128xf32>
    %23 = tpu.matmul %17, %14, %cst_26 {dimension_numbers = #tpu.dot_dimension_numbers<[1], [0], [0], [1], [0, 0, 1, 1], [], []>} : vector<8x32xf32>, vector<32x128xf32>, vector<8x128xf32> -> vector<8x128xf32>
    %24 = arith.addf %22, %23 : vector<8x128xf32>
    %25 = arith.negf %21 : vector<8x128xf32>
    %26 = math.exp %25 : vector<8x128xf32>
    %cst_27 = arith.constant 1.000000e+00 : f32
    %27 = vector.broadcast %cst_27 : f32 to vector<8x128xf32>
    %28 = arith.addf %27, %26 : vector<8x128xf32>
    %29 = arith.divf %27, %28 : vector<8x128xf32>
    %30 = math.tanh %21 : vector<8x128xf32>
    %31 = arith.negf %24 : vector<8x128xf32>
    %32 = math.exp %31 : vector<8x128xf32>
    %cst_28 = arith.constant 1.000000e+00 : f32
    %33 = vector.broadcast %cst_28 : f32 to vector<8x128xf32>
    %34 = arith.addf %33, %32 : vector<8x128xf32>
    %35 = arith.divf %33, %34 : vector<8x128xf32>
    %36 = math.tanh %24 : vector<8x128xf32>
    %37 = vector.extract_strided_slice %29 {offsets = [0, 32], sizes = [8, 32], strides = [1, 1]} : vector<8x128xf32> to vector<8x32xf32>
    %38 = arith.mulf %37, %16 : vector<8x32xf32>
    %39 = vector.extract_strided_slice %29 {offsets = [0, 0], sizes = [8, 32], strides = [1, 1]} : vector<8x128xf32> to vector<8x32xf32>
    %40 = vector.extract_strided_slice %30 {offsets = [0, 64], sizes = [8, 32], strides = [1, 1]} : vector<8x128xf32> to vector<8x32xf32>
    %41 = arith.mulf %39, %40 : vector<8x32xf32>
    %42 = arith.addf %38, %41 : vector<8x32xf32>
    %43 = vector.extract_strided_slice %29 {offsets = [0, 96], sizes = [8, 32], strides = [1, 1]} : vector<8x128xf32> to vector<8x32xf32>
    %44 = math.tanh %42 : vector<8x32xf32>
    %45 = arith.mulf %43, %44 : vector<8x32xf32>
    %46 = vector.extract_strided_slice %35 {offsets = [0, 32], sizes = [8, 32], strides = [1, 1]} : vector<8x128xf32> to vector<8x32xf32>
    %47 = arith.mulf %46, %18 : vector<8x32xf32>
    %48 = vector.extract_strided_slice %35 {offsets = [0, 0], sizes = [8, 32], strides = [1, 1]} : vector<8x128xf32> to vector<8x32xf32>
    %49 = vector.extract_strided_slice %36 {offsets = [0, 64], sizes = [8, 32], strides = [1, 1]} : vector<8x128xf32> to vector<8x32xf32>
    %50 = arith.mulf %48, %49 : vector<8x32xf32>
    %51 = arith.addf %47, %50 : vector<8x32xf32>
    %52 = vector.extract_strided_slice %35 {offsets = [0, 96], sizes = [8, 32], strides = [1, 1]} : vector<8x128xf32> to vector<8x32xf32>
    %53 = math.tanh %51 : vector<8x32xf32>
    %54 = arith.mulf %52, %53 : vector<8x32xf32>
    %c0_29 = arith.constant 0 : index
    %c0_30 = arith.constant 0 : index
    %55 = vector.load %arg18[%c0_29, %c0_30] : memref<64x64xf32, #tpu.memory_space<vmem>>, vector<8x32xf32>
    tpu.vector_store %arg18[%c0_29, %c0_30], %45 {strides = array<i32>} : memref<64x64xf32, #tpu.memory_space<vmem>>, vector<8x32xf32>,
    %c56_31 = arith.constant 56 : index
    %c32 = arith.constant 32 : index
    %56 = vector.load %arg18[%c56_31, %c32] : memref<64x64xf32, #tpu.memory_space<vmem>>, vector<8x32xf32>
    tpu.vector_store %arg18[%c56_31, %c32], %54 {strides = array<i32>} : memref<64x64xf32, #tpu.memory_space<vmem>>, vector<8x32xf32>,
    %c8 = arith.constant 8 : index
    %c0_32 = arith.constant 0 : index
    %57 = vector.load %arg16[%c8, %c0_32] : memref<64x128xf32, #tpu.memory_space<vmem>>, vector<8x128xf32>
    %cst_33 = arith.constant dense<0.000000e+00> : vector<8x128xf32>
    %58 = tpu.matmul %45, %13, %cst_33 {dimension_numbers = #tpu.dot_dimension_numbers<[1], [0], [0], [1], [0, 0, 1, 1], [], []>} : vector<8x32xf32>, vector<32x128xf32>, vector<8x128xf32> -> vector<8x128xf32>
    %59 = arith.addf %57, %58 : vector<8x128xf32>
    %c48 = arith.constant 48 : index
    %c0_34 = arith.constant 0 : index
    %60 = vector.load %arg17[%c48, %c0_34] : memref<64x128xf32, #tpu.memory_space<vmem>>, vector<8x128xf32>
    %cst_35 = arith.constant dense<0.000000e+00> : vector<8x128xf32>
    %61 = tpu.matmul %54, %14, %cst_35 {dimension_numbers = #tpu.dot_dimension_numbers<[1], [0], [0], [1], [0, 0, 1, 1], [], []>} : vector<8x32xf32>, vector<32x128xf32>, vector<8x128xf32> -> vector<8x128xf32>
    %62 = arith.addf %60, %61 : vector<8x128xf32>
    %63 = arith.negf %59 : vector<8x128xf32>
    %64 = math.exp %63 : vector<8x128xf32>
    %cst_36 = arith.constant 1.000000e+00 : f32
    %65 = vector.broadcast %cst_36 : f32 to vector<8x128xf32>
    %66 = arith.addf %65, %64 : vector<8x128xf32>
    %67 = arith.divf %65, %66 : vector<8x128xf32>
    %68 = math.tanh %59 : vector<8x128xf32>
    %69 = arith.negf %62 : vector<8x128xf32>
    %70 = math.exp %69 : vector<8x128xf32>
    %cst_37 = arith.constant 1.000000e+00 : f32
    %71 = vector.broadcast %cst_37 : f32 to vector<8x128xf32>
    %72 = arith.addf %71, %70 : vector<8x128xf32>
    %73 = arith.divf %71, %72 : vector<8x128xf32>
    %74 = math.tanh %62 : vector<8x128xf32>
    %75 = vector.extract_strided_slice %67 {offsets = [0, 32], sizes = [8, 32], strides = [1, 1]} : vector<8x128xf32> to vector<8x32xf32>
    %76 = arith.mulf %75, %42 : vector<8x32xf32>
    %77 = vector.extract_strided_slice %67 {offsets = [0, 0], sizes = [8, 32], strides = [1, 1]} : vector<8x128xf32> to vector<8x32xf32>
    %78 = vector.extract_strided_slice %68 {offsets = [0, 64], sizes = [8, 32], strides = [1, 1]} : vector<8x128xf32> to vector<8x32xf32>
    %79 = arith.mulf %77, %78 : vector<8x32xf32>
    %80 = arith.addf %76, %79 : vector<8x32xf32>
    %81 = vector.extract_strided_slice %67 {offsets = [0, 96], sizes = [8, 32], strides = [1, 1]} : vector<8x128xf32> to vector<8x32xf32>
    %82 = math.tanh %80 : vector<8x32xf32>
    %83 = arith.mulf %81, %82 : vector<8x32xf32>
    %84 = vector.extract_strided_slice %73 {offsets = [0, 32], sizes = [8, 32], strides = [1, 1]} : vector<8x128xf32> to vector<8x32xf32>
    %85 = arith.mulf %84, %51 : vector<8x32xf32>
    %86 = vector.extract_strided_slice %73 {offsets = [0, 0], sizes = [8, 32], strides = [1, 1]} : vector<8x128xf32> to vector<8x32xf32>
    %87 = vector.extract_strided_slice %74 {offsets = [0, 64], sizes = [8, 32], strides = [1, 1]} : vector<8x128xf32> to vector<8x32xf32>
    %88 = arith.mulf %86, %87 : vector<8x32xf32>
    %89 = arith.addf %85, %88 : vector<8x32xf32>
    %90 = vector.extract_strided_slice %73 {offsets = [0, 96], sizes = [8, 32], strides = [1, 1]} : vector<8x128xf32> to vector<8x32xf32>
    %91 = math.tanh %89 : vector<8x32xf32>
    %92 = arith.mulf %90, %91 : vector<8x32xf32>
    %c8_38 = arith.constant 8 : index
    %c0_39 = arith.constant 0 : index
    %93 = vector.load %arg18[%c8_38, %c0_39] : memref<64x64xf32, #tpu.memory_space<vmem>>, vector<8x32xf32>
    tpu.vector_store %arg18[%c8_38, %c0_39], %83 {strides = array<i32>} : memref<64x64xf32, #tpu.memory_space<vmem>>, vector<8x32xf32>,
    %c48_40 = arith.constant 48 : index
    %c32_41 = arith.constant 32 : index
    %94 = vector.load %arg18[%c48_40, %c32_41] : memref<64x64xf32, #tpu.memory_space<vmem>>, vector<8x32xf32>
    tpu.vector_store %arg18[%c48_40, %c32_41], %92 {strides = array<i32>} : memref<64x64xf32, #tpu.memory_space<vmem>>, vector<8x32xf32>,
    %c16 = arith.constant 16 : index
    %c0_42 = arith.constant 0 : index
    %95 = vector.load %arg16[%c16, %c0_42] : memref<64x128xf32, #tpu.memory_space<vmem>>, vector<8x128xf32>
    %cst_43 = arith.constant dense<0.000000e+00> : vector<8x128xf32>
    %96 = tpu.matmul %83, %13, %cst_43 {dimension_numbers = #tpu.dot_dimension_numbers<[1], [0], [0], [1], [0, 0, 1, 1], [], []>} : vector<8x32xf32>, vector<32x128xf32>, vector<8x128xf32> -> vector<8x128xf32>
    %97 = arith.addf %95, %96 : vector<8x128xf32>
    %c40 = arith.constant 40 : index
    %c0_44 = arith.constant 0 : index
    %98 = vector.load %arg17[%c40, %c0_44] : memref<64x128xf32, #tpu.memory_space<vmem>>, vector<8x128xf32>
    %cst_45 = arith.constant dense<0.000000e+00> : vector<8x128xf32>
    %99 = tpu.matmul %92, %14, %cst_45 {dimension_numbers = #tpu.dot_dimension_numbers<[1], [0], [0], [1], [0, 0, 1, 1], [], []>} : vector<8x32xf32>, vector<32x128xf32>, vector<8x128xf32> -> vector<8x128xf32>
    %100 = arith.addf %98, %99 : vector<8x128xf32>
    %101 = arith.negf %97 : vector<8x128xf32>
    %102 = math.exp %101 : vector<8x128xf32>
    %cst_46 = arith.constant 1.000000e+00 : f32
    %103 = vector.broadcast %cst_46 : f32 to vector<8x128xf32>
    %104 = arith.addf %103, %102 : vector<8x128xf32>
    %105 = arith.divf %103, %104 : vector<8x128xf32>
    %106 = math.tanh %97 : vector<8x128xf32>
    %107 = arith.negf %100 : vector<8x128xf32>
    %108 = math.exp %107 : vector<8x128xf32>
    %cst_47 = arith.constant 1.000000e+00 : f32
    %109 = vector.broadcast %cst_47 : f32 to vector<8x128xf32>
    %110 = arith.addf %109, %108 : vector<8x128xf32>
    %111 = arith.divf %109, %110 : vector<8x128xf32>
    %112 = math.tanh %100 : vector<8x128xf32>
    %113 = vector.extract_strided_slice %105 {offsets = [0, 32], sizes = [8, 32], strides = [1, 1]} : vector<8x128xf32> to vector<8x32xf32>
    %114 = arith.mulf %113, %80 : vector<8x32xf32>
    %115 = vector.extract_strided_slice %105 {offsets = [0, 0], sizes = [8, 32], strides = [1, 1]} : vector<8x128xf32> to vector<8x32xf32>
    %116 = vector.extract_strided_slice %106 {offsets = [0, 64], sizes = [8, 32], strides = [1, 1]} : vector<8x128xf32> to vector<8x32xf32>
    %117 = arith.mulf %115, %116 : vector<8x32xf32>
    %118 = arith.addf %114, %117 : vector<8x32xf32>
    %119 = vector.extract_strided_slice %105 {offsets = [0, 96], sizes = [8, 32], strides = [1, 1]} : vector<8x128xf32> to vector<8x32xf32>
    %120 = math.tanh %118 : vector<8x32xf32>
    %121 = arith.mulf %119, %120 : vector<8x32xf32>
    %122 = vector.extract_strided_slice %111 {offsets = [0, 32], sizes = [8, 32], strides = [1, 1]} : vector<8x128xf32> to vector<8x32xf32>
    %123 = arith.mulf %122, %89 : vector<8x32xf32>
    %124 = vector.extract_strided_slice %111 {offsets = [0, 0], sizes = [8, 32], strides = [1, 1]} : vector<8x128xf32> to vector<8x32xf32>
    %125 = vector.extract_strided_slice %112 {offsets = [0, 64], sizes = [8, 32], strides = [1, 1]} : vector<8x128xf32> to vector<8x32xf32>
    %126 = arith.mulf %124, %125 : vector<8x32xf32>
    %127 = arith.addf %123, %126 : vector<8x32xf32>
    %128 = vector.extract_strided_slice %111 {offsets = [0, 96], sizes = [8, 32], strides = [1, 1]} : vector<8x128xf32> to vector<8x32xf32>
    %129 = math.tanh %127 : vector<8x32xf32>
    %130 = arith.mulf %128, %129 : vector<8x32xf32>
    %c16_48 = arith.constant 16 : index
    %c0_49 = arith.constant 0 : index
    %131 = vector.load %arg18[%c16_48, %c0_49] : memref<64x64xf32, #tpu.memory_space<vmem>>, vector<8x32xf32>
    tpu.vector_store %arg18[%c16_48, %c0_49], %121 {strides = array<i32>} : memref<64x64xf32, #tpu.memory_space<vmem>>, vector<8x32xf32>,
    %c40_50 = arith.constant 40 : index
    %c32_51 = arith.constant 32 : index
    %132 = vector.load %arg18[%c40_50, %c32_51] : memref<64x64xf32, #tpu.memory_space<vmem>>, vector<8x32xf32>
    tpu.vector_store %arg18[%c40_50, %c32_51], %130 {strides = array<i32>} : memref<64x64xf32, #tpu.memory_space<vmem>>, vector<8x32xf32>,
    %c24 = arith.constant 24 : index
    %c0_52 = arith.constant 0 : index
    %133 = vector.load %arg16[%c24, %c0_52] : memref<64x128xf32, #tpu.memory_space<vmem>>, vector<8x128xf32>
    %cst_53 = arith.constant dense<0.000000e+00> : vector<8x128xf32>
    %134 = tpu.matmul %121, %13, %cst_53 {dimension_numbers = #tpu.dot_dimension_numbers<[1], [0], [0], [1], [0, 0, 1, 1], [], []>} : vector<8x32xf32>, vector<32x128xf32>, vector<8x128xf32> -> vector<8x128xf32>
    %135 = arith.addf %133, %134 : vector<8x128xf32>
    %c32_54 = arith.constant 32 : index
    %c0_55 = arith.constant 0 : index
    %136 = vector.load %arg17[%c32_54, %c0_55] : memref<64x128xf32, #tpu.memory_space<vmem>>, vector<8x128xf32>
    %cst_56 = arith.constant dense<0.000000e+00> : vector<8x128xf32>
    %137 = tpu.matmul %130, %14, %cst_56 {dimension_numbers = #tpu.dot_dimension_numbers<[1], [0], [0], [1], [0, 0, 1, 1], [], []>} : vector<8x32xf32>, vector<32x128xf32>, vector<8x128xf32> -> vector<8x128xf32>
    %138 = arith.addf %136, %137 : vector<8x128xf32>
    %139 = arith.negf %135 : vector<8x128xf32>
    %140 = math.exp %139 : vector<8x128xf32>
    %cst_57 = arith.constant 1.000000e+00 : f32
    %141 = vector.broadcast %cst_57 : f32 to vector<8x128xf32>
    %142 = arith.addf %141, %140 : vector<8x128xf32>
    %143 = arith.divf %141, %142 : vector<8x128xf32>
    %144 = math.tanh %135 : vector<8x128xf32>
    %145 = arith.negf %138 : vector<8x128xf32>
    %146 = math.exp %145 : vector<8x128xf32>
    %cst_58 = arith.constant 1.000000e+00 : f32
    %147 = vector.broadcast %cst_58 : f32 to vector<8x128xf32>
    %148 = arith.addf %147, %146 : vector<8x128xf32>
    %149 = arith.divf %147, %148 : vector<8x128xf32>
    %150 = math.tanh %138 : vector<8x128xf32>
    %151 = vector.extract_strided_slice %143 {offsets = [0, 32], sizes = [8, 32], strides = [1, 1]} : vector<8x128xf32> to vector<8x32xf32>
    %152 = arith.mulf %151, %118 : vector<8x32xf32>
    %153 = vector.extract_strided_slice %143 {offsets = [0, 0], sizes = [8, 32], strides = [1, 1]} : vector<8x128xf32> to vector<8x32xf32>
    %154 = vector.extract_strided_slice %144 {offsets = [0, 64], sizes = [8, 32], strides = [1, 1]} : vector<8x128xf32> to vector<8x32xf32>
    %155 = arith.mulf %153, %154 : vector<8x32xf32>
    %156 = arith.addf %152, %155 : vector<8x32xf32>
    %157 = vector.extract_strided_slice %143 {offsets = [0, 96], sizes = [8, 32], strides = [1, 1]} : vector<8x128xf32> to vector<8x32xf32>
    %158 = math.tanh %156 : vector<8x32xf32>
    %159 = arith.mulf %157, %158 : vector<8x32xf32>
    %160 = vector.extract_strided_slice %149 {offsets = [0, 32], sizes = [8, 32], strides = [1, 1]} : vector<8x128xf32> to vector<8x32xf32>
    %161 = arith.mulf %160, %127 : vector<8x32xf32>
    %162 = vector.extract_strided_slice %149 {offsets = [0, 0], sizes = [8, 32], strides = [1, 1]} : vector<8x128xf32> to vector<8x32xf32>
    %163 = vector.extract_strided_slice %150 {offsets = [0, 64], sizes = [8, 32], strides = [1, 1]} : vector<8x128xf32> to vector<8x32xf32>
    %164 = arith.mulf %162, %163 : vector<8x32xf32>
    %165 = arith.addf %161, %164 : vector<8x32xf32>
    %166 = vector.extract_strided_slice %149 {offsets = [0, 96], sizes = [8, 32], strides = [1, 1]} : vector<8x128xf32> to vector<8x32xf32>
    %167 = math.tanh %165 : vector<8x32xf32>
    %168 = arith.mulf %166, %167 : vector<8x32xf32>
    %c24_59 = arith.constant 24 : index
    %c0_60 = arith.constant 0 : index
    %169 = vector.load %arg18[%c24_59, %c0_60] : memref<64x64xf32, #tpu.memory_space<vmem>>, vector<8x32xf32>
    tpu.vector_store %arg18[%c24_59, %c0_60], %159 {strides = array<i32>} : memref<64x64xf32, #tpu.memory_space<vmem>>, vector<8x32xf32>,
    %c32_61 = arith.constant 32 : index
    %c32_62 = arith.constant 32 : index
    %170 = vector.load %arg18[%c32_61, %c32_62] : memref<64x64xf32, #tpu.memory_space<vmem>>, vector<8x32xf32>
    tpu.vector_store %arg18[%c32_61, %c32_62], %168 {strides = array<i32>} : memref<64x64xf32, #tpu.memory_space<vmem>>, vector<8x32xf32>,
    %c32_63 = arith.constant 32 : index
    %c0_64 = arith.constant 0 : index
    %171 = vector.load %arg16[%c32_63, %c0_64] : memref<64x128xf32, #tpu.memory_space<vmem>>, vector<8x128xf32>
    %cst_65 = arith.constant dense<0.000000e+00> : vector<8x128xf32>
    %172 = tpu.matmul %159, %13, %cst_65 {dimension_numbers = #tpu.dot_dimension_numbers<[1], [0], [0], [1], [0, 0, 1, 1], [], []>} : vector<8x32xf32>, vector<32x128xf32>, vector<8x128xf32> -> vector<8x128xf32>
    %173 = arith.addf %171, %172 : vector<8x128xf32>
    %c24_66 = arith.constant 24 : index
    %c0_67 = arith.constant 0 : index
    %174 = vector.load %arg17[%c24_66, %c0_67] : memref<64x128xf32, #tpu.memory_space<vmem>>, vector<8x128xf32>
    %cst_68 = arith.constant dense<0.000000e+00> : vector<8x128xf32>
    %175 = tpu.matmul %168, %14, %cst_68 {dimension_numbers = #tpu.dot_dimension_numbers<[1], [0], [0], [1], [0, 0, 1, 1], [], []>} : vector<8x32xf32>, vector<32x128xf32>, vector<8x128xf32> -> vector<8x128xf32>
    %176 = arith.addf %174, %175 : vector<8x128xf32>
    %177 = arith.negf %173 : vector<8x128xf32>
    %178 = math.exp %177 : vector<8x128xf32>
    %cst_69 = arith.constant 1.000000e+00 : f32
    %179 = vector.broadcast %cst_69 : f32 to vector<8x128xf32>
    %180 = arith.addf %179, %178 : vector<8x128xf32>
    %181 = arith.divf %179, %180 : vector<8x128xf32>
    %182 = math.tanh %173 : vector<8x128xf32>
    %183 = arith.negf %176 : vector<8x128xf32>
    %184 = math.exp %183 : vector<8x128xf32>
    %cst_70 = arith.constant 1.000000e+00 : f32
    %185 = vector.broadcast %cst_70 : f32 to vector<8x128xf32>
    %186 = arith.addf %185, %184 : vector<8x128xf32>
    %187 = arith.divf %185, %186 : vector<8x128xf32>
    %188 = math.tanh %176 : vector<8x128xf32>
    %189 = vector.extract_strided_slice %181 {offsets = [0, 32], sizes = [8, 32], strides = [1, 1]} : vector<8x128xf32> to vector<8x32xf32>
    %190 = arith.mulf %189, %156 : vector<8x32xf32>
    %191 = vector.extract_strided_slice %181 {offsets = [0, 0], sizes = [8, 32], strides = [1, 1]} : vector<8x128xf32> to vector<8x32xf32>
    %192 = vector.extract_strided_slice %182 {offsets = [0, 64], sizes = [8, 32], strides = [1, 1]} : vector<8x128xf32> to vector<8x32xf32>
    %193 = arith.mulf %191, %192 : vector<8x32xf32>
    %194 = arith.addf %190, %193 : vector<8x32xf32>
    %195 = vector.extract_strided_slice %181 {offsets = [0, 96], sizes = [8, 32], strides = [1, 1]} : vector<8x128xf32> to vector<8x32xf32>
    %196 = math.tanh %194 : vector<8x32xf32>
    %197 = arith.mulf %195, %196 : vector<8x32xf32>
    %198 = vector.extract_strided_slice %187 {offsets = [0, 32], sizes = [8, 32], strides = [1, 1]} : vector<8x128xf32> to vector<8x32xf32>
    %199 = arith.mulf %198, %165 : vector<8x32xf32>
    %200 = vector.extract_strided_slice %187 {offsets = [0, 0], sizes = [8, 32], strides = [1, 1]} : vector<8x128xf32> to vector<8x32xf32>
    %201 = vector.extract_strided_slice %188 {offsets = [0, 64], sizes = [8, 32], strides = [1, 1]} : vector<8x128xf32> to vector<8x32xf32>
    %202 = arith.mulf %200, %201 : vector<8x32xf32>
    %203 = arith.addf %199, %202 : vector<8x32xf32>
    %204 = vector.extract_strided_slice %187 {offsets = [0, 96], sizes = [8, 32], strides = [1, 1]} : vector<8x128xf32> to vector<8x32xf32>
    %205 = math.tanh %203 : vector<8x32xf32>
    %206 = arith.mulf %204, %205 : vector<8x32xf32>
    %c32_71 = arith.constant 32 : index
    %c0_72 = arith.constant 0 : index
    %207 = vector.load %arg18[%c32_71, %c0_72] : memref<64x64xf32, #tpu.memory_space<vmem>>, vector<8x32xf32>
    tpu.vector_store %arg18[%c32_71, %c0_72], %197 {strides = array<i32>} : memref<64x64xf32, #tpu.memory_space<vmem>>, vector<8x32xf32>,
    %c24_73 = arith.constant 24 : index
    %c32_74 = arith.constant 32 : index
    %208 = vector.load %arg18[%c24_73, %c32_74] : memref<64x64xf32, #tpu.memory_space<vmem>>, vector<8x32xf32>
    tpu.vector_store %arg18[%c24_73, %c32_74], %206 {strides = array<i32>} : memref<64x64xf32, #tpu.memory_space<vmem>>, vector<8x32xf32>,
    %c40_75 = arith.constant 40 : index
    %c0_76 = arith.constant 0 : index
    %209 = vector.load %arg16[%c40_75, %c0_76] : memref<64x128xf32, #tpu.memory_space<vmem>>, vector<8x128xf32>
    %cst_77 = arith.constant dense<0.000000e+00> : vector<8x128xf32>
    %210 = tpu.matmul %197, %13, %cst_77 {dimension_numbers = #tpu.dot_dimension_numbers<[1], [0], [0], [1], [0, 0, 1, 1], [], []>} : vector<8x32xf32>, vector<32x128xf32>, vector<8x128xf32> -> vector<8x128xf32>
    %211 = arith.addf %209, %210 : vector<8x128xf32>
    %c16_78 = arith.constant 16 : index
    %c0_79 = arith.constant 0 : index
    %212 = vector.load %arg17[%c16_78, %c0_79] : memref<64x128xf32, #tpu.memory_space<vmem>>, vector<8x128xf32>
    %cst_80 = arith.constant dense<0.000000e+00> : vector<8x128xf32>
    %213 = tpu.matmul %206, %14, %cst_80 {dimension_numbers = #tpu.dot_dimension_numbers<[1], [0], [0], [1], [0, 0, 1, 1], [], []>} : vector<8x32xf32>, vector<32x128xf32>, vector<8x128xf32> -> vector<8x128xf32>
    %214 = arith.addf %212, %213 : vector<8x128xf32>
    %215 = arith.negf %211 : vector<8x128xf32>
    %216 = math.exp %215 : vector<8x128xf32>
    %cst_81 = arith.constant 1.000000e+00 : f32
    %217 = vector.broadcast %cst_81 : f32 to vector<8x128xf32>
    %218 = arith.addf %217, %216 : vector<8x128xf32>
    %219 = arith.divf %217, %218 : vector<8x128xf32>
    %220 = math.tanh %211 : vector<8x128xf32>
    %221 = arith.negf %214 : vector<8x128xf32>
    %222 = math.exp %221 : vector<8x128xf32>
    %cst_82 = arith.constant 1.000000e+00 : f32
    %223 = vector.broadcast %cst_82 : f32 to vector<8x128xf32>
    %224 = arith.addf %223, %222 : vector<8x128xf32>
    %225 = arith.divf %223, %224 : vector<8x128xf32>
    %226 = math.tanh %214 : vector<8x128xf32>
    %227 = vector.extract_strided_slice %219 {offsets = [0, 32], sizes = [8, 32], strides = [1, 1]} : vector<8x128xf32> to vector<8x32xf32>
    %228 = arith.mulf %227, %194 : vector<8x32xf32>
    %229 = vector.extract_strided_slice %219 {offsets = [0, 0], sizes = [8, 32], strides = [1, 1]} : vector<8x128xf32> to vector<8x32xf32>
    %230 = vector.extract_strided_slice %220 {offsets = [0, 64], sizes = [8, 32], strides = [1, 1]} : vector<8x128xf32> to vector<8x32xf32>
    %231 = arith.mulf %229, %230 : vector<8x32xf32>
    %232 = arith.addf %228, %231 : vector<8x32xf32>
    %233 = vector.extract_strided_slice %219 {offsets = [0, 96], sizes = [8, 32], strides = [1, 1]} : vector<8x128xf32> to vector<8x32xf32>
    %234 = math.tanh %232 : vector<8x32xf32>
    %235 = arith.mulf %233, %234 : vector<8x32xf32>
    %236 = vector.extract_strided_slice %225 {offsets = [0, 32], sizes = [8, 32], strides = [1, 1]} : vector<8x128xf32> to vector<8x32xf32>
    %237 = arith.mulf %236, %203 : vector<8x32xf32>
    %238 = vector.extract_strided_slice %225 {offsets = [0, 0], sizes = [8, 32], strides = [1, 1]} : vector<8x128xf32> to vector<8x32xf32>
    %239 = vector.extract_strided_slice %226 {offsets = [0, 64], sizes = [8, 32], strides = [1, 1]} : vector<8x128xf32> to vector<8x32xf32>
    %240 = arith.mulf %238, %239 : vector<8x32xf32>
    %241 = arith.addf %237, %240 : vector<8x32xf32>
    %242 = vector.extract_strided_slice %225 {offsets = [0, 96], sizes = [8, 32], strides = [1, 1]} : vector<8x128xf32> to vector<8x32xf32>
    %243 = math.tanh %241 : vector<8x32xf32>
    %244 = arith.mulf %242, %243 : vector<8x32xf32>
    %c40_83 = arith.constant 40 : index
    %c0_84 = arith.constant 0 : index
    %245 = vector.load %arg18[%c40_83, %c0_84] : memref<64x64xf32, #tpu.memory_space<vmem>>, vector<8x32xf32>
    tpu.vector_store %arg18[%c40_83, %c0_84], %235 {strides = array<i32>} : memref<64x64xf32, #tpu.memory_space<vmem>>, vector<8x32xf32>,
    %c16_85 = arith.constant 16 : index
    %c32_86 = arith.constant 32 : index
    %246 = vector.load %arg18[%c16_85, %c32_86] : memref<64x64xf32, #tpu.memory_space<vmem>>, vector<8x32xf32>
    tpu.vector_store %arg18[%c16_85, %c32_86], %244 {strides = array<i32>} : memref<64x64xf32, #tpu.memory_space<vmem>>, vector<8x32xf32>,
    %c48_87 = arith.constant 48 : index
    %c0_88 = arith.constant 0 : index
    %247 = vector.load %arg16[%c48_87, %c0_88] : memref<64x128xf32, #tpu.memory_space<vmem>>, vector<8x128xf32>
    %cst_89 = arith.constant dense<0.000000e+00> : vector<8x128xf32>
    %248 = tpu.matmul %235, %13, %cst_89 {dimension_numbers = #tpu.dot_dimension_numbers<[1], [0], [0], [1], [0, 0, 1, 1], [], []>} : vector<8x32xf32>, vector<32x128xf32>, vector<8x128xf32> -> vector<8x128xf32>
    %249 = arith.addf %247, %248 : vector<8x128xf32>
    %c8_90 = arith.constant 8 : index
    %c0_91 = arith.constant 0 : index
    %250 = vector.load %arg17[%c8_90, %c0_91] : memref<64x128xf32, #tpu.memory_space<vmem>>, vector<8x128xf32>
    %cst_92 = arith.constant dense<0.000000e+00> : vector<8x128xf32>
    %251 = tpu.matmul %244, %14, %cst_92 {dimension_numbers = #tpu.dot_dimension_numbers<[1], [0], [0], [1], [0, 0, 1, 1], [], []>} : vector<8x32xf32>, vector<32x128xf32>, vector<8x128xf32> -> vector<8x128xf32>
    %252 = arith.addf %250, %251 : vector<8x128xf32>
    %253 = arith.negf %249 : vector<8x128xf32>
    %254 = math.exp %253 : vector<8x128xf32>
    %cst_93 = arith.constant 1.000000e+00 : f32
    %255 = vector.broadcast %cst_93 : f32 to vector<8x128xf32>
    %256 = arith.addf %255, %254 : vector<8x128xf32>
    %257 = arith.divf %255, %256 : vector<8x128xf32>
    %258 = math.tanh %249 : vector<8x128xf32>
    %259 = arith.negf %252 : vector<8x128xf32>
    %260 = math.exp %259 : vector<8x128xf32>
    %cst_94 = arith.constant 1.000000e+00 : f32
    %261 = vector.broadcast %cst_94 : f32 to vector<8x128xf32>
    %262 = arith.addf %261, %260 : vector<8x128xf32>
    %263 = arith.divf %261, %262 : vector<8x128xf32>
    %264 = math.tanh %252 : vector<8x128xf32>
    %265 = vector.extract_strided_slice %257 {offsets = [0, 32], sizes = [8, 32], strides = [1, 1]} : vector<8x128xf32> to vector<8x32xf32>
    %266 = arith.mulf %265, %232 : vector<8x32xf32>
    %267 = vector.extract_strided_slice %257 {offsets = [0, 0], sizes = [8, 32], strides = [1, 1]} : vector<8x128xf32> to vector<8x32xf32>
    %268 = vector.extract_strided_slice %258 {offsets = [0, 64], sizes = [8, 32], strides = [1, 1]} : vector<8x128xf32> to vector<8x32xf32>
    %269 = arith.mulf %267, %268 : vector<8x32xf32>
    %270 = arith.addf %266, %269 : vector<8x32xf32>
    %271 = vector.extract_strided_slice %257 {offsets = [0, 96], sizes = [8, 32], strides = [1, 1]} : vector<8x128xf32> to vector<8x32xf32>
    %272 = math.tanh %270 : vector<8x32xf32>
    %273 = arith.mulf %271, %272 : vector<8x32xf32>
    %274 = vector.extract_strided_slice %263 {offsets = [0, 32], sizes = [8, 32], strides = [1, 1]} : vector<8x128xf32> to vector<8x32xf32>
    %275 = arith.mulf %274, %241 : vector<8x32xf32>
    %276 = vector.extract_strided_slice %263 {offsets = [0, 0], sizes = [8, 32], strides = [1, 1]} : vector<8x128xf32> to vector<8x32xf32>
    %277 = vector.extract_strided_slice %264 {offsets = [0, 64], sizes = [8, 32], strides = [1, 1]} : vector<8x128xf32> to vector<8x32xf32>
    %278 = arith.mulf %276, %277 : vector<8x32xf32>
    %279 = arith.addf %275, %278 : vector<8x32xf32>
    %280 = vector.extract_strided_slice %263 {offsets = [0, 96], sizes = [8, 32], strides = [1, 1]} : vector<8x128xf32> to vector<8x32xf32>
    %281 = math.tanh %279 : vector<8x32xf32>
    %282 = arith.mulf %280, %281 : vector<8x32xf32>
    %c48_95 = arith.constant 48 : index
    %c0_96 = arith.constant 0 : index
    %283 = vector.load %arg18[%c48_95, %c0_96] : memref<64x64xf32, #tpu.memory_space<vmem>>, vector<8x32xf32>
    tpu.vector_store %arg18[%c48_95, %c0_96], %273 {strides = array<i32>} : memref<64x64xf32, #tpu.memory_space<vmem>>, vector<8x32xf32>,
    %c8_97 = arith.constant 8 : index
    %c32_98 = arith.constant 32 : index
    %284 = vector.load %arg18[%c8_97, %c32_98] : memref<64x64xf32, #tpu.memory_space<vmem>>, vector<8x32xf32>
    tpu.vector_store %arg18[%c8_97, %c32_98], %282 {strides = array<i32>} : memref<64x64xf32, #tpu.memory_space<vmem>>, vector<8x32xf32>,
    %c56_99 = arith.constant 56 : index
    %c0_100 = arith.constant 0 : index
    %285 = vector.load %arg16[%c56_99, %c0_100] : memref<64x128xf32, #tpu.memory_space<vmem>>, vector<8x128xf32>
    %cst_101 = arith.constant dense<0.000000e+00> : vector<8x128xf32>
    %286 = tpu.matmul %273, %13, %cst_101 {dimension_numbers = #tpu.dot_dimension_numbers<[1], [0], [0], [1], [0, 0, 1, 1], [], []>} : vector<8x32xf32>, vector<32x128xf32>, vector<8x128xf32> -> vector<8x128xf32>
    %287 = arith.addf %285, %286 : vector<8x128xf32>
    %c0_102 = arith.constant 0 : index
    %c0_103 = arith.constant 0 : index
    %288 = vector.load %arg17[%c0_102, %c0_103] : memref<64x128xf32, #tpu.memory_space<vmem>>, vector<8x128xf32>
    %cst_104 = arith.constant dense<0.000000e+00> : vector<8x128xf32>
    %289 = tpu.matmul %282, %14, %cst_104 {dimension_numbers = #tpu.dot_dimension_numbers<[1], [0], [0], [1], [0, 0, 1, 1], [], []>} : vector<8x32xf32>, vector<32x128xf32>, vector<8x128xf32> -> vector<8x128xf32>
    %290 = arith.addf %288, %289 : vector<8x128xf32>
    %291 = arith.negf %287 : vector<8x128xf32>
    %292 = math.exp %291 : vector<8x128xf32>
    %cst_105 = arith.constant 1.000000e+00 : f32
    %293 = vector.broadcast %cst_105 : f32 to vector<8x128xf32>
    %294 = arith.addf %293, %292 : vector<8x128xf32>
    %295 = arith.divf %293, %294 : vector<8x128xf32>
    %296 = math.tanh %287 : vector<8x128xf32>
    %297 = arith.negf %290 : vector<8x128xf32>
    %298 = math.exp %297 : vector<8x128xf32>
    %cst_106 = arith.constant 1.000000e+00 : f32
    %299 = vector.broadcast %cst_106 : f32 to vector<8x128xf32>
    %300 = arith.addf %299, %298 : vector<8x128xf32>
    %301 = arith.divf %299, %300 : vector<8x128xf32>
    %302 = math.tanh %290 : vector<8x128xf32>
    %303 = vector.extract_strided_slice %295 {offsets = [0, 32], sizes = [8, 32], strides = [1, 1]} : vector<8x128xf32> to vector<8x32xf32>
    %304 = arith.mulf %303, %270 : vector<8x32xf32>
    %305 = vector.extract_strided_slice %295 {offsets = [0, 0], sizes = [8, 32], strides = [1, 1]} : vector<8x128xf32> to vector<8x32xf32>
    %306 = vector.extract_strided_slice %296 {offsets = [0, 64], sizes = [8, 32], strides = [1, 1]} : vector<8x128xf32> to vector<8x32xf32>
    %307 = arith.mulf %305, %306 : vector<8x32xf32>
    %308 = arith.addf %304, %307 : vector<8x32xf32>
    %309 = vector.extract_strided_slice %295 {offsets = [0, 96], sizes = [8, 32], strides = [1, 1]} : vector<8x128xf32> to vector<8x32xf32>
    %310 = math.tanh %308 : vector<8x32xf32>
    %311 = arith.mulf %309, %310 : vector<8x32xf32>
    %312 = vector.extract_strided_slice %301 {offsets = [0, 32], sizes = [8, 32], strides = [1, 1]} : vector<8x128xf32> to vector<8x32xf32>
    %313 = arith.mulf %312, %279 : vector<8x32xf32>
    %314 = vector.extract_strided_slice %301 {offsets = [0, 0], sizes = [8, 32], strides = [1, 1]} : vector<8x128xf32> to vector<8x32xf32>
    %315 = vector.extract_strided_slice %302 {offsets = [0, 64], sizes = [8, 32], strides = [1, 1]} : vector<8x128xf32> to vector<8x32xf32>
    %316 = arith.mulf %314, %315 : vector<8x32xf32>
    %317 = arith.addf %313, %316 : vector<8x32xf32>
    %318 = vector.extract_strided_slice %301 {offsets = [0, 96], sizes = [8, 32], strides = [1, 1]} : vector<8x128xf32> to vector<8x32xf32>
    %319 = math.tanh %317 : vector<8x32xf32>
    %320 = arith.mulf %318, %319 : vector<8x32xf32>
    %c56_107 = arith.constant 56 : index
    %c0_108 = arith.constant 0 : index
    %321 = vector.load %arg18[%c56_107, %c0_108] : memref<64x64xf32, #tpu.memory_space<vmem>>, vector<8x32xf32>
    tpu.vector_store %arg18[%c56_107, %c0_108], %311 {strides = array<i32>} : memref<64x64xf32, #tpu.memory_space<vmem>>, vector<8x32xf32>,
    %c0_109 = arith.constant 0 : index
    %c32_110 = arith.constant 32 : index
    %322 = vector.load %arg18[%c0_109, %c32_110] : memref<64x64xf32, #tpu.memory_space<vmem>>, vector<8x32xf32>
    tpu.vector_store %arg18[%c0_109, %c32_110], %320 {strides = array<i32>} : memref<64x64xf32, #tpu.memory_space<vmem>>, vector<8x32xf32>,
    %c0_111 = arith.constant 0 : index
    %c0_112 = arith.constant 0 : index
    %323 = vector.load %arg18[%c0_111, %c0_112] : memref<64x64xf32, #tpu.memory_space<vmem>>, vector<64x64xf32>
    %c0_113 = arith.constant 0 : index
    %c0_114 = arith.constant 0 : index
    %324 = vector.load %arg7[%c0_113, %c0_114] : memref<64x128xf32, #tpu.memory_space<vmem>>, vector<64x128xf32>
    %cst_115 = arith.constant dense<0.000000e+00> : vector<64x128xf32>
    %325 = tpu.matmul %323, %324, %cst_115 {dimension_numbers = #tpu.dot_dimension_numbers<[1], [0], [0], [1], [0, 0, 1, 1], [], []>} : vector<64x64xf32>, vector<64x128xf32>, vector<64x128xf32> -> vector<64x128xf32>
    %c0_116 = arith.constant 0 : index
    %c0_117 = arith.constant 0 : index
    %326 = vector.load %arg9[%c0_116, %c0_117] : memref<1x128xf32, #tpu.memory_space<vmem>>, vector<1x128xf32>
    %327 = vector.broadcast %326 : vector<1x128xf32> to vector<64x128xf32>
    %328 = arith.addf %325, %327 : vector<64x128xf32>
    %c0_118 = arith.constant 0 : index
    %c0_119 = arith.constant 0 : index
    %329 = vector.load %arg16[%c0_118, %c0_119] : memref<64x128xf32, #tpu.memory_space<vmem>>, vector<64x128xf32>
    tpu.vector_store %arg16[%c0_118, %c0_119], %328 {strides = array<i32>} : memref<64x128xf32, #tpu.memory_space<vmem>>, vector<64x128xf32>,
    %c0_120 = arith.constant 0 : index
    %c0_121 = arith.constant 0 : index
    %330 = vector.load %arg10[%c0_120, %c0_121] : memref<64x128xf32, #tpu.memory_space<vmem>>, vector<64x128xf32>
    %cst_122 = arith.constant dense<0.000000e+00> : vector<64x128xf32>
    %331 = tpu.matmul %323, %330, %cst_122 {dimension_numbers = #tpu.dot_dimension_numbers<[1], [0], [0], [1], [0, 0, 1, 1], [], []>} : vector<64x64xf32>, vector<64x128xf32>, vector<64x128xf32> -> vector<64x128xf32>
    %c0_123 = arith.constant 0 : index
    %c0_124 = arith.constant 0 : index
    %332 = vector.load %arg12[%c0_123, %c0_124] : memref<1x128xf32, #tpu.memory_space<vmem>>, vector<1x128xf32>
    %333 = vector.broadcast %332 : vector<1x128xf32> to vector<64x128xf32>
    %334 = arith.addf %331, %333 : vector<64x128xf32>
    %c0_125 = arith.constant 0 : index
    %c0_126 = arith.constant 0 : index
    %335 = vector.load %arg17[%c0_125, %c0_126] : memref<64x128xf32, #tpu.memory_space<vmem>>, vector<64x128xf32>
    tpu.vector_store %arg17[%c0_125, %c0_126], %334 {strides = array<i32>} : memref<64x128xf32, #tpu.memory_space<vmem>>, vector<64x128xf32>,
    %c0_127 = arith.constant 0 : index
    %c0_128 = arith.constant 0 : index
    %336 = vector.load %arg8[%c0_127, %c0_128] : memref<32x128xf32, #tpu.memory_space<vmem>>, vector<32x128xf32>
    %c0_129 = arith.constant 0 : index
    %c0_130 = arith.constant 0 : index
    %337 = vector.load %arg11[%c0_129, %c0_130] : memref<32x128xf32, #tpu.memory_space<vmem>>, vector<32x128xf32>
    %cst_131 = arith.constant 0.000000e+00 : f32
    %338 = vector.broadcast %cst_131 : f32 to vector<8x32xf32>
    %cst_132 = arith.constant 0.000000e+00 : f32
    %339 = vector.broadcast %cst_132 : f32 to vector<8x32xf32>
    %cst_133 = arith.constant 0.000000e+00 : f32
    %340 = vector.broadcast %cst_133 : f32 to vector<8x32xf32>
    %cst_134 = arith.constant 0.000000e+00 : f32
    %341 = vector.broadcast %cst_134 : f32 to vector<8x32xf32>
    %c0_135 = arith.constant 0 : index
    %c0_136 = arith.constant 0 : index
    %342 = vector.load %arg16[%c0_135, %c0_136] : memref<64x128xf32, #tpu.memory_space<vmem>>, vector<8x128xf32>
    %cst_137 = arith.constant dense<0.000000e+00> : vector<8x128xf32>
    %343 = tpu.matmul %338, %336, %cst_137 {dimension_numbers = #tpu.dot_dimension_numbers<[1], [0], [0], [1], [0, 0, 1, 1], [], []>} : vector<8x32xf32>, vector<32x128xf32>, vector<8x128xf32> -> vector<8x128xf32>
    %344 = arith.addf %342, %343 : vector<8x128xf32>
    %c56_138 = arith.constant 56 : index
    %c0_139 = arith.constant 0 : index
    %345 = vector.load %arg17[%c56_138, %c0_139] : memref<64x128xf32, #tpu.memory_space<vmem>>, vector<8x128xf32>
    %cst_140 = arith.constant dense<0.000000e+00> : vector<8x128xf32>
    %346 = tpu.matmul %340, %337, %cst_140 {dimension_numbers = #tpu.dot_dimension_numbers<[1], [0], [0], [1], [0, 0, 1, 1], [], []>} : vector<8x32xf32>, vector<32x128xf32>, vector<8x128xf32> -> vector<8x128xf32>
    %347 = arith.addf %345, %346 : vector<8x128xf32>
    %348 = arith.negf %344 : vector<8x128xf32>
    %349 = math.exp %348 : vector<8x128xf32>
    %cst_141 = arith.constant 1.000000e+00 : f32
    %350 = vector.broadcast %cst_141 : f32 to vector<8x128xf32>
    %351 = arith.addf %350, %349 : vector<8x128xf32>
    %352 = arith.divf %350, %351 : vector<8x128xf32>
    %353 = math.tanh %344 : vector<8x128xf32>
    %354 = arith.negf %347 : vector<8x128xf32>
    %355 = math.exp %354 : vector<8x128xf32>
    %cst_142 = arith.constant 1.000000e+00 : f32
    %356 = vector.broadcast %cst_142 : f32 to vector<8x128xf32>
    %357 = arith.addf %356, %355 : vector<8x128xf32>
    %358 = arith.divf %356, %357 : vector<8x128xf32>
    %359 = math.tanh %347 : vector<8x128xf32>
    %360 = vector.extract_strided_slice %352 {offsets = [0, 32], sizes = [8, 32], strides = [1, 1]} : vector<8x128xf32> to vector<8x32xf32>
    %361 = arith.mulf %360, %339 : vector<8x32xf32>
    %362 = vector.extract_strided_slice %352 {offsets = [0, 0], sizes = [8, 32], strides = [1, 1]} : vector<8x128xf32> to vector<8x32xf32>
    %363 = vector.extract_strided_slice %353 {offsets = [0, 64], sizes = [8, 32], strides = [1, 1]} : vector<8x128xf32> to vector<8x32xf32>
    %364 = arith.mulf %362, %363 : vector<8x32xf32>
    %365 = arith.addf %361, %364 : vector<8x32xf32>
    %366 = vector.extract_strided_slice %352 {offsets = [0, 96], sizes = [8, 32], strides = [1, 1]} : vector<8x128xf32> to vector<8x32xf32>
    %367 = math.tanh %365 : vector<8x32xf32>
    %368 = arith.mulf %366, %367 : vector<8x32xf32>
    %369 = vector.extract_strided_slice %358 {offsets = [0, 32], sizes = [8, 32], strides = [1, 1]} : vector<8x128xf32> to vector<8x32xf32>
    %370 = arith.mulf %369, %341 : vector<8x32xf32>
    %371 = vector.extract_strided_slice %358 {offsets = [0, 0], sizes = [8, 32], strides = [1, 1]} : vector<8x128xf32> to vector<8x32xf32>
    %372 = vector.extract_strided_slice %359 {offsets = [0, 64], sizes = [8, 32], strides = [1, 1]} : vector<8x128xf32> to vector<8x32xf32>
    %373 = arith.mulf %371, %372 : vector<8x32xf32>
    %374 = arith.addf %370, %373 : vector<8x32xf32>
    %375 = vector.extract_strided_slice %358 {offsets = [0, 96], sizes = [8, 32], strides = [1, 1]} : vector<8x128xf32> to vector<8x32xf32>
    %376 = math.tanh %374 : vector<8x32xf32>
    %377 = arith.mulf %375, %376 : vector<8x32xf32>
    %c0_143 = arith.constant 0 : index
    %c0_144 = arith.constant 0 : index
    %378 = vector.load %arg19[%c0_143, %c0_144] : memref<64x64xf32, #tpu.memory_space<vmem>>, vector<8x32xf32>
    tpu.vector_store %arg19[%c0_143, %c0_144], %368 {strides = array<i32>} : memref<64x64xf32, #tpu.memory_space<vmem>>, vector<8x32xf32>,
    %c56_145 = arith.constant 56 : index
    %c32_146 = arith.constant 32 : index
    %379 = vector.load %arg19[%c56_145, %c32_146] : memref<64x64xf32, #tpu.memory_space<vmem>>, vector<8x32xf32>
    tpu.vector_store %arg19[%c56_145, %c32_146], %377 {strides = array<i32>} : memref<64x64xf32, #tpu.memory_space<vmem>>, vector<8x32xf32>,
    %c8_147 = arith.constant 8 : index
    %c0_148 = arith.constant 0 : index
    %380 = vector.load %arg16[%c8_147, %c0_148] : memref<64x128xf32, #tpu.memory_space<vmem>>, vector<8x128xf32>
    %cst_149 = arith.constant dense<0.000000e+00> : vector<8x128xf32>
    %381 = tpu.matmul %368, %336, %cst_149 {dimension_numbers = #tpu.dot_dimension_numbers<[1], [0], [0], [1], [0, 0, 1, 1], [], []>} : vector<8x32xf32>, vector<32x128xf32>, vector<8x128xf32> -> vector<8x128xf32>
    %382 = arith.addf %380, %381 : vector<8x128xf32>
    %c48_150 = arith.constant 48 : index
    %c0_151 = arith.constant 0 : index
    %383 = vector.load %arg17[%c48_150, %c0_151] : memref<64x128xf32, #tpu.memory_space<vmem>>, vector<8x128xf32>
    %cst_152 = arith.constant dense<0.000000e+00> : vector<8x128xf32>
    %384 = tpu.matmul %377, %337, %cst_152 {dimension_numbers = #tpu.dot_dimension_numbers<[1], [0], [0], [1], [0, 0, 1, 1], [], []>} : vector<8x32xf32>, vector<32x128xf32>, vector<8x128xf32> -> vector<8x128xf32>
    %385 = arith.addf %383, %384 : vector<8x128xf32>
    %386 = arith.negf %382 : vector<8x128xf32>
    %387 = math.exp %386 : vector<8x128xf32>
    %cst_153 = arith.constant 1.000000e+00 : f32
    %388 = vector.broadcast %cst_153 : f32 to vector<8x128xf32>
    %389 = arith.addf %388, %387 : vector<8x128xf32>
    %390 = arith.divf %388, %389 : vector<8x128xf32>
    %391 = math.tanh %382 : vector<8x128xf32>
    %392 = arith.negf %385 : vector<8x128xf32>
    %393 = math.exp %392 : vector<8x128xf32>
    %cst_154 = arith.constant 1.000000e+00 : f32
    %394 = vector.broadcast %cst_154 : f32 to vector<8x128xf32>
    %395 = arith.addf %394, %393 : vector<8x128xf32>
    %396 = arith.divf %394, %395 : vector<8x128xf32>
    %397 = math.tanh %385 : vector<8x128xf32>
    %398 = vector.extract_strided_slice %390 {offsets = [0, 32], sizes = [8, 32], strides = [1, 1]} : vector<8x128xf32> to vector<8x32xf32>
    %399 = arith.mulf %398, %365 : vector<8x32xf32>
    %400 = vector.extract_strided_slice %390 {offsets = [0, 0], sizes = [8, 32], strides = [1, 1]} : vector<8x128xf32> to vector<8x32xf32>
    %401 = vector.extract_strided_slice %391 {offsets = [0, 64], sizes = [8, 32], strides = [1, 1]} : vector<8x128xf32> to vector<8x32xf32>
    %402 = arith.mulf %400, %401 : vector<8x32xf32>
    %403 = arith.addf %399, %402 : vector<8x32xf32>
    %404 = vector.extract_strided_slice %390 {offsets = [0, 96], sizes = [8, 32], strides = [1, 1]} : vector<8x128xf32> to vector<8x32xf32>
    %405 = math.tanh %403 : vector<8x32xf32>
    %406 = arith.mulf %404, %405 : vector<8x32xf32>
    %407 = vector.extract_strided_slice %396 {offsets = [0, 32], sizes = [8, 32], strides = [1, 1]} : vector<8x128xf32> to vector<8x32xf32>
    %408 = arith.mulf %407, %374 : vector<8x32xf32>
    %409 = vector.extract_strided_slice %396 {offsets = [0, 0], sizes = [8, 32], strides = [1, 1]} : vector<8x128xf32> to vector<8x32xf32>
    %410 = vector.extract_strided_slice %397 {offsets = [0, 64], sizes = [8, 32], strides = [1, 1]} : vector<8x128xf32> to vector<8x32xf32>
    %411 = arith.mulf %409, %410 : vector<8x32xf32>
    %412 = arith.addf %408, %411 : vector<8x32xf32>
    %413 = vector.extract_strided_slice %396 {offsets = [0, 96], sizes = [8, 32], strides = [1, 1]} : vector<8x128xf32> to vector<8x32xf32>
    %414 = math.tanh %412 : vector<8x32xf32>
    %415 = arith.mulf %413, %414 : vector<8x32xf32>
    %c8_155 = arith.constant 8 : index
    %c0_156 = arith.constant 0 : index
    %416 = vector.load %arg19[%c8_155, %c0_156] : memref<64x64xf32, #tpu.memory_space<vmem>>, vector<8x32xf32>
    tpu.vector_store %arg19[%c8_155, %c0_156], %406 {strides = array<i32>} : memref<64x64xf32, #tpu.memory_space<vmem>>, vector<8x32xf32>,
    %c48_157 = arith.constant 48 : index
    %c32_158 = arith.constant 32 : index
    %417 = vector.load %arg19[%c48_157, %c32_158] : memref<64x64xf32, #tpu.memory_space<vmem>>, vector<8x32xf32>
    tpu.vector_store %arg19[%c48_157, %c32_158], %415 {strides = array<i32>} : memref<64x64xf32, #tpu.memory_space<vmem>>, vector<8x32xf32>,
    %c16_159 = arith.constant 16 : index
    %c0_160 = arith.constant 0 : index
    %418 = vector.load %arg16[%c16_159, %c0_160] : memref<64x128xf32, #tpu.memory_space<vmem>>, vector<8x128xf32>
    %cst_161 = arith.constant dense<0.000000e+00> : vector<8x128xf32>
    %419 = tpu.matmul %406, %336, %cst_161 {dimension_numbers = #tpu.dot_dimension_numbers<[1], [0], [0], [1], [0, 0, 1, 1], [], []>} : vector<8x32xf32>, vector<32x128xf32>, vector<8x128xf32> -> vector<8x128xf32>
    %420 = arith.addf %418, %419 : vector<8x128xf32>
    %c40_162 = arith.constant 40 : index
    %c0_163 = arith.constant 0 : index
    %421 = vector.load %arg17[%c40_162, %c0_163] : memref<64x128xf32, #tpu.memory_space<vmem>>, vector<8x128xf32>
    %cst_164 = arith.constant dense<0.000000e+00> : vector<8x128xf32>
    %422 = tpu.matmul %415, %337, %cst_164 {dimension_numbers = #tpu.dot_dimension_numbers<[1], [0], [0], [1], [0, 0, 1, 1], [], []>} : vector<8x32xf32>, vector<32x128xf32>, vector<8x128xf32> -> vector<8x128xf32>
    %423 = arith.addf %421, %422 : vector<8x128xf32>
    %424 = arith.negf %420 : vector<8x128xf32>
    %425 = math.exp %424 : vector<8x128xf32>
    %cst_165 = arith.constant 1.000000e+00 : f32
    %426 = vector.broadcast %cst_165 : f32 to vector<8x128xf32>
    %427 = arith.addf %426, %425 : vector<8x128xf32>
    %428 = arith.divf %426, %427 : vector<8x128xf32>
    %429 = math.tanh %420 : vector<8x128xf32>
    %430 = arith.negf %423 : vector<8x128xf32>
    %431 = math.exp %430 : vector<8x128xf32>
    %cst_166 = arith.constant 1.000000e+00 : f32
    %432 = vector.broadcast %cst_166 : f32 to vector<8x128xf32>
    %433 = arith.addf %432, %431 : vector<8x128xf32>
    %434 = arith.divf %432, %433 : vector<8x128xf32>
    %435 = math.tanh %423 : vector<8x128xf32>
    %436 = vector.extract_strided_slice %428 {offsets = [0, 32], sizes = [8, 32], strides = [1, 1]} : vector<8x128xf32> to vector<8x32xf32>
    %437 = arith.mulf %436, %403 : vector<8x32xf32>
    %438 = vector.extract_strided_slice %428 {offsets = [0, 0], sizes = [8, 32], strides = [1, 1]} : vector<8x128xf32> to vector<8x32xf32>
    %439 = vector.extract_strided_slice %429 {offsets = [0, 64], sizes = [8, 32], strides = [1, 1]} : vector<8x128xf32> to vector<8x32xf32>
    %440 = arith.mulf %438, %439 : vector<8x32xf32>
    %441 = arith.addf %437, %440 : vector<8x32xf32>
    %442 = vector.extract_strided_slice %428 {offsets = [0, 96], sizes = [8, 32], strides = [1, 1]} : vector<8x128xf32> to vector<8x32xf32>
    %443 = math.tanh %441 : vector<8x32xf32>
    %444 = arith.mulf %442, %443 : vector<8x32xf32>
    %445 = vector.extract_strided_slice %434 {offsets = [0, 32], sizes = [8, 32], strides = [1, 1]} : vector<8x128xf32> to vector<8x32xf32>
    %446 = arith.mulf %445, %412 : vector<8x32xf32>
    %447 = vector.extract_strided_slice %434 {offsets = [0, 0], sizes = [8, 32], strides = [1, 1]} : vector<8x128xf32> to vector<8x32xf32>
    %448 = vector.extract_strided_slice %435 {offsets = [0, 64], sizes = [8, 32], strides = [1, 1]} : vector<8x128xf32> to vector<8x32xf32>
    %449 = arith.mulf %447, %448 : vector<8x32xf32>
    %450 = arith.addf %446, %449 : vector<8x32xf32>
    %451 = vector.extract_strided_slice %434 {offsets = [0, 96], sizes = [8, 32], strides = [1, 1]} : vector<8x128xf32> to vector<8x32xf32>
    %452 = math.tanh %450 : vector<8x32xf32>
    %453 = arith.mulf %451, %452 : vector<8x32xf32>
    %c16_167 = arith.constant 16 : index
    %c0_168 = arith.constant 0 : index
    %454 = vector.load %arg19[%c16_167, %c0_168] : memref<64x64xf32, #tpu.memory_space<vmem>>, vector<8x32xf32>
    tpu.vector_store %arg19[%c16_167, %c0_168], %444 {strides = array<i32>} : memref<64x64xf32, #tpu.memory_space<vmem>>, vector<8x32xf32>,
    %c40_169 = arith.constant 40 : index
    %c32_170 = arith.constant 32 : index
    %455 = vector.load %arg19[%c40_169, %c32_170] : memref<64x64xf32, #tpu.memory_space<vmem>>, vector<8x32xf32>
    tpu.vector_store %arg19[%c40_169, %c32_170], %453 {strides = array<i32>} : memref<64x64xf32, #tpu.memory_space<vmem>>, vector<8x32xf32>,
    %c24_171 = arith.constant 24 : index
    %c0_172 = arith.constant 0 : index
    %456 = vector.load %arg16[%c24_171, %c0_172] : memref<64x128xf32, #tpu.memory_space<vmem>>, vector<8x128xf32>
    %cst_173 = arith.constant dense<0.000000e+00> : vector<8x128xf32>
    %457 = tpu.matmul %444, %336, %cst_173 {dimension_numbers = #tpu.dot_dimension_numbers<[1], [0], [0], [1], [0, 0, 1, 1], [], []>} : vector<8x32xf32>, vector<32x128xf32>, vector<8x128xf32> -> vector<8x128xf32>
    %458 = arith.addf %456, %457 : vector<8x128xf32>
    %c32_174 = arith.constant 32 : index
    %c0_175 = arith.constant 0 : index
    %459 = vector.load %arg17[%c32_174, %c0_175] : memref<64x128xf32, #tpu.memory_space<vmem>>, vector<8x128xf32>
    %cst_176 = arith.constant dense<0.000000e+00> : vector<8x128xf32>
    %460 = tpu.matmul %453, %337, %cst_176 {dimension_numbers = #tpu.dot_dimension_numbers<[1], [0], [0], [1], [0, 0, 1, 1], [], []>} : vector<8x32xf32>, vector<32x128xf32>, vector<8x128xf32> -> vector<8x128xf32>
    %461 = arith.addf %459, %460 : vector<8x128xf32>
    %462 = arith.negf %458 : vector<8x128xf32>
    %463 = math.exp %462 : vector<8x128xf32>
    %cst_177 = arith.constant 1.000000e+00 : f32
    %464 = vector.broadcast %cst_177 : f32 to vector<8x128xf32>
    %465 = arith.addf %464, %463 : vector<8x128xf32>
    %466 = arith.divf %464, %465 : vector<8x128xf32>
    %467 = math.tanh %458 : vector<8x128xf32>
    %468 = arith.negf %461 : vector<8x128xf32>
    %469 = math.exp %468 : vector<8x128xf32>
    %cst_178 = arith.constant 1.000000e+00 : f32
    %470 = vector.broadcast %cst_178 : f32 to vector<8x128xf32>
    %471 = arith.addf %470, %469 : vector<8x128xf32>
    %472 = arith.divf %470, %471 : vector<8x128xf32>
    %473 = math.tanh %461 : vector<8x128xf32>
    %474 = vector.extract_strided_slice %466 {offsets = [0, 32], sizes = [8, 32], strides = [1, 1]} : vector<8x128xf32> to vector<8x32xf32>
    %475 = arith.mulf %474, %441 : vector<8x32xf32>
    %476 = vector.extract_strided_slice %466 {offsets = [0, 0], sizes = [8, 32], strides = [1, 1]} : vector<8x128xf32> to vector<8x32xf32>
    %477 = vector.extract_strided_slice %467 {offsets = [0, 64], sizes = [8, 32], strides = [1, 1]} : vector<8x128xf32> to vector<8x32xf32>
    %478 = arith.mulf %476, %477 : vector<8x32xf32>
    %479 = arith.addf %475, %478 : vector<8x32xf32>
    %480 = vector.extract_strided_slice %466 {offsets = [0, 96], sizes = [8, 32], strides = [1, 1]} : vector<8x128xf32> to vector<8x32xf32>
    %481 = math.tanh %479 : vector<8x32xf32>
    %482 = arith.mulf %480, %481 : vector<8x32xf32>
    %483 = vector.extract_strided_slice %472 {offsets = [0, 32], sizes = [8, 32], strides = [1, 1]} : vector<8x128xf32> to vector<8x32xf32>
    %484 = arith.mulf %483, %450 : vector<8x32xf32>
    %485 = vector.extract_strided_slice %472 {offsets = [0, 0], sizes = [8, 32], strides = [1, 1]} : vector<8x128xf32> to vector<8x32xf32>
    %486 = vector.extract_strided_slice %473 {offsets = [0, 64], sizes = [8, 32], strides = [1, 1]} : vector<8x128xf32> to vector<8x32xf32>
    %487 = arith.mulf %485, %486 : vector<8x32xf32>
    %488 = arith.addf %484, %487 : vector<8x32xf32>
    %489 = vector.extract_strided_slice %472 {offsets = [0, 96], sizes = [8, 32], strides = [1, 1]} : vector<8x128xf32> to vector<8x32xf32>
    %490 = math.tanh %488 : vector<8x32xf32>
    %491 = arith.mulf %489, %490 : vector<8x32xf32>
    %c24_179 = arith.constant 24 : index
    %c0_180 = arith.constant 0 : index
    %492 = vector.load %arg19[%c24_179, %c0_180] : memref<64x64xf32, #tpu.memory_space<vmem>>, vector<8x32xf32>
    tpu.vector_store %arg19[%c24_179, %c0_180], %482 {strides = array<i32>} : memref<64x64xf32, #tpu.memory_space<vmem>>, vector<8x32xf32>,
    %c32_181 = arith.constant 32 : index
    %c32_182 = arith.constant 32 : index
    %493 = vector.load %arg19[%c32_181, %c32_182] : memref<64x64xf32, #tpu.memory_space<vmem>>, vector<8x32xf32>
    tpu.vector_store %arg19[%c32_181, %c32_182], %491 {strides = array<i32>} : memref<64x64xf32, #tpu.memory_space<vmem>>, vector<8x32xf32>,
    %c32_183 = arith.constant 32 : index
    %c0_184 = arith.constant 0 : index
    %494 = vector.load %arg16[%c32_183, %c0_184] : memref<64x128xf32, #tpu.memory_space<vmem>>, vector<8x128xf32>
    %cst_185 = arith.constant dense<0.000000e+00> : vector<8x128xf32>
    %495 = tpu.matmul %482, %336, %cst_185 {dimension_numbers = #tpu.dot_dimension_numbers<[1], [0], [0], [1], [0, 0, 1, 1], [], []>} : vector<8x32xf32>, vector<32x128xf32>, vector<8x128xf32> -> vector<8x128xf32>
    %496 = arith.addf %494, %495 : vector<8x128xf32>
    %c24_186 = arith.constant 24 : index
    %c0_187 = arith.constant 0 : index
    %497 = vector.load %arg17[%c24_186, %c0_187] : memref<64x128xf32, #tpu.memory_space<vmem>>, vector<8x128xf32>
    %cst_188 = arith.constant dense<0.000000e+00> : vector<8x128xf32>
    %498 = tpu.matmul %491, %337, %cst_188 {dimension_numbers = #tpu.dot_dimension_numbers<[1], [0], [0], [1], [0, 0, 1, 1], [], []>} : vector<8x32xf32>, vector<32x128xf32>, vector<8x128xf32> -> vector<8x128xf32>
    %499 = arith.addf %497, %498 : vector<8x128xf32>
    %500 = arith.negf %496 : vector<8x128xf32>
    %501 = math.exp %500 : vector<8x128xf32>
    %cst_189 = arith.constant 1.000000e+00 : f32
    %502 = vector.broadcast %cst_189 : f32 to vector<8x128xf32>
    %503 = arith.addf %502, %501 : vector<8x128xf32>
    %504 = arith.divf %502, %503 : vector<8x128xf32>
    %505 = math.tanh %496 : vector<8x128xf32>
    %506 = arith.negf %499 : vector<8x128xf32>
    %507 = math.exp %506 : vector<8x128xf32>
    %cst_190 = arith.constant 1.000000e+00 : f32
    %508 = vector.broadcast %cst_190 : f32 to vector<8x128xf32>
    %509 = arith.addf %508, %507 : vector<8x128xf32>
    %510 = arith.divf %508, %509 : vector<8x128xf32>
    %511 = math.tanh %499 : vector<8x128xf32>
    %512 = vector.extract_strided_slice %504 {offsets = [0, 32], sizes = [8, 32], strides = [1, 1]} : vector<8x128xf32> to vector<8x32xf32>
    %513 = arith.mulf %512, %479 : vector<8x32xf32>
    %514 = vector.extract_strided_slice %504 {offsets = [0, 0], sizes = [8, 32], strides = [1, 1]} : vector<8x128xf32> to vector<8x32xf32>
    %515 = vector.extract_strided_slice %505 {offsets = [0, 64], sizes = [8, 32], strides = [1, 1]} : vector<8x128xf32> to vector<8x32xf32>
    %516 = arith.mulf %514, %515 : vector<8x32xf32>
    %517 = arith.addf %513, %516 : vector<8x32xf32>
    %518 = vector.extract_strided_slice %504 {offsets = [0, 96], sizes = [8, 32], strides = [1, 1]} : vector<8x128xf32> to vector<8x32xf32>
    %519 = math.tanh %517 : vector<8x32xf32>
    %520 = arith.mulf %518, %519 : vector<8x32xf32>
    %521 = vector.extract_strided_slice %510 {offsets = [0, 32], sizes = [8, 32], strides = [1, 1]} : vector<8x128xf32> to vector<8x32xf32>
    %522 = arith.mulf %521, %488 : vector<8x32xf32>
    %523 = vector.extract_strided_slice %510 {offsets = [0, 0], sizes = [8, 32], strides = [1, 1]} : vector<8x128xf32> to vector<8x32xf32>
    %524 = vector.extract_strided_slice %511 {offsets = [0, 64], sizes = [8, 32], strides = [1, 1]} : vector<8x128xf32> to vector<8x32xf32>
    %525 = arith.mulf %523, %524 : vector<8x32xf32>
    %526 = arith.addf %522, %525 : vector<8x32xf32>
    %527 = vector.extract_strided_slice %510 {offsets = [0, 96], sizes = [8, 32], strides = [1, 1]} : vector<8x128xf32> to vector<8x32xf32>
    %528 = math.tanh %526 : vector<8x32xf32>
    %529 = arith.mulf %527, %528 : vector<8x32xf32>
    %c32_191 = arith.constant 32 : index
    %c0_192 = arith.constant 0 : index
    %530 = vector.load %arg19[%c32_191, %c0_192] : memref<64x64xf32, #tpu.memory_space<vmem>>, vector<8x32xf32>
    tpu.vector_store %arg19[%c32_191, %c0_192], %520 {strides = array<i32>} : memref<64x64xf32, #tpu.memory_space<vmem>>, vector<8x32xf32>,
    %c24_193 = arith.constant 24 : index
    %c32_194 = arith.constant 32 : index
    %531 = vector.load %arg19[%c24_193, %c32_194] : memref<64x64xf32, #tpu.memory_space<vmem>>, vector<8x32xf32>
    tpu.vector_store %arg19[%c24_193, %c32_194], %529 {strides = array<i32>} : memref<64x64xf32, #tpu.memory_space<vmem>>, vector<8x32xf32>,
    %c40_195 = arith.constant 40 : index
    %c0_196 = arith.constant 0 : index
    %532 = vector.load %arg16[%c40_195, %c0_196] : memref<64x128xf32, #tpu.memory_space<vmem>>, vector<8x128xf32>
    %cst_197 = arith.constant dense<0.000000e+00> : vector<8x128xf32>
    %533 = tpu.matmul %520, %336, %cst_197 {dimension_numbers = #tpu.dot_dimension_numbers<[1], [0], [0], [1], [0, 0, 1, 1], [], []>} : vector<8x32xf32>, vector<32x128xf32>, vector<8x128xf32> -> vector<8x128xf32>
    %534 = arith.addf %532, %533 : vector<8x128xf32>
    %c16_198 = arith.constant 16 : index
    %c0_199 = arith.constant 0 : index
    %535 = vector.load %arg17[%c16_198, %c0_199] : memref<64x128xf32, #tpu.memory_space<vmem>>, vector<8x128xf32>
    %cst_200 = arith.constant dense<0.000000e+00> : vector<8x128xf32>
    %536 = tpu.matmul %529, %337, %cst_200 {dimension_numbers = #tpu.dot_dimension_numbers<[1], [0], [0], [1], [0, 0, 1, 1], [], []>} : vector<8x32xf32>, vector<32x128xf32>, vector<8x128xf32> -> vector<8x128xf32>
    %537 = arith.addf %535, %536 : vector<8x128xf32>
    %538 = arith.negf %534 : vector<8x128xf32>
    %539 = math.exp %538 : vector<8x128xf32>
    %cst_201 = arith.constant 1.000000e+00 : f32
    %540 = vector.broadcast %cst_201 : f32 to vector<8x128xf32>
    %541 = arith.addf %540, %539 : vector<8x128xf32>
    %542 = arith.divf %540, %541 : vector<8x128xf32>
    %543 = math.tanh %534 : vector<8x128xf32>
    %544 = arith.negf %537 : vector<8x128xf32>
    %545 = math.exp %544 : vector<8x128xf32>
    %cst_202 = arith.constant 1.000000e+00 : f32
    %546 = vector.broadcast %cst_202 : f32 to vector<8x128xf32>
    %547 = arith.addf %546, %545 : vector<8x128xf32>
    %548 = arith.divf %546, %547 : vector<8x128xf32>
    %549 = math.tanh %537 : vector<8x128xf32>
    %550 = vector.extract_strided_slice %542 {offsets = [0, 32], sizes = [8, 32], strides = [1, 1]} : vector<8x128xf32> to vector<8x32xf32>
    %551 = arith.mulf %550, %517 : vector<8x32xf32>
    %552 = vector.extract_strided_slice %542 {offsets = [0, 0], sizes = [8, 32], strides = [1, 1]} : vector<8x128xf32> to vector<8x32xf32>
    %553 = vector.extract_strided_slice %543 {offsets = [0, 64], sizes = [8, 32], strides = [1, 1]} : vector<8x128xf32> to vector<8x32xf32>
    %554 = arith.mulf %552, %553 : vector<8x32xf32>
    %555 = arith.addf %551, %554 : vector<8x32xf32>
    %556 = vector.extract_strided_slice %542 {offsets = [0, 96], sizes = [8, 32], strides = [1, 1]} : vector<8x128xf32> to vector<8x32xf32>
    %557 = math.tanh %555 : vector<8x32xf32>
    %558 = arith.mulf %556, %557 : vector<8x32xf32>
    %559 = vector.extract_strided_slice %548 {offsets = [0, 32], sizes = [8, 32], strides = [1, 1]} : vector<8x128xf32> to vector<8x32xf32>
    %560 = arith.mulf %559, %526 : vector<8x32xf32>
    %561 = vector.extract_strided_slice %548 {offsets = [0, 0], sizes = [8, 32], strides = [1, 1]} : vector<8x128xf32> to vector<8x32xf32>
    %562 = vector.extract_strided_slice %549 {offsets = [0, 64], sizes = [8, 32], strides = [1, 1]} : vector<8x128xf32> to vector<8x32xf32>
    %563 = arith.mulf %561, %562 : vector<8x32xf32>
    %564 = arith.addf %560, %563 : vector<8x32xf32>
    %565 = vector.extract_strided_slice %548 {offsets = [0, 96], sizes = [8, 32], strides = [1, 1]} : vector<8x128xf32> to vector<8x32xf32>
    %566 = math.tanh %564 : vector<8x32xf32>
    %567 = arith.mulf %565, %566 : vector<8x32xf32>
    %c40_203 = arith.constant 40 : index
    %c0_204 = arith.constant 0 : index
    %568 = vector.load %arg19[%c40_203, %c0_204] : memref<64x64xf32, #tpu.memory_space<vmem>>, vector<8x32xf32>
    tpu.vector_store %arg19[%c40_203, %c0_204], %558 {strides = array<i32>} : memref<64x64xf32, #tpu.memory_space<vmem>>, vector<8x32xf32>,
    %c16_205 = arith.constant 16 : index
    %c32_206 = arith.constant 32 : index
    %569 = vector.load %arg19[%c16_205, %c32_206] : memref<64x64xf32, #tpu.memory_space<vmem>>, vector<8x32xf32>
    tpu.vector_store %arg19[%c16_205, %c32_206], %567 {strides = array<i32>} : memref<64x64xf32, #tpu.memory_space<vmem>>, vector<8x32xf32>,
    %c48_207 = arith.constant 48 : index
    %c0_208 = arith.constant 0 : index
    %570 = vector.load %arg16[%c48_207, %c0_208] : memref<64x128xf32, #tpu.memory_space<vmem>>, vector<8x128xf32>
    %cst_209 = arith.constant dense<0.000000e+00> : vector<8x128xf32>
    %571 = tpu.matmul %558, %336, %cst_209 {dimension_numbers = #tpu.dot_dimension_numbers<[1], [0], [0], [1], [0, 0, 1, 1], [], []>} : vector<8x32xf32>, vector<32x128xf32>, vector<8x128xf32> -> vector<8x128xf32>
    %572 = arith.addf %570, %571 : vector<8x128xf32>
    %c8_210 = arith.constant 8 : index
    %c0_211 = arith.constant 0 : index
    %573 = vector.load %arg17[%c8_210, %c0_211] : memref<64x128xf32, #tpu.memory_space<vmem>>, vector<8x128xf32>
    %cst_212 = arith.constant dense<0.000000e+00> : vector<8x128xf32>
    %574 = tpu.matmul %567, %337, %cst_212 {dimension_numbers = #tpu.dot_dimension_numbers<[1], [0], [0], [1], [0, 0, 1, 1], [], []>} : vector<8x32xf32>, vector<32x128xf32>, vector<8x128xf32> -> vector<8x128xf32>
    %575 = arith.addf %573, %574 : vector<8x128xf32>
    %576 = arith.negf %572 : vector<8x128xf32>
    %577 = math.exp %576 : vector<8x128xf32>
    %cst_213 = arith.constant 1.000000e+00 : f32
    %578 = vector.broadcast %cst_213 : f32 to vector<8x128xf32>
    %579 = arith.addf %578, %577 : vector<8x128xf32>
    %580 = arith.divf %578, %579 : vector<8x128xf32>
    %581 = math.tanh %572 : vector<8x128xf32>
    %582 = arith.negf %575 : vector<8x128xf32>
    %583 = math.exp %582 : vector<8x128xf32>
    %cst_214 = arith.constant 1.000000e+00 : f32
    %584 = vector.broadcast %cst_214 : f32 to vector<8x128xf32>
    %585 = arith.addf %584, %583 : vector<8x128xf32>
    %586 = arith.divf %584, %585 : vector<8x128xf32>
    %587 = math.tanh %575 : vector<8x128xf32>
    %588 = vector.extract_strided_slice %580 {offsets = [0, 32], sizes = [8, 32], strides = [1, 1]} : vector<8x128xf32> to vector<8x32xf32>
    %589 = arith.mulf %588, %555 : vector<8x32xf32>
    %590 = vector.extract_strided_slice %580 {offsets = [0, 0], sizes = [8, 32], strides = [1, 1]} : vector<8x128xf32> to vector<8x32xf32>
    %591 = vector.extract_strided_slice %581 {offsets = [0, 64], sizes = [8, 32], strides = [1, 1]} : vector<8x128xf32> to vector<8x32xf32>
    %592 = arith.mulf %590, %591 : vector<8x32xf32>
    %593 = arith.addf %589, %592 : vector<8x32xf32>
    %594 = vector.extract_strided_slice %580 {offsets = [0, 96], sizes = [8, 32], strides = [1, 1]} : vector<8x128xf32> to vector<8x32xf32>
    %595 = math.tanh %593 : vector<8x32xf32>
    %596 = arith.mulf %594, %595 : vector<8x32xf32>
    %597 = vector.extract_strided_slice %586 {offsets = [0, 32], sizes = [8, 32], strides = [1, 1]} : vector<8x128xf32> to vector<8x32xf32>
    %598 = arith.mulf %597, %564 : vector<8x32xf32>
    %599 = vector.extract_strided_slice %586 {offsets = [0, 0], sizes = [8, 32], strides = [1, 1]} : vector<8x128xf32> to vector<8x32xf32>
    %600 = vector.extract_strided_slice %587 {offsets = [0, 64], sizes = [8, 32], strides = [1, 1]} : vector<8x128xf32> to vector<8x32xf32>
    %601 = arith.mulf %599, %600 : vector<8x32xf32>
    %602 = arith.addf %598, %601 : vector<8x32xf32>
    %603 = vector.extract_strided_slice %586 {offsets = [0, 96], sizes = [8, 32], strides = [1, 1]} : vector<8x128xf32> to vector<8x32xf32>
    %604 = math.tanh %602 : vector<8x32xf32>
    %605 = arith.mulf %603, %604 : vector<8x32xf32>
    %c48_215 = arith.constant 48 : index
    %c0_216 = arith.constant 0 : index
    %606 = vector.load %arg19[%c48_215, %c0_216] : memref<64x64xf32, #tpu.memory_space<vmem>>, vector<8x32xf32>
    tpu.vector_store %arg19[%c48_215, %c0_216], %596 {strides = array<i32>} : memref<64x64xf32, #tpu.memory_space<vmem>>, vector<8x32xf32>,
    %c8_217 = arith.constant 8 : index
    %c32_218 = arith.constant 32 : index
    %607 = vector.load %arg19[%c8_217, %c32_218] : memref<64x64xf32, #tpu.memory_space<vmem>>, vector<8x32xf32>
    tpu.vector_store %arg19[%c8_217, %c32_218], %605 {strides = array<i32>} : memref<64x64xf32, #tpu.memory_space<vmem>>, vector<8x32xf32>,
    %c56_219 = arith.constant 56 : index
    %c0_220 = arith.constant 0 : index
    %608 = vector.load %arg16[%c56_219, %c0_220] : memref<64x128xf32, #tpu.memory_space<vmem>>, vector<8x128xf32>
    %cst_221 = arith.constant dense<0.000000e+00> : vector<8x128xf32>
    %609 = tpu.matmul %596, %336, %cst_221 {dimension_numbers = #tpu.dot_dimension_numbers<[1], [0], [0], [1], [0, 0, 1, 1], [], []>} : vector<8x32xf32>, vector<32x128xf32>, vector<8x128xf32> -> vector<8x128xf32>
    %610 = arith.addf %608, %609 : vector<8x128xf32>
    %c0_222 = arith.constant 0 : index
    %c0_223 = arith.constant 0 : index
    %611 = vector.load %arg17[%c0_222, %c0_223] : memref<64x128xf32, #tpu.memory_space<vmem>>, vector<8x128xf32>
    %cst_224 = arith.constant dense<0.000000e+00> : vector<8x128xf32>
    %612 = tpu.matmul %605, %337, %cst_224 {dimension_numbers = #tpu.dot_dimension_numbers<[1], [0], [0], [1], [0, 0, 1, 1], [], []>} : vector<8x32xf32>, vector<32x128xf32>, vector<8x128xf32> -> vector<8x128xf32>
    %613 = arith.addf %611, %612 : vector<8x128xf32>
    %614 = arith.negf %610 : vector<8x128xf32>
    %615 = math.exp %614 : vector<8x128xf32>
    %cst_225 = arith.constant 1.000000e+00 : f32
    %616 = vector.broadcast %cst_225 : f32 to vector<8x128xf32>
    %617 = arith.addf %616, %615 : vector<8x128xf32>
    %618 = arith.divf %616, %617 : vector<8x128xf32>
    %619 = math.tanh %610 : vector<8x128xf32>
    %620 = arith.negf %613 : vector<8x128xf32>
    %621 = math.exp %620 : vector<8x128xf32>
    %cst_226 = arith.constant 1.000000e+00 : f32
    %622 = vector.broadcast %cst_226 : f32 to vector<8x128xf32>
    %623 = arith.addf %622, %621 : vector<8x128xf32>
    %624 = arith.divf %622, %623 : vector<8x128xf32>
    %625 = math.tanh %613 : vector<8x128xf32>
    %626 = vector.extract_strided_slice %618 {offsets = [0, 32], sizes = [8, 32], strides = [1, 1]} : vector<8x128xf32> to vector<8x32xf32>
    %627 = arith.mulf %626, %593 : vector<8x32xf32>
    %628 = vector.extract_strided_slice %618 {offsets = [0, 0], sizes = [8, 32], strides = [1, 1]} : vector<8x128xf32> to vector<8x32xf32>
    %629 = vector.extract_strided_slice %619 {offsets = [0, 64], sizes = [8, 32], strides = [1, 1]} : vector<8x128xf32> to vector<8x32xf32>
    %630 = arith.mulf %628, %629 : vector<8x32xf32>
    %631 = arith.addf %627, %630 : vector<8x32xf32>
    %632 = vector.extract_strided_slice %618 {offsets = [0, 96], sizes = [8, 32], strides = [1, 1]} : vector<8x128xf32> to vector<8x32xf32>
    %633 = math.tanh %631 : vector<8x32xf32>
    %634 = arith.mulf %632, %633 : vector<8x32xf32>
    %635 = vector.extract_strided_slice %624 {offsets = [0, 32], sizes = [8, 32], strides = [1, 1]} : vector<8x128xf32> to vector<8x32xf32>
    %636 = arith.mulf %635, %602 : vector<8x32xf32>
    %637 = vector.extract_strided_slice %624 {offsets = [0, 0], sizes = [8, 32], strides = [1, 1]} : vector<8x128xf32> to vector<8x32xf32>
    %638 = vector.extract_strided_slice %625 {offsets = [0, 64], sizes = [8, 32], strides = [1, 1]} : vector<8x128xf32> to vector<8x32xf32>
    %639 = arith.mulf %637, %638 : vector<8x32xf32>
    %640 = arith.addf %636, %639 : vector<8x32xf32>
    %641 = vector.extract_strided_slice %624 {offsets = [0, 96], sizes = [8, 32], strides = [1, 1]} : vector<8x128xf32> to vector<8x32xf32>
    %642 = math.tanh %640 : vector<8x32xf32>
    %643 = arith.mulf %641, %642 : vector<8x32xf32>
    %c56_227 = arith.constant 56 : index
    %c0_228 = arith.constant 0 : index
    %644 = vector.load %arg19[%c56_227, %c0_228] : memref<64x64xf32, #tpu.memory_space<vmem>>, vector<8x32xf32>
    tpu.vector_store %arg19[%c56_227, %c0_228], %634 {strides = array<i32>} : memref<64x64xf32, #tpu.memory_space<vmem>>, vector<8x32xf32>,
    %c0_229 = arith.constant 0 : index
    %c32_230 = arith.constant 32 : index
    %645 = vector.load %arg19[%c0_229, %c32_230] : memref<64x64xf32, #tpu.memory_space<vmem>>, vector<8x32xf32>
    tpu.vector_store %arg19[%c0_229, %c32_230], %643 {strides = array<i32>} : memref<64x64xf32, #tpu.memory_space<vmem>>, vector<8x32xf32>,
    %c0_231 = arith.constant 0 : index
    %c0_232 = arith.constant 0 : index
    %646 = vector.load %arg19[%c0_231, %c0_232] : memref<64x64xf32, #tpu.memory_space<vmem>>, vector<64x64xf32>
    %c0_233 = arith.constant 0 : index
    %c0_234 = arith.constant 0 : index
    %647 = vector.load %arg13[%c0_233, %c0_234] : memref<64x128xf32, #tpu.memory_space<vmem>>, vector<64x128xf32>
    %cst_235 = arith.constant dense<0.000000e+00> : vector<64x128xf32>
    %648 = tpu.matmul %646, %647, %cst_235 {dimension_numbers = #tpu.dot_dimension_numbers<[1], [0], [0], [1], [0, 0, 1, 1], [], []>} : vector<64x64xf32>, vector<64x128xf32>, vector<64x128xf32> -> vector<64x128xf32>
    %c0_236 = arith.constant 0 : index
    %c0_237 = arith.constant 0 : index
    %649 = vector.load %arg14[%c0_236, %c0_237] : memref<1x128xf32, #tpu.memory_space<vmem>>, vector<1x128xf32>
    %650 = vector.broadcast %649 : vector<1x128xf32> to vector<64x128xf32>
    %651 = arith.addf %648, %650 : vector<64x128xf32>
    %c0_238 = arith.constant 0 : index
    %c0_239 = arith.constant 0 : index
    %652 = vector.load %arg15[%c0_238, %c0_239] : memref<64x128xf32, #tpu.memory_space<vmem>>, vector<64x128xf32>
    tpu.vector_store %arg15[%c0_238, %c0_239], %651 {strides = array<i32>} : memref<64x128xf32, #tpu.memory_space<vmem>>, vector<64x128xf32>,
    return
  }
}

</mosaic_0001>

<llo_original>
// kernel: lstm_forward.1
$region0: #{lstm_forward.1}
  #allocation0 [shape = 'u32[]', space=smem, size = 0x4, offset = 0x4, fixed_abs, tag = 'smem constant byte address 0x4 - core index']
  #allocation1 [shape = 'u32[72,128]{1,0:T(1,128)}', space=vmem, size = 0x9000, scoped, tag = 'internal scratch']
  #allocation2 [shape = 'f32[64,128]{1,0:T(8,128)}', space=vmem, size = 0x8000, scoped, tag = 'scratch operand']
  #allocation3 [shape = 'f32[64,128]{1,0:T(8,128)}', space=vmem, size = 0x8000, scoped, tag = 'scratch operand']
  #allocation4 [shape = 'f32[64,64]{1,0:T(8,128)}', space=vmem, size = 0x8000, scoped, tag = 'scratch operand']
  #allocation5 [shape = 'f32[64,64]{1,0:T(8,128)}', space=vmem, size = 0x8000, scoped, tag = 'scratch operand']
  %s0 = inlined_call_operand.vmem [shape: f32[64,16], index: 0, kind: input, shape index: {}]
  %s1 = inlined_call_operand.vmem [shape: f32[16,128], index: 1, kind: input, shape index: {}]
  %s2 = inlined_call_operand.vmem [shape: f32[32,128], index: 2, kind: input, shape index: {}]
  %s3 = inlined_call_operand.vmem [shape: f32[1,128], index: 3, kind: input, shape index: {}]
  %s4 = inlined_call_operand.vmem [shape: f32[16,128], index: 4, kind: input, shape index: {}]
  %s5 = inlined_call_operand.vmem [shape: f32[32,128], index: 5, kind: input, shape index: {}]
  %s6 = inlined_call_operand.vmem [shape: f32[1,128], index: 6, kind: input, shape index: {}]
  %s7 = inlined_call_operand.vmem [shape: f32[64,128], index: 7, kind: input, shape index: {}]
  %s8 = inlined_call_operand.vmem [shape: f32[32,128], index: 8, kind: input, shape index: {}]
  %s9 = inlined_call_operand.vmem [shape: f32[1,128], index: 9, kind: input, shape index: {}]
  %s10 = inlined_call_operand.vmem [shape: f32[64,128], index: 10, kind: input, shape index: {}]
  %s11 = inlined_call_operand.vmem [shape: f32[32,128], index: 11, kind: input, shape index: {}]
  %s12 = inlined_call_operand.vmem [shape: f32[1,128], index: 12, kind: input, shape index: {}]
  %s13 = inlined_call_operand.vmem [shape: f32[64,128], index: 13, kind: input, shape index: {}]
  %s14 = inlined_call_operand.vmem [shape: f32[1,128], index: 14, kind: input, shape index: {}]
  %s15 = inlined_call_operand.vmem [shape: f32[64,128], index: 15, kind: output, shape index: {}]
  %s16 = sld [smem:[#allocation0]]
  $region70: #{lstm_forward.1} parent=0
    _
  %s18 = ssub.s32 1, %s16
  %s19 = scalar_select 0, %s18, %s16
  // Predicated region
  $region2: #{lstm_forward.1} parent=0 // pred_check
    _
  $region3: #{lstm_forward.1} parent=0 // pred_check_branch
    %21 = sbr.rel (0) target = $region5
  $region4: #{lstm_forward.1} parent=0 // pred_region
    _
  $region5: #{lstm_forward.1} parent=0 // pred_fallthru
    _
  // Predicated region
  $region6: #{lstm_forward.1} parent=0 // pred_check
    _
  $region7: #{lstm_forward.1} parent=0 // pred_check_branch
    %23 = sbr.rel (0) target = $region9
  $region8: #{lstm_forward.1} parent=0 // pred_region
    _
  $region9: #{lstm_forward.1} parent=0 // pred_fallthru
    _
  // Predicated region
  $region10: #{lstm_forward.1} parent=0 // pred_check
    _
  $region11: #{lstm_forward.1} parent=0 // pred_check_branch
    %25 = sbr.rel (0) target = $region13
  $region12: #{lstm_forward.1} parent=0 // pred_region
    _
  $region13: #{lstm_forward.1} parent=0 // pred_fallthru
    _
  // Predicated region
  $region14: #{lstm_forward.1} parent=0 // pred_check
    _
  $region15: #{lstm_forward.1} parent=0 // pred_check_branch
    %27 = sbr.rel (0) target = $region17
  $region16: #{lstm_forward.1} parent=0 // pred_region
    _
  $region17: #{lstm_forward.1} parent=0 // pred_fallthru
    _
  // Predicated region
  $region18: #{lstm_forward.1} parent=0 // pred_check
    _
  $region19: #{lstm_forward.1} parent=0 // pred_check_branch
    %29 = sbr.rel (0) target = $region21
  $region20: #{lstm_forward.1} parent=0 // pred_region
    _
  $region21: #{lstm_forward.1} parent=0 // pred_fallthru
    _
  // Predicated region
  $region22: #{lstm_forward.1} parent=0 // pred_check
    _
  $region23: #{lstm_forward.1} parent=0 // pred_check_branch
    %31 = sbr.rel (0) target = $region25
  $region24: #{lstm_forward.1} parent=0 // pred_region
    _
  $region25: #{lstm_forward.1} parent=0 // pred_fallthru
    _
  // Predicated region
  $region26: #{lstm_forward.1} parent=0 // pred_check
    _
  $region27: #{lstm_forward.1} parent=0 // pred_check_branch
    %33 = sbr.rel (0) target = $region29
  $region28: #{lstm_forward.1} parent=0 // pred_region
    _
  $region29: #{lstm_forward.1} parent=0 // pred_fallthru
    _
  // Predicated region
  $region30: #{lstm_forward.1} parent=0 // pred_check
    _
  $region31: #{lstm_forward.1} parent=0 // pred_check_branch
    %35 = sbr.rel (0) target = $region33
  $region32: #{lstm_forward.1} parent=0 // pred_region
    _
  $region33: #{lstm_forward.1} parent=0 // pred_fallthru
    _
  // Predicated region
  $region34: #{lstm_forward.1} parent=0 // pred_check
    _
  $region35: #{lstm_forward.1} parent=0 // pred_check_branch
    %37 = sbr.rel (0) target = $region37
  $region36: #{lstm_forward.1} parent=0 // pred_region
    _
  $region37: #{lstm_forward.1} parent=0 // pred_fallthru
    _
  // Predicated region
  $region38: #{lstm_forward.1} parent=0 // pred_check
    _
  $region39: #{lstm_forward.1} parent=0 // pred_check_branch
    %39 = sbr.rel (0) target = $region41
  $region40: #{lstm_forward.1} parent=0 // pred_region
    _
  $region41: #{lstm_forward.1} parent=0 // pred_fallthru
    _
  // Predicated region
  $region42: #{lstm_forward.1} parent=0 // pred_check
    _
  $region43: #{lstm_forward.1} parent=0 // pred_check_branch
    %41 = sbr.rel (0) target = $region45
  $region44: #{lstm_forward.1} parent=0 // pred_region
    _
  $region45: #{lstm_forward.1} parent=0 // pred_fallthru
    _
  // Predicated region
  $region46: #{lstm_forward.1} parent=0 // pred_check
    _
  $region47: #{lstm_forward.1} parent=0 // pred_check_branch
    %43 = sbr.rel (0) target = $region49
  $region48: #{lstm_forward.1} parent=0 // pred_region
    _
  $region49: #{lstm_forward.1} parent=0 // pred_fallthru
    _
  // Predicated region
  $region50: #{lstm_forward.1} parent=0 // pred_check
    _
  $region51: #{lstm_forward.1} parent=0 // pred_check_branch
    %45 = sbr.rel (0) target = $region53
  $region52: #{lstm_forward.1} parent=0 // pred_region
    _
  $region53: #{lstm_forward.1} parent=0 // pred_fallthru
    _
  // Predicated region
  $region54: #{lstm_forward.1} parent=0 // pred_check
    _
  $region55: #{lstm_forward.1} parent=0 // pred_check_branch
    %47 = sbr.rel (0) target = $region57
  $region56: #{lstm_forward.1} parent=0 // pred_region
    _
  $region57: #{lstm_forward.1} parent=0 // pred_fallthru
    _
  // Predicated region
  $region58: #{lstm_forward.1} parent=0 // pred_check
    _
  $region59: #{lstm_forward.1} parent=0 // pred_check_branch
    %49 = sbr.rel (0) target = $region61
  $region60: #{lstm_forward.1} parent=0 // pred_region
    _
  $region61: #{lstm_forward.1} parent=0 // pred_fallthru
    _
  %v50 = vld [vmem:[%s0] sm:$0xff]
  %v51 = vld [vmem:[%s0 + $0x8] sm:$0xff]
  %v52 = vld [vmem:[%s0 + $0x10] sm:$0xff]
  %v53 = vld [vmem:[%s0 + $0x18] sm:$0xff]
  %v54 = vld [vmem:[%s0 + $0x20] sm:$0xff]
  %v55 = vld [vmem:[%s0 + $0x28] sm:$0xff]
  %v56 = vld [vmem:[%s0 + $0x30] sm:$0xff]
  %v57 = vld [vmem:[%s0 + $0x38] sm:$0xff]
  %v58 = vld [vmem:[%s1] sm:$0xff]
  %v59 = vld [vmem:[%s1 + $0x8] sm:$0xff]
  %v60 = vld [vmem:[%s3] sm:$0x1]
  %v62 = vperm.slane %v60, 0
  %vm64 = vcmask 130048
  %v66 = vsel %vm64, %v50, 0
  %v69 = vsel %vm64, %v51, 0
  %v72 = vsel %vm64, %v52, 0
  %v75 = vsel %vm64, %v53, 0
  %v78 = vsel %vm64, %v54, 0
  %v81 = vsel %vm64, %v55, 0
  %v84 = vsel %vm64, %v56, 0
  %v87 = vsel %vm64, %v57, 0
  %89 = vmatpush.msra.mxu0 0.0
  %90 = vmatpush.msra.mxu0 0.0
  %91 = vmatpush.msra.mxu0 0.0
  %92 = vmatpush.msra.mxu0 0.0
  %93 = vmatpush.msra.mxu0 0.0
  %94 = vmatpush.msra.mxu0 0.0
  %95 = vmatpush.msra.mxu0 0.0
  %96 = vmatpush.msra.mxu0 0.0
  %97 = vmatpush.msra.mxu0 0.0
  %98 = vmatpush.msra.mxu0 0.0
  %99 = vmatpush.msra.mxu0 0.0
  %100 = vmatpush.msra.mxu0 0.0
  %101 = vmatpush.msra.mxu0 0.0
  %102 = vmatpush.msra.mxu0 0.0
  %103 = vmatpush.msra.mxu0 %v59
  %104 = vmatpush.msra.mxu0 %v58
  %105 = vmatmul.f32.gmra.mxu0 %v66
  %v106 = vpop.f32.mrf.mxu0
  %v107 = vadd.f32 %v62, %v106
  %108 = vmatmul.f32.gmra.mxu0 %v69
  %v109 = vpop.f32.mrf.mxu0
  %v110 = vadd.f32 %v62, %v109
  %111 = vmatmul.f32.gmra.mxu0 %v72
  %v112 = vpop.f32.mrf.mxu0
  %v113 = vadd.f32 %v62, %v112
  %114 = vmatmul.f32.gmra.mxu0 %v75
  %v115 = vpop.f32.mrf.mxu0
  %v116 = vadd.f32 %v62, %v115
  %117 = vmatmul.f32.gmra.mxu0 %v78
  %v118 = vpop.f32.mrf.mxu0
  %v119 = vadd.f32 %v62, %v118
  %120 = vmatmul.f32.gmra.mxu0 %v81
  %v121 = vpop.f32.mrf.mxu0
  %v122 = vadd.f32 %v62, %v121
  %123 = vmatmul.f32.gmra.mxu0 %v84
  %v124 = vpop.f32.mrf.mxu0
  %v125 = vadd.f32 %v62, %v124
  %126 = vmatmul.f32.gmra.mxu0 %v87
  %v127 = vpop.f32.mrf.mxu0
  %v128 = vadd.f32 %v62, %v127
  %129 = vdwg.mxu0
  %130 = vst [vmem:[#allocation2] sm:$0xff] %v107
  %131 = vst [vmem:[#allocation2 + $0x8] sm:$0xff] %v110
  %132 = vst [vmem:[#allocation2 + $0x10] sm:$0xff] %v113
  %133 = vst [vmem:[#allocation2 + $0x18] sm:$0xff] %v116
  %134 = vst [vmem:[#allocation2 + $0x20] sm:$0xff] %v119
  %135 = vst [vmem:[#allocation2 + $0x28] sm:$0xff] %v122
  %136 = vst [vmem:[#allocation2 + $0x30] sm:$0xff] %v125
  %137 = vst [vmem:[#allocation2 + $0x38] sm:$0xff] %v128
  %v138 = vld [vmem:[%s4] sm:$0xff]
  %v139 = vld [vmem:[%s4 + $0x8] sm:$0xff]
  %v140 = vld [vmem:[%s6] sm:$0x1]
  %v142 = vperm.slane %v140, 0
  %144 = vmatpush.msra.mxu0 0.0
  %145 = vmatpush.msra.mxu0 0.0
  %146 = vmatpush.msra.mxu0 0.0
  %147 = vmatpush.msra.mxu0 0.0
  %148 = vmatpush.msra.mxu0 0.0
  %149 = vmatpush.msra.mxu0 0.0
  %150 = vmatpush.msra.mxu0 0.0
  %151 = vmatpush.msra.mxu0 0.0
  %152 = vmatpush.msra.mxu0 0.0
  %153 = vmatpush.msra.mxu0 0.0
  %154 = vmatpush.msra.mxu0 0.0
  %155 = vmatpush.msra.mxu0 0.0
  %156 = vmatpush.msra.mxu0 0.0
  %157 = vmatpush.msra.mxu0 0.0
  %158 = vmatpush.msra.mxu0 %v139
  %159 = vmatpush.msra.mxu0 %v138
  %160 = vmatmul.f32.gmra.mxu0 %v66
  %v161 = vpop.f32.mrf.mxu0
  %v162 = vadd.f32 %v142, %v161
  %163 = vmatmul.f32.gmra.mxu0 %v69
  %v164 = vpop.f32.mrf.mxu0
  %v165 = vadd.f32 %v142, %v164
  %166 = vmatmul.f32.gmra.mxu0 %v72
  %v167 = vpop.f32.mrf.mxu0
  %v168 = vadd.f32 %v142, %v167
  %169 = vmatmul.f32.gmra.mxu0 %v75
  %v170 = vpop.f32.mrf.mxu0
  %v171 = vadd.f32 %v142, %v170
  %172 = vmatmul.f32.gmra.mxu0 %v78
  %v173 = vpop.f32.mrf.mxu0
  %v174 = vadd.f32 %v142, %v173
  %175 = vmatmul.f32.gmra.mxu0 %v81
  %v176 = vpop.f32.mrf.mxu0
  %v177 = vadd.f32 %v142, %v176
  %178 = vmatmul.f32.gmra.mxu0 %v84
  %v179 = vpop.f32.mrf.mxu0
  %v180 = vadd.f32 %v142, %v179
  %181 = vmatmul.f32.gmra.mxu0 %v87
  %v182 = vpop.f32.mrf.mxu0
  %v183 = vadd.f32 %v142, %v182
  %184 = vdwg.mxu0
  %185 = vst [vmem:[#allocation3] sm:$0xff] %v162
  %186 = vst [vmem:[#allocation3 + $0x8] sm:$0xff] %v165
  %187 = vst [vmem:[#allocation3 + $0x10] sm:$0xff] %v168
  %188 = vst [vmem:[#allocation3 + $0x18] sm:$0xff] %v171
  %189 = vst [vmem:[#allocation3 + $0x20] sm:$0xff] %v174
  %190 = vst [vmem:[#allocation3 + $0x28] sm:$0xff] %v177
  %191 = vst [vmem:[#allocation3 + $0x30] sm:$0xff] %v180
  %192 = vst [vmem:[#allocation3 + $0x38] sm:$0xff] %v183
  %v193 = vld [vmem:[%s2] sm:$0xff]
  %v194 = vld [vmem:[%s2 + $0x8] sm:$0xff]
  %v195 = vld [vmem:[%s2 + $0x10] sm:$0xff]
  %v196 = vld [vmem:[%s2 + $0x18] sm:$0xff]
  %v197 = vld [vmem:[%s5] sm:$0xff]
  %v198 = vld [vmem:[%s5 + $0x8] sm:$0xff]
  %v199 = vld [vmem:[%s5 + $0x10] sm:$0xff]
  %v200 = vld [vmem:[%s5 + $0x18] sm:$0xff]
  %v201 = vld [vmem:[#allocation2] sm:$0xff]
  %vm202 = vcmask 261120
  %v204 = vsel %vm202, 0.0, 0
  %206 = vmatpush.msra.mxu0 0.0
  %207 = vmatpush.msra.mxu0 0.0
  %208 = vmatpush.msra.mxu0 0.0
  %209 = vmatpush.msra.mxu0 0.0
  %210 = vmatpush.msra.mxu0 0.0
  %211 = vmatpush.msra.mxu0 0.0
  %212 = vmatpush.msra.mxu0 0.0
  %213 = vmatpush.msra.mxu0 0.0
  %214 = vmatpush.msra.mxu0 0.0
  %215 = vmatpush.msra.mxu0 0.0
  %216 = vmatpush.msra.mxu0 0.0
  %217 = vmatpush.msra.mxu0 0.0
  %218 = vmatpush.msra.mxu0 %v196
  %219 = vmatpush.msra.mxu0 %v195
  %220 = vmatpush.msra.mxu0 %v194
  %221 = vmatpush.msra.mxu0 %v193
  %222 = vmatmul.f32.gmra.mxu0 %v204
  %v223 = vpop.f32.mrf.mxu0
  %v224 = vadd.f32 0.0, %v223
  %225 = vdwg.mxu0
  %v226 = vadd.f32 %v201, %v224
  %v227 = vld [vmem:[#allocation3 + $0x38] sm:$0xff]
  %228 = vmatpush.msra.mxu0 0.0
  %229 = vmatpush.msra.mxu0 0.0
  %230 = vmatpush.msra.mxu0 0.0
  %231 = vmatpush.msra.mxu0 0.0
  %232 = vmatpush.msra.mxu0 0.0
  %233 = vmatpush.msra.mxu0 0.0
  %234 = vmatpush.msra.mxu0 0.0
  %235 = vmatpush.msra.mxu0 0.0
  %236 = vmatpush.msra.mxu0 0.0
  %237 = vmatpush.msra.mxu0 0.0
  %238 = vmatpush.msra.mxu0 0.0
  %239 = vmatpush.msra.mxu0 0.0
  %240 = vmatpush.msra.mxu0 %v200
  %241 = vmatpush.msra.mxu0 %v199
  %242 = vmatpush.msra.mxu0 %v198
  %243 = vmatpush.msra.mxu0 %v197
  %244 = vmatmul.f32.gmra.mxu0 %v204
  %v245 = vpop.f32.mrf.mxu0
  %v246 = vadd.f32 0.0, %v245
  %247 = vdwg.mxu0
  %v248 = vadd.f32 %v227, %v246
  %v249 = vxor.u32 %v226, 2147483648
  %v250 = vmul.f32 %v249, 1.442695
  %v251 = vpow.pop %v250
  %v252 = vadd.f32 %v251, 1.0
  %v253 = vrcp.pop %v252
  %v254 = vmul.f32 %v252, %v253
  %v255 = vsub.f32 1.0, %v254
  %v256 = vmul.f32 %v253, %v255
  %v257 = vadd.f32 %v253, %v256
  %vm258 = vweird.f32 %v252
  %vm259 = vweird.f32 %v253
  %vm260 = vmor %vm258, %vm259
  %v261 = vsel %vm260, %v253, %v257
  %v262 = vand.u32 2147483647, %v252
  %vm263 = vcmp.eq.f32.partialorder %v262, 8.507059e+37
  %v264 = vand.u32 %v252, 2147483648
  %v265 = vor.u32 1.1754944e-38, %v264
  %v266 = vsel %vm263, %v265, %v261
  %v267 = vmul.f32 1.0, %v266
  %v268 = vtanh.pop %v226
  %v269 = vxor.u32 %v248, 2147483648
  %v270 = vmul.f32 %v269, 1.442695
  %v271 = vpow.pop %v270
  %v272 = vadd.f32 %v271, 1.0
  %v273 = vrcp.pop %v272
  %v274 = vmul.f32 %v272, %v273
  %v275 = vsub.f32 1.0, %v274
  %v276 = vmul.f32 %v273, %v275
  %v277 = vadd.f32 %v273, %v276
  %vm278 = vweird.f32 %v272
  %vm279 = vweird.f32 %v273
  %vm280 = vmor %vm278, %vm279
  %v281 = vsel %vm280, %v273, %v277
  %v282 = vand.u32 2147483647, %v272
  %vm283 = vcmp.eq.f32.partialorder %v282, 8.507059e+37
  %v284 = vand.u32 %v272, 2147483648
  %v285 = vor.u32 1.1754944e-38, %v284
  %v286 = vsel %vm283, %v285, %v281
  %v287 = vmul.f32 1.0, %v286
  %v288 = vtanh.pop %v248
  %v289 = vmul.f32 %v267, 0.0
  %291 = vrot.lane.b32.xlu0 %v268, 64
  %v292 = vpop.permute.xlu0 %291
  %v294 = vmul.f32 %v267, %v292
  %296 = vrot.lane.b32.xlu0 %v294, 32
  %v297 = vpop.permute.xlu0 %296
  %v299 = vadd.f32 %v289, %v297
  %v300 = vtanh.pop %v299
  %302 = vrot.lane.b32.xlu0 %v300, 64
  %v303 = vpop.permute.xlu0 %302
  %v305 = vmul.f32 %v267, %v303
  %v306 = vmul.f32 %v287, 0.0
  %308 = vrot.lane.b32.xlu0 %v288, 64
  %v309 = vpop.permute.xlu0 %308
  %v311 = vmul.f32 %v287, %v309
  %313 = vrot.lane.b32.xlu0 %v311, 32
  %v314 = vpop.permute.xlu0 %313
  %v316 = vadd.f32 %v306, %v314
  %v317 = vtanh.pop %v316
  %319 = vrot.lane.b32.xlu0 %v317, 64
  %v320 = vpop.permute.xlu0 %319
  %v322 = vmul.f32 %v287, %v320
  %324 = vrot.lane.b32.xlu0 %v305, 32
  %v325 = vpop.permute.xlu0 %324
  %327 = vst.msk [vmem:[#allocation4] sm:$0xff] %vm202, %v325
  %329 = vrot.lane.b32.xlu0 %v322, 64
  %v330 = vpop.permute.xlu0 %329
  %vm332 = vcmask 523520
  %333 = vst.msk [vmem:[#allocation4 + $0x38] sm:$0xff] %vm332, %v330
  %v334 = vld [vmem:[#allocation2 + $0x8] sm:$0xff]
  %v335 = vsel %vm202, %v325, 0
  %337 = vmatpush.msra.mxu0 0.0
  %338 = vmatpush.msra.mxu0 0.0
  %339 = vmatpush.msra.mxu0 0.0
  %340 = vmatpush.msra.mxu0 0.0
  %341 = vmatpush.msra.mxu0 0.0
  %342 = vmatpush.msra.mxu0 0.0
  %343 = vmatpush.msra.mxu0 0.0
  %344 = vmatpush.msra.mxu0 0.0
  %345 = vmatpush.msra.mxu0 0.0
  %346 = vmatpush.msra.mxu0 0.0
  %347 = vmatpush.msra.mxu0 0.0
  %348 = vmatpush.msra.mxu0 0.0
  %349 = vmatpush.msra.mxu0 %v196
  %350 = vmatpush.msra.mxu0 %v195
  %351 = vmatpush.msra.mxu0 %v194
  %352 = vmatpush.msra.mxu0 %v193
  %353 = vmatmul.f32.gmra.mxu0 %v335
  %v354 = vpop.f32.mrf.mxu0
  %v355 = vadd.f32 0.0, %v354
  %356 = vdwg.mxu0
  %v357 = vadd.f32 %v334, %v355
  %v358 = vld [vmem:[#allocation3 + $0x30] sm:$0xff]
  %359 = vrot.lane.b32.xlu0 %v322, 32
  %v360 = vpop.permute.xlu0 %359
  %v361 = vsel %vm202, %v360, 0
  %363 = vmatpush.msra.mxu0 0.0
  %364 = vmatpush.msra.mxu0 0.0
  %365 = vmatpush.msra.mxu0 0.0
  %366 = vmatpush.msra.mxu0 0.0
  %367 = vmatpush.msra.mxu0 0.0
  %368 = vmatpush.msra.mxu0 0.0
  %369 = vmatpush.msra.mxu0 0.0
  %370 = vmatpush.msra.mxu0 0.0
  %371 = vmatpush.msra.mxu0 0.0
  %372 = vmatpush.msra.mxu0 0.0
  %373 = vmatpush.msra.mxu0 0.0
  %374 = vmatpush.msra.mxu0 0.0
  %375 = vmatpush.msra.mxu0 %v200
  %376 = vmatpush.msra.mxu0 %v199
  %377 = vmatpush.msra.mxu0 %v198
  %378 = vmatpush.msra.mxu0 %v197
  %379 = vmatmul.f32.gmra.mxu0 %v361
  %v380 = vpop.f32.mrf.mxu0
  %v381 = vadd.f32 0.0, %v380
  %382 = vdwg.mxu0
  %v383 = vadd.f32 %v358, %v381
  %v384 = vxor.u32 %v357, 2147483648
  %v385 = vmul.f32 %v384, 1.442695
  %v386 = vpow.pop %v385
  %v387 = vadd.f32 %v386, 1.0
  %v388 = vrcp.pop %v387
  %v389 = vmul.f32 %v387, %v388
  %v390 = vsub.f32 1.0, %v389
  %v391 = vmul.f32 %v388, %v390
  %v392 = vadd.f32 %v388, %v391
  %vm393 = vweird.f32 %v387
  %vm394 = vweird.f32 %v388
  %vm395 = vmor %vm393, %vm394
  %v396 = vsel %vm395, %v388, %v392
  %v397 = vand.u32 2147483647, %v387
  %vm398 = vcmp.eq.f32.partialorder %v397, 8.507059e+37
  %v399 = vand.u32 %v387, 2147483648
  %v400 = vor.u32 1.1754944e-38, %v399
  %v401 = vsel %vm398, %v400, %v396
  %v402 = vmul.f32 1.0, %v401
  %v403 = vtanh.pop %v357
  %v404 = vxor.u32 %v383, 2147483648
  %v405 = vmul.f32 %v404, 1.442695
  %v406 = vpow.pop %v405
  %v407 = vadd.f32 %v406, 1.0
  %v408 = vrcp.pop %v407
  %v409 = vmul.f32 %v407, %v408
  %v410 = vsub.f32 1.0, %v409
  %v411 = vmul.f32 %v408, %v410
  %v412 = vadd.f32 %v408, %v411
  %vm413 = vweird.f32 %v407
  %vm414 = vweird.f32 %v408
  %vm415 = vmor %vm413, %vm414
  %v416 = vsel %vm415, %v408, %v412
  %v417 = vand.u32 2147483647, %v407
  %vm418 = vcmp.eq.f32.partialorder %v417, 8.507059e+37
  %v419 = vand.u32 %v407, 2147483648
  %v420 = vor.u32 1.1754944e-38, %v419
  %v421 = vsel %vm418, %v420, %v416
  %v422 = vmul.f32 1.0, %v421
  %v423 = vtanh.pop %v383
  %v424 = vmul.f32 %v402, %v299
  %426 = vrot.lane.b32.xlu0 %v403, 64
  %v427 = vpop.permute.xlu0 %426
  %v429 = vmul.f32 %v402, %v427
  %431 = vrot.lane.b32.xlu0 %v429, 32
  %v432 = vpop.permute.xlu0 %431
  %v434 = vadd.f32 %v424, %v432
  %v435 = vtanh.pop %v434
  %437 = vrot.lane.b32.xlu0 %v435, 64
  %v438 = vpop.permute.xlu0 %437
  %v440 = vmul.f32 %v402, %v438
  %v441 = vmul.f32 %v422, %v316
  %443 = vrot.lane.b32.xlu0 %v423, 64
  %v444 = vpop.permute.xlu0 %443
  %v446 = vmul.f32 %v422, %v444
  %448 = vrot.lane.b32.xlu0 %v446, 32
  %v449 = vpop.permute.xlu0 %448
  %v451 = vadd.f32 %v441, %v449
  %v452 = vtanh.pop %v451
  %454 = vrot.lane.b32.xlu0 %v452, 64
  %v455 = vpop.permute.xlu0 %454
  %v457 = vmul.f32 %v422, %v455
  %459 = vrot.lane.b32.xlu0 %v440, 32
  %v460 = vpop.permute.xlu0 %459
  %462 = vst.msk [vmem:[#allocation4 + $0x8] sm:$0xff] %vm202, %v460
  %464 = vrot.lane.b32.xlu0 %v457, 64
  %v465 = vpop.permute.xlu0 %464
  %467 = vst.msk [vmem:[#allocation4 + $0x30] sm:$0xff] %vm332, %v465
  %v468 = vld [vmem:[#allocation2 + $0x10] sm:$0xff]
  %v469 = vsel %vm202, %v460, 0
  %471 = vmatpush.msra.mxu0 0.0
  %472 = vmatpush.msra.mxu0 0.0
  %473 = vmatpush.msra.mxu0 0.0
  %474 = vmatpush.msra.mxu0 0.0
  %475 = vmatpush.msra.mxu0 0.0
  %476 = vmatpush.msra.mxu0 0.0
  %477 = vmatpush.msra.mxu0 0.0
  %478 = vmatpush.msra.mxu0 0.0
  %479 = vmatpush.msra.mxu0 0.0
  %480 = vmatpush.msra.mxu0 0.0
  %481 = vmatpush.msra.mxu0 0.0
  %482 = vmatpush.msra.mxu0 0.0
  %483 = vmatpush.msra.mxu0 %v196
  %484 = vmatpush.msra.mxu0 %v195
  %485 = vmatpush.msra.mxu0 %v194
  %486 = vmatpush.msra.mxu0 %v193
  %487 = vmatmul.f32.gmra.mxu0 %v469
  %v488 = vpop.f32.mrf.mxu0
  %v489 = vadd.f32 0.0, %v488
  %490 = vdwg.mxu0
  %v491 = vadd.f32 %v468, %v489
  %v492 = vld [vmem:[#allocation3 + $0x28] sm:$0xff]
  %493 = vrot.lane.b32.xlu0 %v457, 32
  %v494 = vpop.permute.xlu0 %493
  %v495 = vsel %vm202, %v494, 0
  %497 = vmatpush.msra.mxu0 0.0
  %498 = vmatpush.msra.mxu0 0.0
  %499 = vmatpush.msra.mxu0 0.0
  %500 = vmatpush.msra.mxu0 0.0
  %501 = vmatpush.msra.mxu0 0.0
  %502 = vmatpush.msra.mxu0 0.0
  %503 = vmatpush.msra.mxu0 0.0
  %504 = vmatpush.msra.mxu0 0.0
  %505 = vmatpush.msra.mxu0 0.0
  %506 = vmatpush.msra.mxu0 0.0
  %507 = vmatpush.msra.mxu0 0.0
  %508 = vmatpush.msra.mxu0 0.0
  %509 = vmatpush.msra.mxu0 %v200
  %510 = vmatpush.msra.mxu0 %v199
  %511 = vmatpush.msra.mxu0 %v198
  %512 = vmatpush.msra.mxu0 %v197
  %513 = vmatmul.f32.gmra.mxu0 %v495
  %v514 = vpop.f32.mrf.mxu0
  %v515 = vadd.f32 0.0, %v514
  %516 = vdwg.mxu0
  %v517 = vadd.f32 %v492, %v515
  %v518 = vxor.u32 %v491, 2147483648
  %v519 = vmul.f32 %v518, 1.442695
  %v520 = vpow.pop %v519
  %v521 = vadd.f32 %v520, 1.0
  %v522 = vrcp.pop %v521
  %v523 = vmul.f32 %v521, %v522
  %v524 = vsub.f32 1.0, %v523
  %v525 = vmul.f32 %v522, %v524
  %v526 = vadd.f32 %v522, %v525
  %vm527 = vweird.f32 %v521
  %vm528 = vweird.f32 %v522
  %vm529 = vmor %vm527, %vm528
  %v530 = vsel %vm529, %v522, %v526
  %v531 = vand.u32 2147483647, %v521
  %vm532 = vcmp.eq.f32.partialorder %v531, 8.507059e+37
  %v533 = vand.u32 %v521, 2147483648
  %v534 = vor.u32 1.1754944e-38, %v533
  %v535 = vsel %vm532, %v534, %v530
  %v536 = vmul.f32 1.0, %v535
  %v537 = vtanh.pop %v491
  %v538 = vxor.u32 %v517, 2147483648
  %v539 = vmul.f32 %v538, 1.442695
  %v540 = vpow.pop %v539
  %v541 = vadd.f32 %v540, 1.0
  %v542 = vrcp.pop %v541
  %v543 = vmul.f32 %v541, %v542
  %v544 = vsub.f32 1.0, %v543
  %v545 = vmul.f32 %v542, %v544
  %v546 = vadd.f32 %v542, %v545
  %vm547 = vweird.f32 %v541
  %vm548 = vweird.f32 %v542
  %vm549 = vmor %vm547, %vm548
  %v550 = vsel %vm549, %v542, %v546
  %v551 = vand.u32 2147483647, %v541
  %vm552 = vcmp.eq.f32.partialorder %v551, 8.507059e+37
  %v553 = vand.u32 %v541, 2147483648
  %v554 = vor.u32 1.1754944e-38, %v553
  %v555 = vsel %vm552, %v554, %v550
  %v556 = vmul.f32 1.0, %v555
  %v557 = vtanh.pop %v517
  %v558 = vmul.f32 %v536, %v434
  %560 = vrot.lane.b32.xlu0 %v537, 64
  %v561 = vpop.permute.xlu0 %560
  %v563 = vmul.f32 %v536, %v561
  %565 = vrot.lane.b32.xlu0 %v563, 32
  %v566 = vpop.permute.xlu0 %565
  %v568 = vadd.f32 %v558, %v566
  %v569 = vtanh.pop %v568
  %571 = vrot.lane.b32.xlu0 %v569, 64
  %v572 = vpop.permute.xlu0 %571
  %v574 = vmul.f32 %v536, %v572
  %v575 = vmul.f32 %v556, %v451
  %577 = vrot.lane.b32.xlu0 %v557, 64
  %v578 = vpop.permute.xlu0 %577
  %v580 = vmul.f32 %v556, %v578
  %582 = vrot.lane.b32.xlu0 %v580, 32
  %v583 = vpop.permute.xlu0 %582
  %v585 = vadd.f32 %v575, %v583
  %v586 = vtanh.pop %v585
  %588 = vrot.lane.b32.xlu0 %v586, 64
  %v589 = vpop.permute.xlu0 %588
  %v591 = vmul.f32 %v556, %v589
  %593 = vrot.lane.b32.xlu0 %v574, 32
  %v594 = vpop.permute.xlu0 %593
  %596 = vst.msk [vmem:[#allocation4 + $0x10] sm:$0xff] %vm202, %v594
  %598 = vrot.lane.b32.xlu0 %v591, 64
  %v599 = vpop.permute.xlu0 %598
  %601 = vst.msk [vmem:[#allocation4 + $0x28] sm:$0xff] %vm332, %v599
  %v602 = vld [vmem:[#allocation2 + $0x18] sm:$0xff]
  %v603 = vsel %vm202, %v594, 0
  %605 = vmatpush.msra.mxu0 0.0
  %606 = vmatpush.msra.mxu0 0.0
  %607 = vmatpush.msra.mxu0 0.0
  %608 = vmatpush.msra.mxu0 0.0
  %609 = vmatpush.msra.mxu0 0.0
  %610 = vmatpush.msra.mxu0 0.0
  %611 = vmatpush.msra.mxu0 0.0
  %612 = vmatpush.msra.mxu0 0.0
  %613 = vmatpush.msra.mxu0 0.0
  %614 = vmatpush.msra.mxu0 0.0
  %615 = vmatpush.msra.mxu0 0.0
  %616 = vmatpush.msra.mxu0 0.0
  %617 = vmatpush.msra.mxu0 %v196
  %618 = vmatpush.msra.mxu0 %v195
  %619 = vmatpush.msra.mxu0 %v194
  %620 = vmatpush.msra.mxu0 %v193
  %621 = vmatmul.f32.gmra.mxu0 %v603
  %v622 = vpop.f32.mrf.mxu0
  %v623 = vadd.f32 0.0, %v622
  %624 = vdwg.mxu0
  %v625 = vadd.f32 %v602, %v623
  %v626 = vld [vmem:[#allocation3 + $0x20] sm:$0xff]
  %627 = vrot.lane.b32.xlu0 %v591, 32
  %v628 = vpop.permute.xlu0 %627
  %v629 = vsel %vm202, %v628, 0
  %631 = vmatpush.msra.mxu0 0.0
  %632 = vmatpush.msra.mxu0 0.0
  %633 = vmatpush.msra.mxu0 0.0
  %634 = vmatpush.msra.mxu0 0.0
  %635 = vmatpush.msra.mxu0 0.0
  %636 = vmatpush.msra.mxu0 0.0
  %637 = vmatpush.msra.mxu0 0.0
  %638 = vmatpush.msra.mxu0 0.0
  %639 = vmatpush.msra.mxu0 0.0
  %640 = vmatpush.msra.mxu0 0.0
  %641 = vmatpush.msra.mxu0 0.0
  %642 = vmatpush.msra.mxu0 0.0
  %643 = vmatpush.msra.mxu0 %v200
  %644 = vmatpush.msra.mxu0 %v199
  %645 = vmatpush.msra.mxu0 %v198
  %646 = vmatpush.msra.mxu0 %v197
  %647 = vmatmul.f32.gmra.mxu0 %v629
  %v648 = vpop.f32.mrf.mxu0
  %v649 = vadd.f32 0.0, %v648
  %650 = vdwg.mxu0
  %v651 = vadd.f32 %v626, %v649
  %v652 = vxor.u32 %v625, 2147483648
  %v653 = vmul.f32 %v652, 1.442695
  %v654 = vpow.pop %v653
  %v655 = vadd.f32 %v654, 1.0
  %v656 = vrcp.pop %v655
  %v657 = vmul.f32 %v655, %v656
  %v658 = vsub.f32 1.0, %v657
  %v659 = vmul.f32 %v656, %v658
  %v660 = vadd.f32 %v656, %v659
  %vm661 = vweird.f32 %v655
  %vm662 = vweird.f32 %v656
  %vm663 = vmor %vm661, %vm662
  %v664 = vsel %vm663, %v656, %v660
  %v665 = vand.u32 2147483647, %v655
  %vm666 = vcmp.eq.f32.partialorder %v665, 8.507059e+37
  %v667 = vand.u32 %v655, 2147483648
  %v668 = vor.u32 1.1754944e-38, %v667
  %v669 = vsel %vm666, %v668, %v664
  %v670 = vmul.f32 1.0, %v669
  %v671 = vtanh.pop %v625
  %v672 = vxor.u32 %v651, 2147483648
  %v673 = vmul.f32 %v672, 1.442695
  %v674 = vpow.pop %v673
  %v675 = vadd.f32 %v674, 1.0
  %v676 = vrcp.pop %v675
  %v677 = vmul.f32 %v675, %v676
  %v678 = vsub.f32 1.0, %v677
  %v679 = vmul.f32 %v676, %v678
  %v680 = vadd.f32 %v676, %v679
  %vm681 = vweird.f32 %v675
  %vm682 = vweird.f32 %v676
  %vm683 = vmor %vm681, %vm682
  %v684 = vsel %vm683, %v676, %v680
  %v685 = vand.u32 2147483647, %v675
  %vm686 = vcmp.eq.f32.partialorder %v685, 8.507059e+37
  %v687 = vand.u32 %v675, 2147483648
  %v688 = vor.u32 1.1754944e-38, %v687
  %v689 = vsel %vm686, %v688, %v684
  %v690 = vmul.f32 1.0, %v689
  %v691 = vtanh.pop %v651
  %v692 = vmul.f32 %v670, %v568
  %694 = vrot.lane.b32.xlu0 %v671, 64
  %v695 = vpop.permute.xlu0 %694
  %v697 = vmul.f32 %v670, %v695
  %699 = vrot.lane.b32.xlu0 %v697, 32
  %v700 = vpop.permute.xlu0 %699
  %v702 = vadd.f32 %v692, %v700
  %v703 = vtanh.pop %v702
  %705 = vrot.lane.b32.xlu0 %v703, 64
  %v706 = vpop.permute.xlu0 %705
  %v708 = vmul.f32 %v670, %v706
  %v709 = vmul.f32 %v690, %v585
  %711 = vrot.lane.b32.xlu0 %v691, 64
  %v712 = vpop.permute.xlu0 %711
  %v714 = vmul.f32 %v690, %v712
  %716 = vrot.lane.b32.xlu0 %v714, 32
  %v717 = vpop.permute.xlu0 %716
  %v719 = vadd.f32 %v709, %v717
  %v720 = vtanh.pop %v719
  %722 = vrot.lane.b32.xlu0 %v720, 64
  %v723 = vpop.permute.xlu0 %722
  %v725 = vmul.f32 %v690, %v723
  %727 = vrot.lane.b32.xlu0 %v708, 32
  %v728 = vpop.permute.xlu0 %727
  %730 = vst.msk [vmem:[#allocation4 + $0x18] sm:$0xff] %vm202, %v728
  %732 = vrot.lane.b32.xlu0 %v725, 64
  %v733 = vpop.permute.xlu0 %732
  %735 = vst.msk [vmem:[#allocation4 + $0x20] sm:$0xff] %vm332, %v733
  %v736 = vld [vmem:[#allocation2 + $0x20] sm:$0xff]
  %v737 = vsel %vm202, %v728, 0
  %739 = vmatpush.msra.mxu0 0.0
  %740 = vmatpush.msra.mxu0 0.0
  %741 = vmatpush.msra.mxu0 0.0
  %742 = vmatpush.msra.mxu0 0.0
  %743 = vmatpush.msra.mxu0 0.0
  %744 = vmatpush.msra.mxu0 0.0
  %745 = vmatpush.msra.mxu0 0.0
  %746 = vmatpush.msra.mxu0 0.0
  %747 = vmatpush.msra.mxu0 0.0
  %748 = vmatpush.msra.mxu0 0.0
  %749 = vmatpush.msra.mxu0 0.0
  %750 = vmatpush.msra.mxu0 0.0
  %751 = vmatpush.msra.mxu0 %v196
  %752 = vmatpush.msra.mxu0 %v195
  %753 = vmatpush.msra.mxu0 %v194
  %754 = vmatpush.msra.mxu0 %v193
  %755 = vmatmul.f32.gmra.mxu0 %v737
  %v756 = vpop.f32.mrf.mxu0
  %v757 = vadd.f32 0.0, %v756
  %758 = vdwg.mxu0
  %v759 = vadd.f32 %v736, %v757
  %v760 = vld [vmem:[#allocation3 + $0x18] sm:$0xff]
  %761 = vrot.lane.b32.xlu0 %v725, 32
  %v762 = vpop.permute.xlu0 %761
  %v763 = vsel %vm202, %v762, 0
  %765 = vmatpush.msra.mxu0 0.0
  %766 = vmatpush.msra.mxu0 0.0
  %767 = vmatpush.msra.mxu0 0.0
  %768 = vmatpush.msra.mxu0 0.0
  %769 = vmatpush.msra.mxu0 0.0
  %770 = vmatpush.msra.mxu0 0.0
  %771 = vmatpush.msra.mxu0 0.0
  %772 = vmatpush.msra.mxu0 0.0
  %773 = vmatpush.msra.mxu0 0.0
  %774 = vmatpush.msra.mxu0 0.0
  %775 = vmatpush.msra.mxu0 0.0
  %776 = vmatpush.msra.mxu0 0.0
  %777 = vmatpush.msra.mxu0 %v200
  %778 = vmatpush.msra.mxu0 %v199
  %779 = vmatpush.msra.mxu0 %v198
  %780 = vmatpush.msra.mxu0 %v197
  %781 = vmatmul.f32.gmra.mxu0 %v763
  %v782 = vpop.f32.mrf.mxu0
  %v783 = vadd.f32 0.0, %v782
  %784 = vdwg.mxu0
  %v785 = vadd.f32 %v760, %v783
  %v786 = vxor.u32 %v759, 2147483648
  %v787 = vmul.f32 %v786, 1.442695
  %v788 = vpow.pop %v787
  %v789 = vadd.f32 %v788, 1.0
  %v790 = vrcp.pop %v789
  %v791 = vmul.f32 %v789, %v790
  %v792 = vsub.f32 1.0, %v791
  %v793 = vmul.f32 %v790, %v792
  %v794 = vadd.f32 %v790, %v793
  %vm795 = vweird.f32 %v789
  %vm796 = vweird.f32 %v790
  %vm797 = vmor %vm795, %vm796
  %v798 = vsel %vm797, %v790, %v794
  %v799 = vand.u32 2147483647, %v789
  %vm800 = vcmp.eq.f32.partialorder %v799, 8.507059e+37
  %v801 = vand.u32 %v789, 2147483648
  %v802 = vor.u32 1.1754944e-38, %v801
  %v803 = vsel %vm800, %v802, %v798
  %v804 = vmul.f32 1.0, %v803
  %v805 = vtanh.pop %v759
  %v806 = vxor.u32 %v785, 2147483648
  %v807 = vmul.f32 %v806, 1.442695
  %v808 = vpow.pop %v807
  %v809 = vadd.f32 %v808, 1.0
  %v810 = vrcp.pop %v809
  %v811 = vmul.f32 %v809, %v810
  %v812 = vsub.f32 1.0, %v811
  %v813 = vmul.f32 %v810, %v812
  %v814 = vadd.f32 %v810, %v813
  %vm815 = vweird.f32 %v809
  %vm816 = vweird.f32 %v810
  %vm817 = vmor %vm815, %vm816
  %v818 = vsel %vm817, %v810, %v814
  %v819 = vand.u32 2147483647, %v809
  %vm820 = vcmp.eq.f32.partialorder %v819, 8.507059e+37
  %v821 = vand.u32 %v809, 2147483648
  %v822 = vor.u32 1.1754944e-38, %v821
  %v823 = vsel %vm820, %v822, %v818
  %v824 = vmul.f32 1.0, %v823
  %v825 = vtanh.pop %v785
  %v826 = vmul.f32 %v804, %v702
  %828 = vrot.lane.b32.xlu0 %v805, 64
  %v829 = vpop.permute.xlu0 %828
  %v831 = vmul.f32 %v804, %v829
  %833 = vrot.lane.b32.xlu0 %v831, 32
  %v834 = vpop.permute.xlu0 %833
  %v836 = vadd.f32 %v826, %v834
  %v837 = vtanh.pop %v836
  %839 = vrot.lane.b32.xlu0 %v837, 64
  %v840 = vpop.permute.xlu0 %839
  %v842 = vmul.f32 %v804, %v840
  %v843 = vmul.f32 %v824, %v719
  %845 = vrot.lane.b32.xlu0 %v825, 64
  %v846 = vpop.permute.xlu0 %845
  %v848 = vmul.f32 %v824, %v846
  %850 = vrot.lane.b32.xlu0 %v848, 32
  %v851 = vpop.permute.xlu0 %850
  %v853 = vadd.f32 %v843, %v851
  %v854 = vtanh.pop %v853
  %856 = vrot.lane.b32.xlu0 %v854, 64
  %v857 = vpop.permute.xlu0 %856
  %v859 = vmul.f32 %v824, %v857
  %861 = vrot.lane.b32.xlu0 %v842, 32
  %v862 = vpop.permute.xlu0 %861
  %864 = vst.msk [vmem:[#allocation4 + $0x20] sm:$0xff] %vm202, %v862
  %866 = vrot.lane.b32.xlu0 %v859, 64
  %v867 = vpop.permute.xlu0 %866
  %869 = vst.msk [vmem:[#allocation4 + $0x18] sm:$0xff] %vm332, %v867
  %v870 = vld [vmem:[#allocation2 + $0x28] sm:$0xff]
  %v871 = vsel %vm202, %v862, 0
  %873 = vmatpush.msra.mxu0 0.0
  %874 = vmatpush.msra.mxu0 0.0
  %875 = vmatpush.msra.mxu0 0.0
  %876 = vmatpush.msra.mxu0 0.0
  %877 = vmatpush.msra.mxu0 0.0
  %878 = vmatpush.msra.mxu0 0.0
  %879 = vmatpush.msra.mxu0 0.0
  %880 = vmatpush.msra.mxu0 0.0
  %881 = vmatpush.msra.mxu0 0.0
  %882 = vmatpush.msra.mxu0 0.0
  %883 = vmatpush.msra.mxu0 0.0
  %884 = vmatpush.msra.mxu0 0.0
  %885 = vmatpush.msra.mxu0 %v196
  %886 = vmatpush.msra.mxu0 %v195
  %887 = vmatpush.msra.mxu0 %v194
  %888 = vmatpush.msra.mxu0 %v193
  %889 = vmatmul.f32.gmra.mxu0 %v871
  %v890 = vpop.f32.mrf.mxu0
  %v891 = vadd.f32 0.0, %v890
  %892 = vdwg.mxu0
  %v893 = vadd.f32 %v870, %v891
  %v894 = vld [vmem:[#allocation3 + $0x10] sm:$0xff]
  %895 = vrot.lane.b32.xlu0 %v859, 32
  %v896 = vpop.permute.xlu0 %895
  %v897 = vsel %vm202, %v896, 0
  %899 = vmatpush.msra.mxu0 0.0
  %900 = vmatpush.msra.mxu0 0.0
  %901 = vmatpush.msra.mxu0 0.0
  %902 = vmatpush.msra.mxu0 0.0
  %903 = vmatpush.msra.mxu0 0.0
  %904 = vmatpush.msra.mxu0 0.0
  %905 = vmatpush.msra.mxu0 0.0
  %906 = vmatpush.msra.mxu0 0.0
  %907 = vmatpush.msra.mxu0 0.0
  %908 = vmatpush.msra.mxu0 0.0
  %909 = vmatpush.msra.mxu0 0.0
  %910 = vmatpush.msra.mxu0 0.0
  %911 = vmatpush.msra.mxu0 %v200
  %912 = vmatpush.msra.mxu0 %v199
  %913 = vmatpush.msra.mxu0 %v198
  %914 = vmatpush.msra.mxu0 %v197
  %915 = vmatmul.f32.gmra.mxu0 %v897
  %v916 = vpop.f32.mrf.mxu0
  %v917 = vadd.f32 0.0, %v916
  %918 = vdwg.mxu0
  %v919 = vadd.f32 %v894, %v917
  %v920 = vxor.u32 %v893, 2147483648
  %v921 = vmul.f32 %v920, 1.442695
  %v922 = vpow.pop %v921
  %v923 = vadd.f32 %v922, 1.0
  %v924 = vrcp.pop %v923
  %v925 = vmul.f32 %v923, %v924
  %v926 = vsub.f32 1.0, %v925
  %v927 = vmul.f32 %v924, %v926
  %v928 = vadd.f32 %v924, %v927
  %vm929 = vweird.f32 %v923
  %vm930 = vweird.f32 %v924
  %vm931 = vmor %vm929, %vm930
  %v932 = vsel %vm931, %v924, %v928
  %v933 = vand.u32 2147483647, %v923
  %vm934 = vcmp.eq.f32.partialorder %v933, 8.507059e+37
  %v935 = vand.u32 %v923, 2147483648
  %v936 = vor.u32 1.1754944e-38, %v935
  %v937 = vsel %vm934, %v936, %v932
  %v938 = vmul.f32 1.0, %v937
  %v939 = vtanh.pop %v893
  %v940 = vxor.u32 %v919, 2147483648
  %v941 = vmul.f32 %v940, 1.442695
  %v942 = vpow.pop %v941
  %v943 = vadd.f32 %v942, 1.0
  %v944 = vrcp.pop %v943
  %v945 = vmul.f32 %v943, %v944
  %v946 = vsub.f32 1.0, %v945
  %v947 = vmul.f32 %v944, %v946
  %v948 = vadd.f32 %v944, %v947
  %vm949 = vweird.f32 %v943
  %vm950 = vweird.f32 %v944
  %vm951 = vmor %vm949, %vm950
  %v952 = vsel %vm951, %v944, %v948
  %v953 = vand.u32 2147483647, %v943
  %vm954 = vcmp.eq.f32.partialorder %v953, 8.507059e+37
  %v955 = vand.u32 %v943, 2147483648
  %v956 = vor.u32 1.1754944e-38, %v955
  %v957 = vsel %vm954, %v956, %v952
  %v958 = vmul.f32 1.0, %v957
  %v959 = vtanh.pop %v919
  %v960 = vmul.f32 %v938, %v836
  %962 = vrot.lane.b32.xlu0 %v939, 64
  %v963 = vpop.permute.xlu0 %962
  %v965 = vmul.f32 %v938, %v963
  %967 = vrot.lane.b32.xlu0 %v965, 32
  %v968 = vpop.permute.xlu0 %967
  %v970 = vadd.f32 %v960, %v968
  %v971 = vtanh.pop %v970
  %973 = vrot.lane.b32.xlu0 %v971, 64
  %v974 = vpop.permute.xlu0 %973
  %v976 = vmul.f32 %v938, %v974
  %v977 = vmul.f32 %v958, %v853
  %979 = vrot.lane.b32.xlu0 %v959, 64
  %v980 = vpop.permute.xlu0 %979
  %v982 = vmul.f32 %v958, %v980
  %984 = vrot.lane.b32.xlu0 %v982, 32
  %v985 = vpop.permute.xlu0 %984
  %v987 = vadd.f32 %v977, %v985
  %v988 = vtanh.pop %v987
  %990 = vrot.lane.b32.xlu0 %v988, 64
  %v991 = vpop.permute.xlu0 %990
  %v993 = vmul.f32 %v958, %v991
  %995 = vrot.lane.b32.xlu0 %v976, 32
  %v996 = vpop.permute.xlu0 %995
  %998 = vst.msk [vmem:[#allocation4 + $0x28] sm:$0xff] %vm202, %v996
  %1000 = vrot.lane.b32.xlu0 %v993, 64
  %v1001 = vpop.permute.xlu0 %1000
  %1003 = vst.msk [vmem:[#allocation4 + $0x10] sm:$0xff] %vm332, %v1001
  %v1004 = vld [vmem:[#allocation2 + $0x30] sm:$0xff]
  %v1005 = vsel %vm202, %v996, 0
  %1007 = vmatpush.msra.mxu0 0.0
  %1008 = vmatpush.msra.mxu0 0.0
  %1009 = vmatpush.msra.mxu0 0.0
  %1010 = vmatpush.msra.mxu0 0.0
  %1011 = vmatpush.msra.mxu0 0.0
  %1012 = vmatpush.msra.mxu0 0.0
  %1013 = vmatpush.msra.mxu0 0.0
  %1014 = vmatpush.msra.mxu0 0.0
  %1015 = vmatpush.msra.mxu0 0.0
  %1016 = vmatpush.msra.mxu0 0.0
  %1017 = vmatpush.msra.mxu0 0.0
  %1018 = vmatpush.msra.mxu0 0.0
  %1019 = vmatpush.msra.mxu0 %v196
  %1020 = vmatpush.msra.mxu0 %v195
  %1021 = vmatpush.msra.mxu0 %v194
  %1022 = vmatpush.msra.mxu0 %v193
  %1023 = vmatmul.f32.gmra.mxu0 %v1005
  %v1024 = vpop.f32.mrf.mxu0
  %v1025 = vadd.f32 0.0, %v1024
  %1026 = vdwg.mxu0
  %v1027 = vadd.f32 %v1004, %v1025
  %v1028 = vld [vmem:[#allocation3 + $0x8] sm:$0xff]
  %1029 = vrot.lane.b32.xlu0 %v993, 32
  %v1030 = vpop.permute.xlu0 %1029
  %v1031 = vsel %vm202, %v1030, 0
  %1033 = vmatpush.msra.mxu0 0.0
  %1034 = vmatpush.msra.mxu0 0.0
  %1035 = vmatpush.msra.mxu0 0.0
  %1036 = vmatpush.msra.mxu0 0.0
  %1037 = vmatpush.msra.mxu0 0.0
  %1038 = vmatpush.msra.mxu0 0.0
  %1039 = vmatpush.msra.mxu0 0.0
  %1040 = vmatpush.msra.mxu0 0.0
  %1041 = vmatpush.msra.mxu0 0.0
  %1042 = vmatpush.msra.mxu0 0.0
  %1043 = vmatpush.msra.mxu0 0.0
  %1044 = vmatpush.msra.mxu0 0.0
  %1045 = vmatpush.msra.mxu0 %v200
  %1046 = vmatpush.msra.mxu0 %v199
  %1047 = vmatpush.msra.mxu0 %v198
  %1048 = vmatpush.msra.mxu0 %v197
  %1049 = vmatmul.f32.gmra.mxu0 %v1031
  %v1050 = vpop.f32.mrf.mxu0
  %v1051 = vadd.f32 0.0, %v1050
  %1052 = vdwg.mxu0
  %v1053 = vadd.f32 %v1028, %v1051
  %v1054 = vxor.u32 %v1027, 2147483648
  %v1055 = vmul.f32 %v1054, 1.442695
  %v1056 = vpow.pop %v1055
  %v1057 = vadd.f32 %v1056, 1.0
  %v1058 = vrcp.pop %v1057
  %v1059 = vmul.f32 %v1057, %v1058
  %v1060 = vsub.f32 1.0, %v1059
  %v1061 = vmul.f32 %v1058, %v1060
  %v1062 = vadd.f32 %v1058, %v1061
  %vm1063 = vweird.f32 %v1057
  %vm1064 = vweird.f32 %v1058
  %vm1065 = vmor %vm1063, %vm1064
  %v1066 = vsel %vm1065, %v1058, %v1062
  %v1067 = vand.u32 2147483647, %v1057
  %vm1068 = vcmp.eq.f32.partialorder %v1067, 8.507059e+37
  %v1069 = vand.u32 %v1057, 2147483648
  %v1070 = vor.u32 1.1754944e-38, %v1069
  %v1071 = vsel %vm1068, %v1070, %v1066
  %v1072 = vmul.f32 1.0, %v1071
  %v1073 = vtanh.pop %v1027
  %v1074 = vxor.u32 %v1053, 2147483648
  %v1075 = vmul.f32 %v1074, 1.442695
  %v1076 = vpow.pop %v1075
  %v1077 = vadd.f32 %v1076, 1.0
  %v1078 = vrcp.pop %v1077
  %v1079 = vmul.f32 %v1077, %v1078
  %v1080 = vsub.f32 1.0, %v1079
  %v1081 = vmul.f32 %v1078, %v1080
  %v1082 = vadd.f32 %v1078, %v1081
  %vm1083 = vweird.f32 %v1077
  %vm1084 = vweird.f32 %v1078
  %vm1085 = vmor %vm1083, %vm1084
  %v1086 = vsel %vm1085, %v1078, %v1082
  %v1087 = vand.u32 2147483647, %v1077
  %vm1088 = vcmp.eq.f32.partialorder %v1087, 8.507059e+37
  %v1089 = vand.u32 %v1077, 2147483648
  %v1090 = vor.u32 1.1754944e-38, %v1089
  %v1091 = vsel %vm1088, %v1090, %v1086
  %v1092 = vmul.f32 1.0, %v1091
  %v1093 = vtanh.pop %v1053
  %v1094 = vmul.f32 %v1072, %v970
  %1096 = vrot.lane.b32.xlu0 %v1073, 64
  %v1097 = vpop.permute.xlu0 %1096
  %v1099 = vmul.f32 %v1072, %v1097
  %1101 = vrot.lane.b32.xlu0 %v1099, 32
  %v1102 = vpop.permute.xlu0 %1101
  %v1104 = vadd.f32 %v1094, %v1102
  %v1105 = vtanh.pop %v1104
  %1107 = vrot.lane.b32.xlu0 %v1105, 64
  %v1108 = vpop.permute.xlu0 %1107
  %v1110 = vmul.f32 %v1072, %v1108
  %v1111 = vmul.f32 %v1092, %v987
  %1113 = vrot.lane.b32.xlu0 %v1093, 64
  %v1114 = vpop.permute.xlu0 %1113
  %v1116 = vmul.f32 %v1092, %v1114
  %1118 = vrot.lane.b32.xlu0 %v1116, 32
  %v1119 = vpop.permute.xlu0 %1118
  %v1121 = vadd.f32 %v1111, %v1119
  %v1122 = vtanh.pop %v1121
  %1124 = vrot.lane.b32.xlu0 %v1122, 64
  %v1125 = vpop.permute.xlu0 %1124
  %v1127 = vmul.f32 %v1092, %v1125
  %1129 = vrot.lane.b32.xlu0 %v1110, 32
  %v1130 = vpop.permute.xlu0 %1129
  %1132 = vst.msk [vmem:[#allocation4 + $0x30] sm:$0xff] %vm202, %v1130
  %1134 = vrot.lane.b32.xlu0 %v1127, 64
  %v1135 = vpop.permute.xlu0 %1134
  %1137 = vst.msk [vmem:[#allocation4 + $0x8] sm:$0xff] %vm332, %v1135
  %v1138 = vld [vmem:[#allocation2 + $0x38] sm:$0xff]
  %v1139 = vsel %vm202, %v1130, 0
  %1141 = vmatpush.msra.mxu0 0.0
  %1142 = vmatpush.msra.mxu0 0.0
  %1143 = vmatpush.msra.mxu0 0.0
  %1144 = vmatpush.msra.mxu0 0.0
  %1145 = vmatpush.msra.mxu0 0.0
  %1146 = vmatpush.msra.mxu0 0.0
  %1147 = vmatpush.msra.mxu0 0.0
  %1148 = vmatpush.msra.mxu0 0.0
  %1149 = vmatpush.msra.mxu0 0.0
  %1150 = vmatpush.msra.mxu0 0.0
  %1151 = vmatpush.msra.mxu0 0.0
  %1152 = vmatpush.msra.mxu0 0.0
  %1153 = vmatpush.msra.mxu0 %v196
  %1154 = vmatpush.msra.mxu0 %v195
  %1155 = vmatpush.msra.mxu0 %v194
  %1156 = vmatpush.msra.mxu0 %v193
  %1157 = vmatmul.f32.gmra.mxu0 %v1139
  %v1158 = vpop.f32.mrf.mxu0
  %v1159 = vadd.f32 0.0, %v1158
  %1160 = vdwg.mxu0
  %v1161 = vadd.f32 %v1138, %v1159
  %v1162 = vld [vmem:[#allocation3] sm:$0xff]
  %1163 = vrot.lane.b32.xlu0 %v1127, 32
  %v1164 = vpop.permute.xlu0 %1163
  %v1165 = vsel %vm202, %v1164, 0
  %1167 = vmatpush.msra.mxu0 0.0
  %1168 = vmatpush.msra.mxu0 0.0
  %1169 = vmatpush.msra.mxu0 0.0
  %1170 = vmatpush.msra.mxu0 0.0
  %1171 = vmatpush.msra.mxu0 0.0
  %1172 = vmatpush.msra.mxu0 0.0
  %1173 = vmatpush.msra.mxu0 0.0
  %1174 = vmatpush.msra.mxu0 0.0
  %1175 = vmatpush.msra.mxu0 0.0
  %1176 = vmatpush.msra.mxu0 0.0
  %1177 = vmatpush.msra.mxu0 0.0
  %1178 = vmatpush.msra.mxu0 0.0
  %1179 = vmatpush.msra.mxu0 %v200
  %1180 = vmatpush.msra.mxu0 %v199
  %1181 = vmatpush.msra.mxu0 %v198
  %1182 = vmatpush.msra.mxu0 %v197
  %1183 = vmatmul.f32.gmra.mxu0 %v1165
  %v1184 = vpop.f32.mrf.mxu0
  %v1185 = vadd.f32 0.0, %v1184
  %1186 = vdwg.mxu0
  %v1187 = vadd.f32 %v1162, %v1185
  %v1188 = vxor.u32 %v1161, 2147483648
  %v1189 = vmul.f32 %v1188, 1.442695
  %v1190 = vpow.pop %v1189
  %v1191 = vadd.f32 %v1190, 1.0
  %v1192 = vrcp.pop %v1191
  %v1193 = vmul.f32 %v1191, %v1192
  %v1194 = vsub.f32 1.0, %v1193
  %v1195 = vmul.f32 %v1192, %v1194
  %v1196 = vadd.f32 %v1192, %v1195
  %vm1197 = vweird.f32 %v1191
  %vm1198 = vweird.f32 %v1192
  %vm1199 = vmor %vm1197, %vm1198
  %v1200 = vsel %vm1199, %v1192, %v1196
  %v1201 = vand.u32 2147483647, %v1191
  %vm1202 = vcmp.eq.f32.partialorder %v1201, 8.507059e+37
  %v1203 = vand.u32 %v1191, 2147483648
  %v1204 = vor.u32 1.1754944e-38, %v1203
  %v1205 = vsel %vm1202, %v1204, %v1200
  %v1206 = vmul.f32 1.0, %v1205
  %v1207 = vtanh.pop %v1161
  %v1208 = vxor.u32 %v1187, 2147483648
  %v1209 = vmul.f32 %v1208, 1.442695
  %v1210 = vpow.pop %v1209
  %v1211 = vadd.f32 %v1210, 1.0
  %v1212 = vrcp.pop %v1211
  %v1213 = vmul.f32 %v1211, %v1212
  %v1214 = vsub.f32 1.0, %v1213
  %v1215 = vmul.f32 %v1212, %v1214
  %v1216 = vadd.f32 %v1212, %v1215
  %vm1217 = vweird.f32 %v1211
  %vm1218 = vweird.f32 %v1212
  %vm1219 = vmor %vm1217, %vm1218
  %v1220 = vsel %vm1219, %v1212, %v1216
  %v1221 = vand.u32 2147483647, %v1211
  %vm1222 = vcmp.eq.f32.partialorder %v1221, 8.507059e+37
  %v1223 = vand.u32 %v1211, 2147483648
  %v1224 = vor.u32 1.1754944e-38, %v1223
  %v1225 = vsel %vm1222, %v1224, %v1220
  %v1226 = vmul.f32 1.0, %v1225
  %v1227 = vtanh.pop %v1187
  %v1228 = vmul.f32 %v1206, %v1104
  %1230 = vrot.lane.b32.xlu0 %v1207, 64
  %v1231 = vpop.permute.xlu0 %1230
  %v1233 = vmul.f32 %v1206, %v1231
  %1235 = vrot.lane.b32.xlu0 %v1233, 32
  %v1236 = vpop.permute.xlu0 %1235
  %v1238 = vadd.f32 %v1228, %v1236
  %v1239 = vtanh.pop %v1238
  %1241 = vrot.lane.b32.xlu0 %v1239, 64
  %v1242 = vpop.permute.xlu0 %1241
  %v1244 = vmul.f32 %v1206, %v1242
  %v1245 = vmul.f32 %v1226, %v1121
  %1247 = vrot.lane.b32.xlu0 %v1227, 64
  %v1248 = vpop.permute.xlu0 %1247
  %v1250 = vmul.f32 %v1226, %v1248
  %1252 = vrot.lane.b32.xlu0 %v1250, 32
  %v1253 = vpop.permute.xlu0 %1252
  %v1255 = vadd.f32 %v1245, %v1253
  %v1256 = vtanh.pop %v1255
  %1258 = vrot.lane.b32.xlu0 %v1256, 64
  %v1259 = vpop.permute.xlu0 %1258
  %v1261 = vmul.f32 %v1226, %v1259
  %1263 = vrot.lane.b32.xlu0 %v1244, 32
  %v1264 = vpop.permute.xlu0 %1263
  %1266 = vst.msk [vmem:[#allocation4 + $0x38] sm:$0xff] %vm202, %v1264
  %1268 = vrot.lane.b32.xlu0 %v1261, 64
  %v1269 = vpop.permute.xlu0 %1268
  %1271 = vst.msk [vmem:[#allocation4] sm:$0xff] %vm332, %v1269
  %v1272 = vld [vmem:[#allocation4] sm:$0xff]
  %v1273 = vld [vmem:[#allocation4 + $0x8] sm:$0xff]
  %v1274 = vld [vmem:[#allocation4 + $0x10] sm:$0xff]
  %v1275 = vld [vmem:[#allocation4 + $0x18] sm:$0xff]
  %v1276 = vld [vmem:[#allocation4 + $0x20] sm:$0xff]
  %v1277 = vld [vmem:[#allocation4 + $0x28] sm:$0xff]
  %v1278 = vld [vmem:[#allocation4 + $0x30] sm:$0xff]
  %v1279 = vld [vmem:[#allocation4 + $0x38] sm:$0xff]
  %v1280 = vld [vmem:[%s7] sm:$0xff]
  %v1281 = vld [vmem:[%s7 + $0x8] sm:$0xff]
  %v1282 = vld [vmem:[%s7 + $0x10] sm:$0xff]
  %v1283 = vld [vmem:[%s7 + $0x18] sm:$0xff]
  %v1284 = vld [vmem:[%s7 + $0x20] sm:$0xff]
  %v1285 = vld [vmem:[%s7 + $0x28] sm:$0xff]
  %v1286 = vld [vmem:[%s7 + $0x30] sm:$0xff]
  %v1287 = vld [vmem:[%s7 + $0x38] sm:$0xff]
  %v1288 = vld [vmem:[%s9] sm:$0x1]
  %v1290 = vperm.slane %v1288, 0
  %vm1292 = vcmask 523264
  %v1294 = vsel %vm1292, %v1272, 0
  %v1297 = vsel %vm1292, %v1273, 0
  %v1300 = vsel %vm1292, %v1274, 0
  %v1303 = vsel %vm1292, %v1275, 0
  %v1306 = vsel %vm1292, %v1276, 0
  %v1309 = vsel %vm1292, %v1277, 0
  %v1312 = vsel %vm1292, %v1278, 0
  %v1315 = vsel %vm1292, %v1279, 0
  %1317 = vmatpush.msra.mxu0 0.0
  %1318 = vmatpush.msra.mxu0 0.0
  %1319 = vmatpush.msra.mxu0 0.0
  %1320 = vmatpush.msra.mxu0 0.0
  %1321 = vmatpush.msra.mxu0 0.0
  %1322 = vmatpush.msra.mxu0 0.0
  %1323 = vmatpush.msra.mxu0 0.0
  %1324 = vmatpush.msra.mxu0 0.0
  %1325 = vmatpush.msra.mxu0 %v1287
  %1326 = vmatpush.msra.mxu0 %v1286
  %1327 = vmatpush.msra.mxu0 %v1285
  %1328 = vmatpush.msra.mxu0 %v1284
  %1329 = vmatpush.msra.mxu0 %v1283
  %1330 = vmatpush.msra.mxu0 %v1282
  %1331 = vmatpush.msra.mxu0 %v1281
  %1332 = vmatpush.msra.mxu0 %v1280
  %1333 = vmatmul.f32.gmra.mxu0 %v1294
  %v1334 = vpop.f32.mrf.mxu0
  %v1335 = vadd.f32 %v1290, %v1334
  %1336 = vmatmul.f32.gmra.mxu0 %v1297
  %v1337 = vpop.f32.mrf.mxu0
  %v1338 = vadd.f32 %v1290, %v1337
  %1339 = vmatmul.f32.gmra.mxu0 %v1300
  %v1340 = vpop.f32.mrf.mxu0
  %v1341 = vadd.f32 %v1290, %v1340
  %1342 = vmatmul.f32.gmra.mxu0 %v1303
  %v1343 = vpop.f32.mrf.mxu0
  %v1344 = vadd.f32 %v1290, %v1343
  %1345 = vmatmul.f32.gmra.mxu0 %v1306
  %v1346 = vpop.f32.mrf.mxu0
  %v1347 = vadd.f32 %v1290, %v1346
  %1348 = vmatmul.f32.gmra.mxu0 %v1309
  %v1349 = vpop.f32.mrf.mxu0
  %v1350 = vadd.f32 %v1290, %v1349
  %1351 = vmatmul.f32.gmra.mxu0 %v1312
  %v1352 = vpop.f32.mrf.mxu0
  %v1353 = vadd.f32 %v1290, %v1352
  %1354 = vmatmul.f32.gmra.mxu0 %v1315
  %v1355 = vpop.f32.mrf.mxu0
  %v1356 = vadd.f32 %v1290, %v1355
  %1357 = vdwg.mxu0
  %1358 = vst [vmem:[#allocation2] sm:$0xff] %v1335
  %1359 = vst [vmem:[#allocation2 + $0x8] sm:$0xff] %v1338
  %1360 = vst [vmem:[#allocation2 + $0x10] sm:$0xff] %v1341
  %1361 = vst [vmem:[#allocation2 + $0x18] sm:$0xff] %v1344
  %1362 = vst [vmem:[#allocation2 + $0x20] sm:$0xff] %v1347
  %1363 = vst [vmem:[#allocation2 + $0x28] sm:$0xff] %v1350
  %1364 = vst [vmem:[#allocation2 + $0x30] sm:$0xff] %v1353
  %1365 = vst [vmem:[#allocation2 + $0x38] sm:$0xff] %v1356
  %v1366 = vld [vmem:[%s10] sm:$0xff]
  %v1367 = vld [vmem:[%s10 + $0x8] sm:$0xff]
  %v1368 = vld [vmem:[%s10 + $0x10] sm:$0xff]
  %v1369 = vld [vmem:[%s10 + $0x18] sm:$0xff]
  %v1370 = vld [vmem:[%s10 + $0x20] sm:$0xff]
  %v1371 = vld [vmem:[%s10 + $0x28] sm:$0xff]
  %v1372 = vld [vmem:[%s10 + $0x30] sm:$0xff]
  %v1373 = vld [vmem:[%s10 + $0x38] sm:$0xff]
  %v1374 = vld [vmem:[%s12] sm:$0x1]
  %v1376 = vperm.slane %v1374, 0
  %1378 = vmatpush.msra.mxu0 0.0
  %1379 = vmatpush.msra.mxu0 0.0
  %1380 = vmatpush.msra.mxu0 0.0
  %1381 = vmatpush.msra.mxu0 0.0
  %1382 = vmatpush.msra.mxu0 0.0
  %1383 = vmatpush.msra.mxu0 0.0
  %1384 = vmatpush.msra.mxu0 0.0
  %1385 = vmatpush.msra.mxu0 0.0
  %1386 = vmatpush.msra.mxu0 %v1373
  %1387 = vmatpush.msra.mxu0 %v1372
  %1388 = vmatpush.msra.mxu0 %v1371
  %1389 = vmatpush.msra.mxu0 %v1370
  %1390 = vmatpush.msra.mxu0 %v1369
  %1391 = vmatpush.msra.mxu0 %v1368
  %1392 = vmatpush.msra.mxu0 %v1367
  %1393 = vmatpush.msra.mxu0 %v1366
  %1394 = vmatmul.f32.gmra.mxu0 %v1294
  %v1395 = vpop.f32.mrf.mxu0
  %v1396 = vadd.f32 %v1376, %v1395
  %1397 = vmatmul.f32.gmra.mxu0 %v1297
  %v1398 = vpop.f32.mrf.mxu0
  %v1399 = vadd.f32 %v1376, %v1398
  %1400 = vmatmul.f32.gmra.mxu0 %v1300
  %v1401 = vpop.f32.mrf.mxu0
  %v1402 = vadd.f32 %v1376, %v1401
  %1403 = vmatmul.f32.gmra.mxu0 %v1303
  %v1404 = vpop.f32.mrf.mxu0
  %v1405 = vadd.f32 %v1376, %v1404
  %1406 = vmatmul.f32.gmra.mxu0 %v1306
  %v1407 = vpop.f32.mrf.mxu0
  %v1408 = vadd.f32 %v1376, %v1407
  %1409 = vmatmul.f32.gmra.mxu0 %v1309
  %v1410 = vpop.f32.mrf.mxu0
  %v1411 = vadd.f32 %v1376, %v1410
  %1412 = vmatmul.f32.gmra.mxu0 %v1312
  %v1413 = vpop.f32.mrf.mxu0
  %v1414 = vadd.f32 %v1376, %v1413
  %1415 = vmatmul.f32.gmra.mxu0 %v1315
  %v1416 = vpop.f32.mrf.mxu0
  %v1417 = vadd.f32 %v1376, %v1416
  %1418 = vdwg.mxu0
  %1419 = vst [vmem:[#allocation3] sm:$0xff] %v1396
  %1420 = vst [vmem:[#allocation3 + $0x8] sm:$0xff] %v1399
  %1421 = vst [vmem:[#allocation3 + $0x10] sm:$0xff] %v1402
  %1422 = vst [vmem:[#allocation3 + $0x18] sm:$0xff] %v1405
  %1423 = vst [vmem:[#allocation3 + $0x20] sm:$0xff] %v1408
  %1424 = vst [vmem:[#allocation3 + $0x28] sm:$0xff] %v1411
  %1425 = vst [vmem:[#allocation3 + $0x30] sm:$0xff] %v1414
  %1426 = vst [vmem:[#allocation3 + $0x38] sm:$0xff] %v1417
  %v1427 = vld [vmem:[%s8] sm:$0xff]
  %v1428 = vld [vmem:[%s8 + $0x8] sm:$0xff]
  %v1429 = vld [vmem:[%s8 + $0x10] sm:$0xff]
  %v1430 = vld [vmem:[%s8 + $0x18] sm:$0xff]
  %v1431 = vld [vmem:[%s11] sm:$0xff]
  %v1432 = vld [vmem:[%s11 + $0x8] sm:$0xff]
  %v1433 = vld [vmem:[%s11 + $0x10] sm:$0xff]
  %v1434 = vld [vmem:[%s11 + $0x18] sm:$0xff]
  %v1435 = vld [vmem:[#allocation2] sm:$0xff]
  %1436 = vmatpush.msra.mxu0 0.0
  %1437 = vmatpush.msra.mxu0 0.0
  %1438 = vmatpush.msra.mxu0 0.0
  %1439 = vmatpush.msra.mxu0 0.0
  %1440 = vmatpush.msra.mxu0 0.0
  %1441 = vmatpush.msra.mxu0 0.0
  %1442 = vmatpush.msra.mxu0 0.0
  %1443 = vmatpush.msra.mxu0 0.0
  %1444 = vmatpush.msra.mxu0 0.0
  %1445 = vmatpush.msra.mxu0 0.0
  %1446 = vmatpush.msra.mxu0 0.0
  %1447 = vmatpush.msra.mxu0 0.0
  %1448 = vmatpush.msra.mxu0 %v1430
  %1449 = vmatpush.msra.mxu0 %v1429
  %1450 = vmatpush.msra.mxu0 %v1428
  %1451 = vmatpush.msra.mxu0 %v1427
  %1452 = vmatmul.f32.gmra.mxu0 %v204
  %v1453 = vpop.f32.mrf.mxu0
  %v1454 = vadd.f32 0.0, %v1453
  %1455 = vdwg.mxu0
  %v1456 = vadd.f32 %v1435, %v1454
  %v1457 = vld [vmem:[#allocation3 + $0x38] sm:$0xff]
  %1458 = vmatpush.msra.mxu0 0.0
  %1459 = vmatpush.msra.mxu0 0.0
  %1460 = vmatpush.msra.mxu0 0.0
  %1461 = vmatpush.msra.mxu0 0.0
  %1462 = vmatpush.msra.mxu0 0.0
  %1463 = vmatpush.msra.mxu0 0.0
  %1464 = vmatpush.msra.mxu0 0.0
  %1465 = vmatpush.msra.mxu0 0.0
  %1466 = vmatpush.msra.mxu0 0.0
  %1467 = vmatpush.msra.mxu0 0.0
  %1468 = vmatpush.msra.mxu0 0.0
  %1469 = vmatpush.msra.mxu0 0.0
  %1470 = vmatpush.msra.mxu0 %v1434
  %1471 = vmatpush.msra.mxu0 %v1433
  %1472 = vmatpush.msra.mxu0 %v1432
  %1473 = vmatpush.msra.mxu0 %v1431
  %1474 = vmatmul.f32.gmra.mxu0 %v204
  %v1475 = vpop.f32.mrf.mxu0
  %v1476 = vadd.f32 0.0, %v1475
  %1477 = vdwg.mxu0
  %v1478 = vadd.f32 %v1457, %v1476
  %v1479 = vxor.u32 %v1456, 2147483648
  %v1480 = vmul.f32 %v1479, 1.442695
  %v1481 = vpow.pop %v1480
  %v1482 = vadd.f32 %v1481, 1.0
  %v1483 = vrcp.pop %v1482
  %v1484 = vmul.f32 %v1482, %v1483
  %v1485 = vsub.f32 1.0, %v1484
  %v1486 = vmul.f32 %v1483, %v1485
  %v1487 = vadd.f32 %v1483, %v1486
  %vm1488 = vweird.f32 %v1482
  %vm1489 = vweird.f32 %v1483
  %vm1490 = vmor %vm1488, %vm1489
  %v1491 = vsel %vm1490, %v1483, %v1487
  %v1492 = vand.u32 2147483647, %v1482
  %vm1493 = vcmp.eq.f32.partialorder %v1492, 8.507059e+37
  %v1494 = vand.u32 %v1482, 2147483648
  %v1495 = vor.u32 1.1754944e-38, %v1494
  %v1496 = vsel %vm1493, %v1495, %v1491
  %v1497 = vmul.f32 1.0, %v1496
  %v1498 = vtanh.pop %v1456
  %v1499 = vxor.u32 %v1478, 2147483648
  %v1500 = vmul.f32 %v1499, 1.442695
  %v1501 = vpow.pop %v1500
  %v1502 = vadd.f32 %v1501, 1.0
  %v1503 = vrcp.pop %v1502
  %v1504 = vmul.f32 %v1502, %v1503
  %v1505 = vsub.f32 1.0, %v1504
  %v1506 = vmul.f32 %v1503, %v1505
  %v1507 = vadd.f32 %v1503, %v1506
  %vm1508 = vweird.f32 %v1502
  %vm1509 = vweird.f32 %v1503
  %vm1510 = vmor %vm1508, %vm1509
  %v1511 = vsel %vm1510, %v1503, %v1507
  %v1512 = vand.u32 2147483647, %v1502
  %vm1513 = vcmp.eq.f32.partialorder %v1512, 8.507059e+37
  %v1514 = vand.u32 %v1502, 2147483648
  %v1515 = vor.u32 1.1754944e-38, %v1514
  %v1516 = vsel %vm1513, %v1515, %v1511
  %v1517 = vmul.f32 1.0, %v1516
  %v1518 = vtanh.pop %v1478
  %v1519 = vmul.f32 %v1497, 0.0
  %1521 = vrot.lane.b32.xlu0 %v1498, 64
  %v1522 = vpop.permute.xlu0 %1521
  %v1524 = vmul.f32 %v1497, %v1522
  %1526 = vrot.lane.b32.xlu0 %v1524, 32
  %v1527 = vpop.permute.xlu0 %1526
  %v1529 = vadd.f32 %v1519, %v1527
  %v1530 = vtanh.pop %v1529
  %1532 = vrot.lane.b32.xlu0 %v1530, 64
  %v1533 = vpop.permute.xlu0 %1532
  %v1535 = vmul.f32 %v1497, %v1533
  %v1536 = vmul.f32 %v1517, 0.0
  %1538 = vrot.lane.b32.xlu0 %v1518, 64
  %v1539 = vpop.permute.xlu0 %1538
  %v1541 = vmul.f32 %v1517, %v1539
  %1543 = vrot.lane.b32.xlu0 %v1541, 32
  %v1544 = vpop.permute.xlu0 %1543
  %v1546 = vadd.f32 %v1536, %v1544
  %v1547 = vtanh.pop %v1546
  %1549 = vrot.lane.b32.xlu0 %v1547, 64
  %v1550 = vpop.permute.xlu0 %1549
  %v1552 = vmul.f32 %v1517, %v1550
  %1554 = vrot.lane.b32.xlu0 %v1535, 32
  %v1555 = vpop.permute.xlu0 %1554
  %1557 = vst.msk [vmem:[#allocation5] sm:$0xff] %vm202, %v1555
  %1559 = vrot.lane.b32.xlu0 %v1552, 64
  %v1560 = vpop.permute.xlu0 %1559
  %1562 = vst.msk [vmem:[#allocation5 + $0x38] sm:$0xff] %vm332, %v1560
  %v1563 = vld [vmem:[#allocation2 + $0x8] sm:$0xff]
  %v1564 = vsel %vm202, %v1555, 0
  %1566 = vmatpush.msra.mxu0 0.0
  %1567 = vmatpush.msra.mxu0 0.0
  %1568 = vmatpush.msra.mxu0 0.0
  %1569 = vmatpush.msra.mxu0 0.0
  %1570 = vmatpush.msra.mxu0 0.0
  %1571 = vmatpush.msra.mxu0 0.0
  %1572 = vmatpush.msra.mxu0 0.0
  %1573 = vmatpush.msra.mxu0 0.0
  %1574 = vmatpush.msra.mxu0 0.0
  %1575 = vmatpush.msra.mxu0 0.0
  %1576 = vmatpush.msra.mxu0 0.0
  %1577 = vmatpush.msra.mxu0 0.0
  %1578 = vmatpush.msra.mxu0 %v1430
  %1579 = vmatpush.msra.mxu0 %v1429
  %1580 = vmatpush.msra.mxu0 %v1428
  %1581 = vmatpush.msra.mxu0 %v1427
  %1582 = vmatmul.f32.gmra.mxu0 %v1564
  %v1583 = vpop.f32.mrf.mxu0
  %v1584 = vadd.f32 0.0, %v1583
  %1585 = vdwg.mxu0
  %v1586 = vadd.f32 %v1563, %v1584
  %v1587 = vld [vmem:[#allocation3 + $0x30] sm:$0xff]
  %1588 = vrot.lane.b32.xlu0 %v1552, 32
  %v1589 = vpop.permute.xlu0 %1588
  %v1590 = vsel %vm202, %v1589, 0
  %1592 = vmatpush.msra.mxu0 0.0
  %1593 = vmatpush.msra.mxu0 0.0
  %1594 = vmatpush.msra.mxu0 0.0
  %1595 = vmatpush.msra.mxu0 0.0
  %1596 = vmatpush.msra.mxu0 0.0
  %1597 = vmatpush.msra.mxu0 0.0
  %1598 = vmatpush.msra.mxu0 0.0
  %1599 = vmatpush.msra.mxu0 0.0
  %1600 = vmatpush.msra.mxu0 0.0
  %1601 = vmatpush.msra.mxu0 0.0
  %1602 = vmatpush.msra.mxu0 0.0
  %1603 = vmatpush.msra.mxu0 0.0
  %1604 = vmatpush.msra.mxu0 %v1434
  %1605 = vmatpush.msra.mxu0 %v1433
  %1606 = vmatpush.msra.mxu0 %v1432
  %1607 = vmatpush.msra.mxu0 %v1431
  %1608 = vmatmul.f32.gmra.mxu0 %v1590
  %v1609 = vpop.f32.mrf.mxu0
  %v1610 = vadd.f32 0.0, %v1609
  %1611 = vdwg.mxu0
  %v1612 = vadd.f32 %v1587, %v1610
  %v1613 = vxor.u32 %v1586, 2147483648
  %v1614 = vmul.f32 %v1613, 1.442695
  %v1615 = vpow.pop %v1614
  %v1616 = vadd.f32 %v1615, 1.0
  %v1617 = vrcp.pop %v1616
  %v1618 = vmul.f32 %v1616, %v1617
  %v1619 = vsub.f32 1.0, %v1618
  %v1620 = vmul.f32 %v1617, %v1619
  %v1621 = vadd.f32 %v1617, %v1620
  %vm1622 = vweird.f32 %v1616
  %vm1623 = vweird.f32 %v1617
  %vm1624 = vmor %vm1622, %vm1623
  %v1625 = vsel %vm1624, %v1617, %v1621
  %v1626 = vand.u32 2147483647, %v1616
  %vm1627 = vcmp.eq.f32.partialorder %v1626, 8.507059e+37
  %v1628 = vand.u32 %v1616, 2147483648
  %v1629 = vor.u32 1.1754944e-38, %v1628
  %v1630 = vsel %vm1627, %v1629, %v1625
  %v1631 = vmul.f32 1.0, %v1630
  %v1632 = vtanh.pop %v1586
  %v1633 = vxor.u32 %v1612, 2147483648
  %v1634 = vmul.f32 %v1633, 1.442695
  %v1635 = vpow.pop %v1634
  %v1636 = vadd.f32 %v1635, 1.0
  %v1637 = vrcp.pop %v1636
  %v1638 = vmul.f32 %v1636, %v1637
  %v1639 = vsub.f32 1.0, %v1638
  %v1640 = vmul.f32 %v1637, %v1639
  %v1641 = vadd.f32 %v1637, %v1640
  %vm1642 = vweird.f32 %v1636
  %vm1643 = vweird.f32 %v1637
  %vm1644 = vmor %vm1642, %vm1643
  %v1645 = vsel %vm1644, %v1637, %v1641
  %v1646 = vand.u32 2147483647, %v1636
  %vm1647 = vcmp.eq.f32.partialorder %v1646, 8.507059e+37
  %v1648 = vand.u32 %v1636, 2147483648
  %v1649 = vor.u32 1.1754944e-38, %v1648
  %v1650 = vsel %vm1647, %v1649, %v1645
  %v1651 = vmul.f32 1.0, %v1650
  %v1652 = vtanh.pop %v1612
  %v1653 = vmul.f32 %v1631, %v1529
  %1655 = vrot.lane.b32.xlu0 %v1632, 64
  %v1656 = vpop.permute.xlu0 %1655
  %v1658 = vmul.f32 %v1631, %v1656
  %1660 = vrot.lane.b32.xlu0 %v1658, 32
  %v1661 = vpop.permute.xlu0 %1660
  %v1663 = vadd.f32 %v1653, %v1661
  %v1664 = vtanh.pop %v1663
  %1666 = vrot.lane.b32.xlu0 %v1664, 64
  %v1667 = vpop.permute.xlu0 %1666
  %v1669 = vmul.f32 %v1631, %v1667
  %v1670 = vmul.f32 %v1651, %v1546
  %1672 = vrot.lane.b32.xlu0 %v1652, 64
  %v1673 = vpop.permute.xlu0 %1672
  %v1675 = vmul.f32 %v1651, %v1673
  %1677 = vrot.lane.b32.xlu0 %v1675, 32
  %v1678 = vpop.permute.xlu0 %1677
  %v1680 = vadd.f32 %v1670, %v1678
  %v1681 = vtanh.pop %v1680
  %1683 = vrot.lane.b32.xlu0 %v1681, 64
  %v1684 = vpop.permute.xlu0 %1683
  %v1686 = vmul.f32 %v1651, %v1684
  %1688 = vrot.lane.b32.xlu0 %v1669, 32
  %v1689 = vpop.permute.xlu0 %1688
  %1691 = vst.msk [vmem:[#allocation5 + $0x8] sm:$0xff] %vm202, %v1689
  %1693 = vrot.lane.b32.xlu0 %v1686, 64
  %v1694 = vpop.permute.xlu0 %1693
  %1696 = vst.msk [vmem:[#allocation5 + $0x30] sm:$0xff] %vm332, %v1694
  %v1697 = vld [vmem:[#allocation2 + $0x10] sm:$0xff]
  %v1698 = vsel %vm202, %v1689, 0
  %1700 = vmatpush.msra.mxu0 0.0
  %1701 = vmatpush.msra.mxu0 0.0
  %1702 = vmatpush.msra.mxu0 0.0
  %1703 = vmatpush.msra.mxu0 0.0
  %1704 = vmatpush.msra.mxu0 0.0
  %1705 = vmatpush.msra.mxu0 0.0
  %1706 = vmatpush.msra.mxu0 0.0
  %1707 = vmatpush.msra.mxu0 0.0
  %1708 = vmatpush.msra.mxu0 0.0
  %1709 = vmatpush.msra.mxu0 0.0
  %1710 = vmatpush.msra.mxu0 0.0
  %1711 = vmatpush.msra.mxu0 0.0
  %1712 = vmatpush.msra.mxu0 %v1430
  %1713 = vmatpush.msra.mxu0 %v1429
  %1714 = vmatpush.msra.mxu0 %v1428
  %1715 = vmatpush.msra.mxu0 %v1427
  %1716 = vmatmul.f32.gmra.mxu0 %v1698
  %v1717 = vpop.f32.mrf.mxu0
  %v1718 = vadd.f32 0.0, %v1717
  %1719 = vdwg.mxu0
  %v1720 = vadd.f32 %v1697, %v1718
  %v1721 = vld [vmem:[#allocation3 + $0x28] sm:$0xff]
  %1722 = vrot.lane.b32.xlu0 %v1686, 32
  %v1723 = vpop.permute.xlu0 %1722
  %v1724 = vsel %vm202, %v1723, 0
  %1726 = vmatpush.msra.mxu0 0.0
  %1727 = vmatpush.msra.mxu0 0.0
  %1728 = vmatpush.msra.mxu0 0.0
  %1729 = vmatpush.msra.mxu0 0.0
  %1730 = vmatpush.msra.mxu0 0.0
  %1731 = vmatpush.msra.mxu0 0.0
  %1732 = vmatpush.msra.mxu0 0.0
  %1733 = vmatpush.msra.mxu0 0.0
  %1734 = vmatpush.msra.mxu0 0.0
  %1735 = vmatpush.msra.mxu0 0.0
  %1736 = vmatpush.msra.mxu0 0.0
  %1737 = vmatpush.msra.mxu0 0.0
  %1738 = vmatpush.msra.mxu0 %v1434
  %1739 = vmatpush.msra.mxu0 %v1433
  %1740 = vmatpush.msra.mxu0 %v1432
  %1741 = vmatpush.msra.mxu0 %v1431
  %1742 = vmatmul.f32.gmra.mxu0 %v1724
  %v1743 = vpop.f32.mrf.mxu0
  %v1744 = vadd.f32 0.0, %v1743
  %1745 = vdwg.mxu0
  %v1746 = vadd.f32 %v1721, %v1744
  %v1747 = vxor.u32 %v1720, 2147483648
  %v1748 = vmul.f32 %v1747, 1.442695
  %v1749 = vpow.pop %v1748
  %v1750 = vadd.f32 %v1749, 1.0
  %v1751 = vrcp.pop %v1750
  %v1752 = vmul.f32 %v1750, %v1751
  %v1753 = vsub.f32 1.0, %v1752
  %v1754 = vmul.f32 %v1751, %v1753
  %v1755 = vadd.f32 %v1751, %v1754
  %vm1756 = vweird.f32 %v1750
  %vm1757 = vweird.f32 %v1751
  %vm1758 = vmor %vm1756, %vm1757
  %v1759 = vsel %vm1758, %v1751, %v1755
  %v1760 = vand.u32 2147483647, %v1750
  %vm1761 = vcmp.eq.f32.partialorder %v1760, 8.507059e+37
  %v1762 = vand.u32 %v1750, 2147483648
  %v1763 = vor.u32 1.1754944e-38, %v1762
  %v1764 = vsel %vm1761, %v1763, %v1759
  %v1765 = vmul.f32 1.0, %v1764
  %v1766 = vtanh.pop %v1720
  %v1767 = vxor.u32 %v1746, 2147483648
  %v1768 = vmul.f32 %v1767, 1.442695
  %v1769 = vpow.pop %v1768
  %v1770 = vadd.f32 %v1769, 1.0
  %v1771 = vrcp.pop %v1770
  %v1772 = vmul.f32 %v1770, %v1771
  %v1773 = vsub.f32 1.0, %v1772
  %v1774 = vmul.f32 %v1771, %v1773
  %v1775 = vadd.f32 %v1771, %v1774
  %vm1776 = vweird.f32 %v1770
  %vm1777 = vweird.f32 %v1771
  %vm1778 = vmor %vm1776, %vm1777
  %v1779 = vsel %vm1778, %v1771, %v1775
  %v1780 = vand.u32 2147483647, %v1770
  %vm1781 = vcmp.eq.f32.partialorder %v1780, 8.507059e+37
  %v1782 = vand.u32 %v1770, 2147483648
  %v1783 = vor.u32 1.1754944e-38, %v1782
  %v1784 = vsel %vm1781, %v1783, %v1779
  %v1785 = vmul.f32 1.0, %v1784
  %v1786 = vtanh.pop %v1746
  %v1787 = vmul.f32 %v1765, %v1663
  %1789 = vrot.lane.b32.xlu0 %v1766, 64
  %v1790 = vpop.permute.xlu0 %1789
  %v1792 = vmul.f32 %v1765, %v1790
  %1794 = vrot.lane.b32.xlu0 %v1792, 32
  %v1795 = vpop.permute.xlu0 %1794
  %v1797 = vadd.f32 %v1787, %v1795
  %v1798 = vtanh.pop %v1797
  %1800 = vrot.lane.b32.xlu0 %v1798, 64
  %v1801 = vpop.permute.xlu0 %1800
  %v1803 = vmul.f32 %v1765, %v1801
  %v1804 = vmul.f32 %v1785, %v1680
  %1806 = vrot.lane.b32.xlu0 %v1786, 64
  %v1807 = vpop.permute.xlu0 %1806
  %v1809 = vmul.f32 %v1785, %v1807
  %1811 = vrot.lane.b32.xlu0 %v1809, 32
  %v1812 = vpop.permute.xlu0 %1811
  %v1814 = vadd.f32 %v1804, %v1812
  %v1815 = vtanh.pop %v1814
  %1817 = vrot.lane.b32.xlu0 %v1815, 64
  %v1818 = vpop.permute.xlu0 %1817
  %v1820 = vmul.f32 %v1785, %v1818
  %1822 = vrot.lane.b32.xlu0 %v1803, 32
  %v1823 = vpop.permute.xlu0 %1822
  %1825 = vst.msk [vmem:[#allocation5 + $0x10] sm:$0xff] %vm202, %v1823
  %1827 = vrot.lane.b32.xlu0 %v1820, 64
  %v1828 = vpop.permute.xlu0 %1827
  %1830 = vst.msk [vmem:[#allocation5 + $0x28] sm:$0xff] %vm332, %v1828
  %v1831 = vld [vmem:[#allocation2 + $0x18] sm:$0xff]
  %v1832 = vsel %vm202, %v1823, 0
  %1834 = vmatpush.msra.mxu0 0.0
  %1835 = vmatpush.msra.mxu0 0.0
  %1836 = vmatpush.msra.mxu0 0.0
  %1837 = vmatpush.msra.mxu0 0.0
  %1838 = vmatpush.msra.mxu0 0.0
  %1839 = vmatpush.msra.mxu0 0.0
  %1840 = vmatpush.msra.mxu0 0.0
  %1841 = vmatpush.msra.mxu0 0.0
  %1842 = vmatpush.msra.mxu0 0.0
  %1843 = vmatpush.msra.mxu0 0.0
  %1844 = vmatpush.msra.mxu0 0.0
  %1845 = vmatpush.msra.mxu0 0.0
  %1846 = vmatpush.msra.mxu0 %v1430
  %1847 = vmatpush.msra.mxu0 %v1429
  %1848 = vmatpush.msra.mxu0 %v1428
  %1849 = vmatpush.msra.mxu0 %v1427
  %1850 = vmatmul.f32.gmra.mxu0 %v1832
  %v1851 = vpop.f32.mrf.mxu0
  %v1852 = vadd.f32 0.0, %v1851
  %1853 = vdwg.mxu0
  %v1854 = vadd.f32 %v1831, %v1852
  %v1855 = vld [vmem:[#allocation3 + $0x20] sm:$0xff]
  %1856 = vrot.lane.b32.xlu0 %v1820, 32
  %v1857 = vpop.permute.xlu0 %1856
  %v1858 = vsel %vm202, %v1857, 0
  %1860 = vmatpush.msra.mxu0 0.0
  %1861 = vmatpush.msra.mxu0 0.0
  %1862 = vmatpush.msra.mxu0 0.0
  %1863 = vmatpush.msra.mxu0 0.0
  %1864 = vmatpush.msra.mxu0 0.0
  %1865 = vmatpush.msra.mxu0 0.0
  %1866 = vmatpush.msra.mxu0 0.0
  %1867 = vmatpush.msra.mxu0 0.0
  %1868 = vmatpush.msra.mxu0 0.0
  %1869 = vmatpush.msra.mxu0 0.0
  %1870 = vmatpush.msra.mxu0 0.0
  %1871 = vmatpush.msra.mxu0 0.0
  %1872 = vmatpush.msra.mxu0 %v1434
  %1873 = vmatpush.msra.mxu0 %v1433
  %1874 = vmatpush.msra.mxu0 %v1432
  %1875 = vmatpush.msra.mxu0 %v1431
  %1876 = vmatmul.f32.gmra.mxu0 %v1858
  %v1877 = vpop.f32.mrf.mxu0
  %v1878 = vadd.f32 0.0, %v1877
  %1879 = vdwg.mxu0
  %v1880 = vadd.f32 %v1855, %v1878
  %v1881 = vxor.u32 %v1854, 2147483648
  %v1882 = vmul.f32 %v1881, 1.442695
  %v1883 = vpow.pop %v1882
  %v1884 = vadd.f32 %v1883, 1.0
  %v1885 = vrcp.pop %v1884
  %v1886 = vmul.f32 %v1884, %v1885
  %v1887 = vsub.f32 1.0, %v1886
  %v1888 = vmul.f32 %v1885, %v1887
  %v1889 = vadd.f32 %v1885, %v1888
  %vm1890 = vweird.f32 %v1884
  %vm1891 = vweird.f32 %v1885
  %vm1892 = vmor %vm1890, %vm1891
  %v1893 = vsel %vm1892, %v1885, %v1889
  %v1894 = vand.u32 2147483647, %v1884
  %vm1895 = vcmp.eq.f32.partialorder %v1894, 8.507059e+37
  %v1896 = vand.u32 %v1884, 2147483648
  %v1897 = vor.u32 1.1754944e-38, %v1896
  %v1898 = vsel %vm1895, %v1897, %v1893
  %v1899 = vmul.f32 1.0, %v1898
  %v1900 = vtanh.pop %v1854
  %v1901 = vxor.u32 %v1880, 2147483648
  %v1902 = vmul.f32 %v1901, 1.442695
  %v1903 = vpow.pop %v1902
  %v1904 = vadd.f32 %v1903, 1.0
  %v1905 = vrcp.pop %v1904
  %v1906 = vmul.f32 %v1904, %v1905
  %v1907 = vsub.f32 1.0, %v1906
  %v1908 = vmul.f32 %v1905, %v1907
  %v1909 = vadd.f32 %v1905, %v1908
  %vm1910 = vweird.f32 %v1904
  %vm1911 = vweird.f32 %v1905
  %vm1912 = vmor %vm1910, %vm1911
  %v1913 = vsel %vm1912, %v1905, %v1909
  %v1914 = vand.u32 2147483647, %v1904
  %vm1915 = vcmp.eq.f32.partialorder %v1914, 8.507059e+37
  %v1916 = vand.u32 %v1904, 2147483648
  %v1917 = vor.u32 1.1754944e-38, %v1916
  %v1918 = vsel %vm1915, %v1917, %v1913
  %v1919 = vmul.f32 1.0, %v1918
  %v1920 = vtanh.pop %v1880
  %v1921 = vmul.f32 %v1899, %v1797
  %1923 = vrot.lane.b32.xlu0 %v1900, 64
  %v1924 = vpop.permute.xlu0 %1923
  %v1926 = vmul.f32 %v1899, %v1924
  %1928 = vrot.lane.b32.xlu0 %v1926, 32
  %v1929 = vpop.permute.xlu0 %1928
  %v1931 = vadd.f32 %v1921, %v1929
  %v1932 = vtanh.pop %v1931
  %1934 = vrot.lane.b32.xlu0 %v1932, 64
  %v1935 = vpop.permute.xlu0 %1934
  %v1937 = vmul.f32 %v1899, %v1935
  %v1938 = vmul.f32 %v1919, %v1814
  %1940 = vrot.lane.b32.xlu0 %v1920, 64
  %v1941 = vpop.permute.xlu0 %1940
  %v1943 = vmul.f32 %v1919, %v1941
  %1945 = vrot.lane.b32.xlu0 %v1943, 32
  %v1946 = vpop.permute.xlu0 %1945
  %v1948 = vadd.f32 %v1938, %v1946
  %v1949 = vtanh.pop %v1948
  %1951 = vrot.lane.b32.xlu0 %v1949, 64
  %v1952 = vpop.permute.xlu0 %1951
  %v1954 = vmul.f32 %v1919, %v1952
  %1956 = vrot.lane.b32.xlu0 %v1937, 32
  %v1957 = vpop.permute.xlu0 %1956
  %1959 = vst.msk [vmem:[#allocation5 + $0x18] sm:$0xff] %vm202, %v1957
  %1961 = vrot.lane.b32.xlu0 %v1954, 64
  %v1962 = vpop.permute.xlu0 %1961
  %1964 = vst.msk [vmem:[#allocation5 + $0x20] sm:$0xff] %vm332, %v1962
  %v1965 = vld [vmem:[#allocation2 + $0x20] sm:$0xff]
  %v1966 = vsel %vm202, %v1957, 0
  %1968 = vmatpush.msra.mxu0 0.0
  %1969 = vmatpush.msra.mxu0 0.0
  %1970 = vmatpush.msra.mxu0 0.0
  %1971 = vmatpush.msra.mxu0 0.0
  %1972 = vmatpush.msra.mxu0 0.0
  %1973 = vmatpush.msra.mxu0 0.0
  %1974 = vmatpush.msra.mxu0 0.0
  %1975 = vmatpush.msra.mxu0 0.0
  %1976 = vmatpush.msra.mxu0 0.0
  %1977 = vmatpush.msra.mxu0 0.0
  %1978 = vmatpush.msra.mxu0 0.0
  %1979 = vmatpush.msra.mxu0 0.0
  %1980 = vmatpush.msra.mxu0 %v1430
  %1981 = vmatpush.msra.mxu0 %v1429
  %1982 = vmatpush.msra.mxu0 %v1428
  %1983 = vmatpush.msra.mxu0 %v1427
  %1984 = vmatmul.f32.gmra.mxu0 %v1966
  %v1985 = vpop.f32.mrf.mxu0
  %v1986 = vadd.f32 0.0, %v1985
  %1987 = vdwg.mxu0
  %v1988 = vadd.f32 %v1965, %v1986
  %v1989 = vld [vmem:[#allocation3 + $0x18] sm:$0xff]
  %1990 = vrot.lane.b32.xlu0 %v1954, 32
  %v1991 = vpop.permute.xlu0 %1990
  %v1992 = vsel %vm202, %v1991, 0
  %1994 = vmatpush.msra.mxu0 0.0
  %1995 = vmatpush.msra.mxu0 0.0
  %1996 = vmatpush.msra.mxu0 0.0
  %1997 = vmatpush.msra.mxu0 0.0
  %1998 = vmatpush.msra.mxu0 0.0
  %1999 = vmatpush.msra.mxu0 0.0
  %2000 = vmatpush.msra.mxu0 0.0
  %2001 = vmatpush.msra.mxu0 0.0
  %2002 = vmatpush.msra.mxu0 0.0
  %2003 = vmatpush.msra.mxu0 0.0
  %2004 = vmatpush.msra.mxu0 0.0
  %2005 = vmatpush.msra.mxu0 0.0
  %2006 = vmatpush.msra.mxu0 %v1434
  %2007 = vmatpush.msra.mxu0 %v1433
  %2008 = vmatpush.msra.mxu0 %v1432
  %2009 = vmatpush.msra.mxu0 %v1431
  %2010 = vmatmul.f32.gmra.mxu0 %v1992
  %v2011 = vpop.f32.mrf.mxu0
  %v2012 = vadd.f32 0.0, %v2011
  %2013 = vdwg.mxu0
  %v2014 = vadd.f32 %v1989, %v2012
  %v2015 = vxor.u32 %v1988, 2147483648
  %v2016 = vmul.f32 %v2015, 1.442695
  %v2017 = vpow.pop %v2016
  %v2018 = vadd.f32 %v2017, 1.0
  %v2019 = vrcp.pop %v2018
  %v2020 = vmul.f32 %v2018, %v2019
  %v2021 = vsub.f32 1.0, %v2020
  %v2022 = vmul.f32 %v2019, %v2021
  %v2023 = vadd.f32 %v2019, %v2022
  %vm2024 = vweird.f32 %v2018
  %vm2025 = vweird.f32 %v2019
  %vm2026 = vmor %vm2024, %vm2025
  %v2027 = vsel %vm2026, %v2019, %v2023
  %v2028 = vand.u32 2147483647, %v2018
  %vm2029 = vcmp.eq.f32.partialorder %v2028, 8.507059e+37
  %v2030 = vand.u32 %v2018, 2147483648
  %v2031 = vor.u32 1.1754944e-38, %v2030
  %v2032 = vsel %vm2029, %v2031, %v2027
  %v2033 = vmul.f32 1.0, %v2032
  %v2034 = vtanh.pop %v1988
  %v2035 = vxor.u32 %v2014, 2147483648
  %v2036 = vmul.f32 %v2035, 1.442695
  %v2037 = vpow.pop %v2036
  %v2038 = vadd.f32 %v2037, 1.0
  %v2039 = vrcp.pop %v2038
  %v2040 = vmul.f32 %v2038, %v2039
  %v2041 = vsub.f32 1.0, %v2040
  %v2042 = vmul.f32 %v2039, %v2041
  %v2043 = vadd.f32 %v2039, %v2042
  %vm2044 = vweird.f32 %v2038
  %vm2045 = vweird.f32 %v2039
  %vm2046 = vmor %vm2044, %vm2045
  %v2047 = vsel %vm2046, %v2039, %v2043
  %v2048 = vand.u32 2147483647, %v2038
  %vm2049 = vcmp.eq.f32.partialorder %v2048, 8.507059e+37
  %v2050 = vand.u32 %v2038, 2147483648
  %v2051 = vor.u32 1.1754944e-38, %v2050
  %v2052 = vsel %vm2049, %v2051, %v2047
  %v2053 = vmul.f32 1.0, %v2052
  %v2054 = vtanh.pop %v2014
  %v2055 = vmul.f32 %v2033, %v1931
  %2057 = vrot.lane.b32.xlu0 %v2034, 64
  %v2058 = vpop.permute.xlu0 %2057
  %v2060 = vmul.f32 %v2033, %v2058
  %2062 = vrot.lane.b32.xlu0 %v2060, 32
  %v2063 = vpop.permute.xlu0 %2062
  %v2065 = vadd.f32 %v2055, %v2063
  %v2066 = vtanh.pop %v2065
  %2068 = vrot.lane.b32.xlu0 %v2066, 64
  %v2069 = vpop.permute.xlu0 %2068
  %v2071 = vmul.f32 %v2033, %v2069
  %v2072 = vmul.f32 %v2053, %v1948
  %2074 = vrot.lane.b32.xlu0 %v2054, 64
  %v2075 = vpop.permute.xlu0 %2074
  %v2077 = vmul.f32 %v2053, %v2075
  %2079 = vrot.lane.b32.xlu0 %v2077, 32
  %v2080 = vpop.permute.xlu0 %2079
  %v2082 = vadd.f32 %v2072, %v2080
  %v2083 = vtanh.pop %v2082
  %2085 = vrot.lane.b32.xlu0 %v2083, 64
  %v2086 = vpop.permute.xlu0 %2085
  %v2088 = vmul.f32 %v2053, %v2086
  %2090 = vrot.lane.b32.xlu0 %v2071, 32
  %v2091 = vpop.permute.xlu0 %2090
  %2093 = vst.msk [vmem:[#allocation5 + $0x20] sm:$0xff] %vm202, %v2091
  %2095 = vrot.lane.b32.xlu0 %v2088, 64
  %v2096 = vpop.permute.xlu0 %2095
  %2098 = vst.msk [vmem:[#allocation5 + $0x18] sm:$0xff] %vm332, %v2096
  %v2099 = vld [vmem:[#allocation2 + $0x28] sm:$0xff]
  %v2100 = vsel %vm202, %v2091, 0
  %2102 = vmatpush.msra.mxu0 0.0
  %2103 = vmatpush.msra.mxu0 0.0
  %2104 = vmatpush.msra.mxu0 0.0
  %2105 = vmatpush.msra.mxu0 0.0
  %2106 = vmatpush.msra.mxu0 0.0
  %2107 = vmatpush.msra.mxu0 0.0
  %2108 = vmatpush.msra.mxu0 0.0
  %2109 = vmatpush.msra.mxu0 0.0
  %2110 = vmatpush.msra.mxu0 0.0
  %2111 = vmatpush.msra.mxu0 0.0
  %2112 = vmatpush.msra.mxu0 0.0
  %2113 = vmatpush.msra.mxu0 0.0
  %2114 = vmatpush.msra.mxu0 %v1430
  %2115 = vmatpush.msra.mxu0 %v1429
  %2116 = vmatpush.msra.mxu0 %v1428
  %2117 = vmatpush.msra.mxu0 %v1427
  %2118 = vmatmul.f32.gmra.mxu0 %v2100
  %v2119 = vpop.f32.mrf.mxu0
  %v2120 = vadd.f32 0.0, %v2119
  %2121 = vdwg.mxu0
  %v2122 = vadd.f32 %v2099, %v2120
  %v2123 = vld [vmem:[#allocation3 + $0x10] sm:$0xff]
  %2124 = vrot.lane.b32.xlu0 %v2088, 32
  %v2125 = vpop.permute.xlu0 %2124
  %v2126 = vsel %vm202, %v2125, 0
  %2128 = vmatpush.msra.mxu0 0.0
  %2129 = vmatpush.msra.mxu0 0.0
  %2130 = vmatpush.msra.mxu0 0.0
  %2131 = vmatpush.msra.mxu0 0.0
  %2132 = vmatpush.msra.mxu0 0.0
  %2133 = vmatpush.msra.mxu0 0.0
  %2134 = vmatpush.msra.mxu0 0.0
  %2135 = vmatpush.msra.mxu0 0.0
  %2136 = vmatpush.msra.mxu0 0.0
  %2137 = vmatpush.msra.mxu0 0.0
  %2138 = vmatpush.msra.mxu0 0.0
  %2139 = vmatpush.msra.mxu0 0.0
  %2140 = vmatpush.msra.mxu0 %v1434
  %2141 = vmatpush.msra.mxu0 %v1433
  %2142 = vmatpush.msra.mxu0 %v1432
  %2143 = vmatpush.msra.mxu0 %v1431
  %2144 = vmatmul.f32.gmra.mxu0 %v2126
  %v2145 = vpop.f32.mrf.mxu0
  %v2146 = vadd.f32 0.0, %v2145
  %2147 = vdwg.mxu0
  %v2148 = vadd.f32 %v2123, %v2146
  %v2149 = vxor.u32 %v2122, 2147483648
  %v2150 = vmul.f32 %v2149, 1.442695
  %v2151 = vpow.pop %v2150
  %v2152 = vadd.f32 %v2151, 1.0
  %v2153 = vrcp.pop %v2152
  %v2154 = vmul.f32 %v2152, %v2153
  %v2155 = vsub.f32 1.0, %v2154
  %v2156 = vmul.f32 %v2153, %v2155
  %v2157 = vadd.f32 %v2153, %v2156
  %vm2158 = vweird.f32 %v2152
  %vm2159 = vweird.f32 %v2153
  %vm2160 = vmor %vm2158, %vm2159
  %v2161 = vsel %vm2160, %v2153, %v2157
  %v2162 = vand.u32 2147483647, %v2152
  %vm2163 = vcmp.eq.f32.partialorder %v2162, 8.507059e+37
  %v2164 = vand.u32 %v2152, 2147483648
  %v2165 = vor.u32 1.1754944e-38, %v2164
  %v2166 = vsel %vm2163, %v2165, %v2161
  %v2167 = vmul.f32 1.0, %v2166
  %v2168 = vtanh.pop %v2122
  %v2169 = vxor.u32 %v2148, 2147483648
  %v2170 = vmul.f32 %v2169, 1.442695
  %v2171 = vpow.pop %v2170
  %v2172 = vadd.f32 %v2171, 1.0
  %v2173 = vrcp.pop %v2172
  %v2174 = vmul.f32 %v2172, %v2173
  %v2175 = vsub.f32 1.0, %v2174
  %v2176 = vmul.f32 %v2173, %v2175
  %v2177 = vadd.f32 %v2173, %v2176
  %vm2178 = vweird.f32 %v2172
  %vm2179 = vweird.f32 %v2173
  %vm2180 = vmor %vm2178, %vm2179
  %v2181 = vsel %vm2180, %v2173, %v2177
  %v2182 = vand.u32 2147483647, %v2172
  %vm2183 = vcmp.eq.f32.partialorder %v2182, 8.507059e+37
  %v2184 = vand.u32 %v2172, 2147483648
  %v2185 = vor.u32 1.1754944e-38, %v2184
  %v2186 = vsel %vm2183, %v2185, %v2181
  %v2187 = vmul.f32 1.0, %v2186
  %v2188 = vtanh.pop %v2148
  %v2189 = vmul.f32 %v2167, %v2065
  %2191 = vrot.lane.b32.xlu0 %v2168, 64
  %v2192 = vpop.permute.xlu0 %2191
  %v2194 = vmul.f32 %v2167, %v2192
  %2196 = vrot.lane.b32.xlu0 %v2194, 32
  %v2197 = vpop.permute.xlu0 %2196
  %v2199 = vadd.f32 %v2189, %v2197
  %v2200 = vtanh.pop %v2199
  %2202 = vrot.lane.b32.xlu0 %v2200, 64
  %v2203 = vpop.permute.xlu0 %2202
  %v2205 = vmul.f32 %v2167, %v2203
  %v2206 = vmul.f32 %v2187, %v2082
  %2208 = vrot.lane.b32.xlu0 %v2188, 64
  %v2209 = vpop.permute.xlu0 %2208
  %v2211 = vmul.f32 %v2187, %v2209
  %2213 = vrot.lane.b32.xlu0 %v2211, 32
  %v2214 = vpop.permute.xlu0 %2213
  %v2216 = vadd.f32 %v2206, %v2214
  %v2217 = vtanh.pop %v2216
  %2219 = vrot.lane.b32.xlu0 %v2217, 64
  %v2220 = vpop.permute.xlu0 %2219
  %v2222 = vmul.f32 %v2187, %v2220
  %2224 = vrot.lane.b32.xlu0 %v2205, 32
  %v2225 = vpop.permute.xlu0 %2224
  %2227 = vst.msk [vmem:[#allocation5 + $0x28] sm:$0xff] %vm202, %v2225
  %2229 = vrot.lane.b32.xlu0 %v2222, 64
  %v2230 = vpop.permute.xlu0 %2229
  %2232 = vst.msk [vmem:[#allocation5 + $0x10] sm:$0xff] %vm332, %v2230
  %v2233 = vld [vmem:[#allocation2 + $0x30] sm:$0xff]
  %v2234 = vsel %vm202, %v2225, 0
  %2236 = vmatpush.msra.mxu0 0.0
  %2237 = vmatpush.msra.mxu0 0.0
  %2238 = vmatpush.msra.mxu0 0.0
  %2239 = vmatpush.msra.mxu0 0.0
  %2240 = vmatpush.msra.mxu0 0.0
  %2241 = vmatpush.msra.mxu0 0.0
  %2242 = vmatpush.msra.mxu0 0.0
  %2243 = vmatpush.msra.mxu0 0.0
  %2244 = vmatpush.msra.mxu0 0.0
  %2245 = vmatpush.msra.mxu0 0.0
  %2246 = vmatpush.msra.mxu0 0.0
  %2247 = vmatpush.msra.mxu0 0.0
  %2248 = vmatpush.msra.mxu0 %v1430
  %2249 = vmatpush.msra.mxu0 %v1429
  %2250 = vmatpush.msra.mxu0 %v1428
  %2251 = vmatpush.msra.mxu0 %v1427
  %2252 = vmatmul.f32.gmra.mxu0 %v2234
  %v2253 = vpop.f32.mrf.mxu0
  %v2254 = vadd.f32 0.0, %v2253
  %2255 = vdwg.mxu0
  %v2256 = vadd.f32 %v2233, %v2254
  %v2257 = vld [vmem:[#allocation3 + $0x8] sm:$0xff]
  %2258 = vrot.lane.b32.xlu0 %v2222, 32
  %v2259 = vpop.permute.xlu0 %2258
  %v2260 = vsel %vm202, %v2259, 0
  %2262 = vmatpush.msra.mxu0 0.0
  %2263 = vmatpush.msra.mxu0 0.0
  %2264 = vmatpush.msra.mxu0 0.0
  %2265 = vmatpush.msra.mxu0 0.0
  %2266 = vmatpush.msra.mxu0 0.0
  %2267 = vmatpush.msra.mxu0 0.0
  %2268 = vmatpush.msra.mxu0 0.0
  %2269 = vmatpush.msra.mxu0 0.0
  %2270 = vmatpush.msra.mxu0 0.0
  %2271 = vmatpush.msra.mxu0 0.0
  %2272 = vmatpush.msra.mxu0 0.0
  %2273 = vmatpush.msra.mxu0 0.0
  %2274 = vmatpush.msra.mxu0 %v1434
  %2275 = vmatpush.msra.mxu0 %v1433
  %2276 = vmatpush.msra.mxu0 %v1432
  %2277 = vmatpush.msra.mxu0 %v1431
  %2278 = vmatmul.f32.gmra.mxu0 %v2260
  %v2279 = vpop.f32.mrf.mxu0
  %v2280 = vadd.f32 0.0, %v2279
  %2281 = vdwg.mxu0
  %v2282 = vadd.f32 %v2257, %v2280
  %v2283 = vxor.u32 %v2256, 2147483648
  %v2284 = vmul.f32 %v2283, 1.442695
  %v2285 = vpow.pop %v2284
  %v2286 = vadd.f32 %v2285, 1.0
  %v2287 = vrcp.pop %v2286
  %v2288 = vmul.f32 %v2286, %v2287
  %v2289 = vsub.f32 1.0, %v2288
  %v2290 = vmul.f32 %v2287, %v2289
  %v2291 = vadd.f32 %v2287, %v2290
  %vm2292 = vweird.f32 %v2286
  %vm2293 = vweird.f32 %v2287
  %vm2294 = vmor %vm2292, %vm2293
  %v2295 = vsel %vm2294, %v2287, %v2291
  %v2296 = vand.u32 2147483647, %v2286
  %vm2297 = vcmp.eq.f32.partialorder %v2296, 8.507059e+37
  %v2298 = vand.u32 %v2286, 2147483648
  %v2299 = vor.u32 1.1754944e-38, %v2298
  %v2300 = vsel %vm2297, %v2299, %v2295
  %v2301 = vmul.f32 1.0, %v2300
  %v2302 = vtanh.pop %v2256
  %v2303 = vxor.u32 %v2282, 2147483648
  %v2304 = vmul.f32 %v2303, 1.442695
  %v2305 = vpow.pop %v2304
  %v2306 = vadd.f32 %v2305, 1.0
  %v2307 = vrcp.pop %v2306
  %v2308 = vmul.f32 %v2306, %v2307
  %v2309 = vsub.f32 1.0, %v2308
  %v2310 = vmul.f32 %v2307, %v2309
  %v2311 = vadd.f32 %v2307, %v2310
  %vm2312 = vweird.f32 %v2306
  %vm2313 = vweird.f32 %v2307
  %vm2314 = vmor %vm2312, %vm2313
  %v2315 = vsel %vm2314, %v2307, %v2311
  %v2316 = vand.u32 2147483647, %v2306
  %vm2317 = vcmp.eq.f32.partialorder %v2316, 8.507059e+37
  %v2318 = vand.u32 %v2306, 2147483648
  %v2319 = vor.u32 1.1754944e-38, %v2318
  %v2320 = vsel %vm2317, %v2319, %v2315
  %v2321 = vmul.f32 1.0, %v2320
  %v2322 = vtanh.pop %v2282
  %v2323 = vmul.f32 %v2301, %v2199
  %2325 = vrot.lane.b32.xlu0 %v2302, 64
  %v2326 = vpop.permute.xlu0 %2325
  %v2328 = vmul.f32 %v2301, %v2326
  %2330 = vrot.lane.b32.xlu0 %v2328, 32
  %v2331 = vpop.permute.xlu0 %2330
  %v2333 = vadd.f32 %v2323, %v2331
  %v2334 = vtanh.pop %v2333
  %2336 = vrot.lane.b32.xlu0 %v2334, 64
  %v2337 = vpop.permute.xlu0 %2336
  %v2339 = vmul.f32 %v2301, %v2337
  %v2340 = vmul.f32 %v2321, %v2216
  %2342 = vrot.lane.b32.xlu0 %v2322, 64
  %v2343 = vpop.permute.xlu0 %2342
  %v2345 = vmul.f32 %v2321, %v2343
  %2347 = vrot.lane.b32.xlu0 %v2345, 32
  %v2348 = vpop.permute.xlu0 %2347
  %v2350 = vadd.f32 %v2340, %v2348
  %v2351 = vtanh.pop %v2350
  %2353 = vrot.lane.b32.xlu0 %v2351, 64
  %v2354 = vpop.permute.xlu0 %2353
  %v2356 = vmul.f32 %v2321, %v2354
  %2358 = vrot.lane.b32.xlu0 %v2339, 32
  %v2359 = vpop.permute.xlu0 %2358
  %2361 = vst.msk [vmem:[#allocation5 + $0x30] sm:$0xff] %vm202, %v2359
  %2363 = vrot.lane.b32.xlu0 %v2356, 64
  %v2364 = vpop.permute.xlu0 %2363
  %2366 = vst.msk [vmem:[#allocation5 + $0x8] sm:$0xff] %vm332, %v2364
  %v2367 = vld [vmem:[#allocation2 + $0x38] sm:$0xff]
  %v2368 = vsel %vm202, %v2359, 0
  %2370 = vmatpush.msra.mxu0 0.0
  %2371 = vmatpush.msra.mxu0 0.0
  %2372 = vmatpush.msra.mxu0 0.0
  %2373 = vmatpush.msra.mxu0 0.0
  %2374 = vmatpush.msra.mxu0 0.0
  %2375 = vmatpush.msra.mxu0 0.0
  %2376 = vmatpush.msra.mxu0 0.0
  %2377 = vmatpush.msra.mxu0 0.0
  %2378 = vmatpush.msra.mxu0 0.0
  %2379 = vmatpush.msra.mxu0 0.0
  %2380 = vmatpush.msra.mxu0 0.0
  %2381 = vmatpush.msra.mxu0 0.0
  %2382 = vmatpush.msra.mxu0 %v1430
  %2383 = vmatpush.msra.mxu0 %v1429
  %2384 = vmatpush.msra.mxu0 %v1428
  %2385 = vmatpush.msra.mxu0 %v1427
  %2386 = vmatmul.f32.gmra.mxu0 %v2368
  %v2387 = vpop.f32.mrf.mxu0
  %v2388 = vadd.f32 0.0, %v2387
  %2389 = vdwg.mxu0
  %v2390 = vadd.f32 %v2367, %v2388
  %v2391 = vld [vmem:[#allocation3] sm:$0xff]
  %2392 = vrot.lane.b32.xlu0 %v2356, 32
  %v2393 = vpop.permute.xlu0 %2392
  %v2394 = vsel %vm202, %v2393, 0
  %2396 = vmatpush.msra.mxu0 0.0
  %2397 = vmatpush.msra.mxu0 0.0
  %2398 = vmatpush.msra.mxu0 0.0
  %2399 = vmatpush.msra.mxu0 0.0
  %2400 = vmatpush.msra.mxu0 0.0
  %2401 = vmatpush.msra.mxu0 0.0
  %2402 = vmatpush.msra.mxu0 0.0
  %2403 = vmatpush.msra.mxu0 0.0
  %2404 = vmatpush.msra.mxu0 0.0
  %2405 = vmatpush.msra.mxu0 0.0
  %2406 = vmatpush.msra.mxu0 0.0
  %2407 = vmatpush.msra.mxu0 0.0
  %2408 = vmatpush.msra.mxu0 %v1434
  %2409 = vmatpush.msra.mxu0 %v1433
  %2410 = vmatpush.msra.mxu0 %v1432
  %2411 = vmatpush.msra.mxu0 %v1431
  %2412 = vmatmul.f32.gmra.mxu0 %v2394
  %v2413 = vpop.f32.mrf.mxu0
  %v2414 = vadd.f32 0.0, %v2413
  %2415 = vdwg.mxu0
  %v2416 = vadd.f32 %v2391, %v2414
  %v2417 = vxor.u32 %v2390, 2147483648
  %v2418 = vmul.f32 %v2417, 1.442695
  %v2419 = vpow.pop %v2418
  %v2420 = vadd.f32 %v2419, 1.0
  %v2421 = vrcp.pop %v2420
  %v2422 = vmul.f32 %v2420, %v2421
  %v2423 = vsub.f32 1.0, %v2422
  %v2424 = vmul.f32 %v2421, %v2423
  %v2425 = vadd.f32 %v2421, %v2424
  %vm2426 = vweird.f32 %v2420
  %vm2427 = vweird.f32 %v2421
  %vm2428 = vmor %vm2426, %vm2427
  %v2429 = vsel %vm2428, %v2421, %v2425
  %v2430 = vand.u32 2147483647, %v2420
  %vm2431 = vcmp.eq.f32.partialorder %v2430, 8.507059e+37
  %v2432 = vand.u32 %v2420, 2147483648
  %v2433 = vor.u32 1.1754944e-38, %v2432
  %v2434 = vsel %vm2431, %v2433, %v2429
  %v2435 = vmul.f32 1.0, %v2434
  %v2436 = vtanh.pop %v2390
  %v2437 = vxor.u32 %v2416, 2147483648
  %v2438 = vmul.f32 %v2437, 1.442695
  %v2439 = vpow.pop %v2438
  %v2440 = vadd.f32 %v2439, 1.0
  %v2441 = vrcp.pop %v2440
  %v2442 = vmul.f32 %v2440, %v2441
  %v2443 = vsub.f32 1.0, %v2442
  %v2444 = vmul.f32 %v2441, %v2443
  %v2445 = vadd.f32 %v2441, %v2444
  %vm2446 = vweird.f32 %v2440
  %vm2447 = vweird.f32 %v2441
  %vm2448 = vmor %vm2446, %vm2447
  %v2449 = vsel %vm2448, %v2441, %v2445
  %v2450 = vand.u32 2147483647, %v2440
  %vm2451 = vcmp.eq.f32.partialorder %v2450, 8.507059e+37
  %v2452 = vand.u32 %v2440, 2147483648
  %v2453 = vor.u32 1.1754944e-38, %v2452
  %v2454 = vsel %vm2451, %v2453, %v2449
  %v2455 = vmul.f32 1.0, %v2454
  %v2456 = vtanh.pop %v2416
  %v2457 = vmul.f32 %v2435, %v2333
  %2459 = vrot.lane.b32.xlu0 %v2436, 64
  %v2460 = vpop.permute.xlu0 %2459
  %v2462 = vmul.f32 %v2435, %v2460
  %2464 = vrot.lane.b32.xlu0 %v2462, 32
  %v2465 = vpop.permute.xlu0 %2464
  %v2467 = vadd.f32 %v2457, %v2465
  %v2468 = vtanh.pop %v2467
  %2470 = vrot.lane.b32.xlu0 %v2468, 64
  %v2471 = vpop.permute.xlu0 %2470
  %v2473 = vmul.f32 %v2435, %v2471
  %v2474 = vmul.f32 %v2455, %v2350
  %2476 = vrot.lane.b32.xlu0 %v2456, 64
  %v2477 = vpop.permute.xlu0 %2476
  %v2479 = vmul.f32 %v2455, %v2477
  %2481 = vrot.lane.b32.xlu0 %v2479, 32
  %v2482 = vpop.permute.xlu0 %2481
  %v2484 = vadd.f32 %v2474, %v2482
  %v2485 = vtanh.pop %v2484
  %2487 = vrot.lane.b32.xlu0 %v2485, 64
  %v2488 = vpop.permute.xlu0 %2487
  %v2490 = vmul.f32 %v2455, %v2488
  %2492 = vrot.lane.b32.xlu0 %v2473, 32
  %v2493 = vpop.permute.xlu0 %2492
  %2495 = vst.msk [vmem:[#allocation5 + $0x38] sm:$0xff] %vm202, %v2493
  %2497 = vrot.lane.b32.xlu0 %v2490, 64
  %v2498 = vpop.permute.xlu0 %2497
  %2500 = vst.msk [vmem:[#allocation5] sm:$0xff] %vm332, %v2498
  %v2501 = vld [vmem:[#allocation5] sm:$0xff]
  %v2502 = vld [vmem:[#allocation5 + $0x8] sm:$0xff]
  %v2503 = vld [vmem:[#allocation5 + $0x10] sm:$0xff]
  %v2504 = vld [vmem:[#allocation5 + $0x18] sm:$0xff]
  %v2505 = vld [vmem:[#allocation5 + $0x20] sm:$0xff]
  %v2506 = vld [vmem:[#allocation5 + $0x28] sm:$0xff]
  %v2507 = vld [vmem:[#allocation5 + $0x30] sm:$0xff]
  %v2508 = vld [vmem:[#allocation5 + $0x38] sm:$0xff]
  %v2509 = vld [vmem:[%s13] sm:$0xff]
  %v2510 = vld [vmem:[%s13 + $0x8] sm:$0xff]
  %v2511 = vld [vmem:[%s13 + $0x10] sm:$0xff]
  %v2512 = vld [vmem:[%s13 + $0x18] sm:$0xff]
  %v2513 = vld [vmem:[%s13 + $0x20] sm:$0xff]
  %v2514 = vld [vmem:[%s13 + $0x28] sm:$0xff]
  %v2515 = vld [vmem:[%s13 + $0x30] sm:$0xff]
  %v2516 = vld [vmem:[%s13 + $0x38] sm:$0xff]
  %v2517 = vld [vmem:[%s14] sm:$0x1]
  %v2519 = vperm.slane %v2517, 0
  %v2522 = vsel %vm1292, %v2501, 0
  %v2525 = vsel %vm1292, %v2502, 0
  %v2528 = vsel %vm1292, %v2503, 0
  %v2531 = vsel %vm1292, %v2504, 0
  %v2534 = vsel %vm1292, %v2505, 0
  %v2537 = vsel %vm1292, %v2506, 0
  %v2540 = vsel %vm1292, %v2507, 0
  %v2543 = vsel %vm1292, %v2508, 0
  %2545 = vmatpush.msra.mxu0 0.0
  %2546 = vmatpush.msra.mxu0 0.0
  %2547 = vmatpush.msra.mxu0 0.0
  %2548 = vmatpush.msra.mxu0 0.0
  %2549 = vmatpush.msra.mxu0 0.0
  %2550 = vmatpush.msra.mxu0 0.0
  %2551 = vmatpush.msra.mxu0 0.0
  %2552 = vmatpush.msra.mxu0 0.0
  %2553 = vmatpush.msra.mxu0 %v2516
  %2554 = vmatpush.msra.mxu0 %v2515
  %2555 = vmatpush.msra.mxu0 %v2514
  %2556 = vmatpush.msra.mxu0 %v2513
  %2557 = vmatpush.msra.mxu0 %v2512
  %2558 = vmatpush.msra.mxu0 %v2511
  %2559 = vmatpush.msra.mxu0 %v2510
  %2560 = vmatpush.msra.mxu0 %v2509
  %2561 = vmatmul.f32.gmra.mxu0 %v2522
  %v2562 = vpop.f32.mrf.mxu0
  %v2563 = vadd.f32 %v2519, %v2562
  %2564 = vmatmul.f32.gmra.mxu0 %v2525
  %v2565 = vpop.f32.mrf.mxu0
  %v2566 = vadd.f32 %v2519, %v2565
  %2567 = vmatmul.f32.gmra.mxu0 %v2528
  %v2568 = vpop.f32.mrf.mxu0
  %v2569 = vadd.f32 %v2519, %v2568
  %2570 = vmatmul.f32.gmra.mxu0 %v2531
  %v2571 = vpop.f32.mrf.mxu0
  %v2572 = vadd.f32 %v2519, %v2571
  %2573 = vmatmul.f32.gmra.mxu0 %v2534
  %v2574 = vpop.f32.mrf.mxu0
  %v2575 = vadd.f32 %v2519, %v2574
  %2576 = vmatmul.f32.gmra.mxu0 %v2537
  %v2577 = vpop.f32.mrf.mxu0
  %v2578 = vadd.f32 %v2519, %v2577
  %2579 = vmatmul.f32.gmra.mxu0 %v2540
  %v2580 = vpop.f32.mrf.mxu0
  %v2581 = vadd.f32 %v2519, %v2580
  %2582 = vmatmul.f32.gmra.mxu0 %v2543
  %v2583 = vpop.f32.mrf.mxu0
  %v2584 = vadd.f32 %v2519, %v2583
  %2585 = vdwg.mxu0
  %2586 = vst [vmem:[%s15] sm:$0xff] %v2563
  %2587 = vst [vmem:[%s15 + $0x8] sm:$0xff] %v2566
  %2588 = vst [vmem:[%s15 + $0x10] sm:$0xff] %v2569
  %2589 = vst [vmem:[%s15 + $0x18] sm:$0xff] %v2572
  %2590 = vst [vmem:[%s15 + $0x20] sm:$0xff] %v2575
  %2591 = vst [vmem:[%s15 + $0x28] sm:$0xff] %v2578
  %2592 = vst [vmem:[%s15 + $0x30] sm:$0xff] %v2581
  %2593 = vst [vmem:[%s15 + $0x38] sm:$0xff] %v2584
  // Predicated region
  $region62: #{lstm_forward.1} parent=0 // pred_check
    _
  $region63: #{lstm_forward.1} parent=0 // pred_check_branch
    %2595 = sbr.rel (0) target = $region65
  $region64: #{lstm_forward.1} parent=0 // pred_region
    _
  $region65: #{lstm_forward.1} parent=0 // pred_fallthru
    _
  // Predicated region
  $region66: #{lstm_forward.1} parent=0 // pred_check
    _
  $region67: #{lstm_forward.1} parent=0 // pred_check_branch
    %2597 = sbr.rel (0) target = $region69
  $region68: #{lstm_forward.1} parent=0 // pred_region
    _
  $region69: #{lstm_forward.1} parent=0 // pred_fallthru
    _

</llo_original>
